<compile_context>
chip_gen: v6e
topology: v6e:2x2x1
jax: 0.10.0
libtpu: 0.0.40
codegen_flags: <defaults>
</compile_context>

<pallas_src>
import jax
import jax.numpy as jnp
from jax.experimental import pallas as pl
from jax.experimental.pallas import tpu as pltpu

# Net architecture (nn.Conv2d(1, 6, 3); nn.Linear(1350, 10)) => input must be (N, 1, 32, 32)
C_OUT = 6
KH = KW = 3
H_IN = W_IN = 32
H_CONV = H_IN - KH + 1          # 30  (W identical)
H_POOL = H_CONV // 2            # 15  (W identical)
P = H_POOL * H_POOL             # 225 pooled pixels per channel
FC_IN = C_OUT * P               # 1350
FC_OUT = 10
FC_OUT_PAD = 128                # lane-dense output width (sliced back to 10 in wrapper)
CH_STRIDE = 256                 # 128-aligned per-channel lane offset in the act scratch
K_PAD = C_OUT * CH_STRIDE       # 1536 padded FC contraction dim
NB = 128                        # batch rows per grid step (fills MXU M, fits v5e VMEM)
ROWS = 8                        # row sub-tile inside the kernel (bounds vreg live ranges)


def net_kernel(xcol_ref, cw_ref, cb_ref, fcw_ref, fcb_ref, o_ref, act_ref):
    """Fused conv + relu + maxpool + relu + fc for one batch block of NB elements.

    xcol_ref: VMEM (4, 4, NB, 225)   xcol[s, t, m, i*15+j] = x[m, 2i+s, 2j+t]
    cw_ref  : SMEM (6, 9)            conv weights, tap index ki*3 + kj
    cb_ref  : SMEM (6,)              conv bias
    fcw_ref : VMEM (1536, 128)       fc weight, row c*256 + i*15+j, zero-padded
    fcb_ref : VMEM (1, 128)          fc bias, zero-padded
    o_ref   : VMEM (NB, 128)         logits (first 10 lanes valid)
    act_ref : VMEM (NB, 1536)        scratch: pooled/ReLU'd activations, zero-padded lanes
    """
    # Pad lanes of the scratch must be zero (uninitialized VMEM may hold garbage/NaN).
    act_ref[...] = jnp.zeros_like(act_ref)

    def row_block(r, carry):
        row0 = pl.multiple_of(r * ROWS, ROWS)
        rows = pl.ds(row0, ROWS)
        # 16 distinct (ROWS, 225) phase patches held in registers, reused across taps/channels.
        patches = [[xcol_ref[s, t, rows, :] for t in range(4)] for s in range(4)]
        for c in range(C_OUT):
            pooled = None
            for di in range(2):                 # pooling-window row phase
                for dj in range(2):             # pooling-window col phase
                    acc = None
                    for ki in range(KH):
                        for kj in range(KW):
                            term = cw_ref[c, ki * KW + kj] * patches[di + ki][dj + kj]
                            acc = term if acc is None else acc + term
                    pooled = acc if pooled is None else jnp.maximum(pooled, acc)
            # Bias + single ReLU hoisted out of the phase loop:
            #   max_phase(relu(s_phase + b)) == relu(max_phase(s_phase) + b)
            # and the second ReLU after max-pool is a numerical no-op.
            act = jnp.maximum(pooled + cb_ref[c], 0.0)                    # (ROWS, 225)
            act_ref[rows, pl.ds(c * CH_STRIDE, P)] = act
        return carry

    jax.lax.fori_loop(0, NB // ROWS, row_block, 0)

    # Single fused FC matmul on the MXU: (NB, 1536) x (1536, 128), lane-dense output.
    # TODO(synk): on v6e/v7x cast act/fcw to bf16 here if the accuracy budget allows.
    o_ref[...] = (
        jnp.dot(act_ref[...], fcw_ref[...], preferred_element_type=jnp.float32)
        + fcb_ref[...]
    )


def net_forward(x, conv_w, conv_b, fc_w, fc_b):
    # x: (N, 1, 32, 32) float32 (NCHW, same as PyTorch)
    N = x.shape[0]
    G = -(-N // NB)                     # ceil(N / NB)
    Npad = G * NB
    if Npad != N:
        x = jnp.pad(x, ((0, Npad - N), (0, 0), (0, 0), (0, 0)))

    # glue: phase/im2col decomposition (pure indexing, no arithmetic), built directly
    # in (G, 4, 4, NB, 225) order so the big batch axis is never transposed in HBM.
    x2 = x[:, 0].reshape(G, NB, H_IN, W_IN)                       # (G, NB, 32, 32)
    rows = []
    for s in range(4):
        cols = []
        for t in range(4):
            sl = x2[:, :, s:s + 2 * H_POOL:2, t:t + 2 * H_POOL:2]  # (G, NB, 15, 15)
            cols.append(sl.reshape(G, NB, P))
        rows.append(jnp.stack(cols, axis=1))                       # (G, 4, NB, 225)
    xcol = jnp.stack(rows, axis=1)                                 # (G, 4, 4, NB, 225)

    w_flat = conv_w.reshape(C_OUT, KH * KW)                        # (6, 9)

    # glue: fc weight in torch's x.view(N, -1) feature order, zero-padded so that
    # row index = c*256 + (i*15 + j) matches the in-kernel act scratch layout,
    # and the output dim is a full 128 lanes.
    fcw = fc_w.reshape(FC_OUT, C_OUT, P).transpose(1, 2, 0)        # (6, 225, 10)
    fcw_pad = jnp.zeros((C_OUT, CH_STRIDE, FC_OUT_PAD), jnp.float32)
    fcw_pad = fcw_pad.at[:, :P, :FC_OUT].set(fcw)
    fcw_pad = fcw_pad.reshape(K_PAD, FC_OUT_PAD)                   # (1536, 128)
    fcb_pad = jnp.zeros((1, FC_OUT_PAD), jnp.float32).at[0, :FC_OUT].set(fc_b)

    out = pl.pallas_call(
        net_kernel,
        grid=(G,),
        in_specs=[
            pl.BlockSpec((None, 4, 4, NB, P), lambda g: (g, 0, 0, 0, 0)),
            pl.BlockSpec(memory_space=pltpu.MemorySpace.SMEM),
            pl.BlockSpec(memory_space=pltpu.MemorySpace.SMEM),
            pl.BlockSpec((K_PAD, FC_OUT_PAD), lambda g: (0, 0)),   # resident fc weight
            pl.BlockSpec((1, FC_OUT_PAD), lambda g: (0, 0)),       # resident fc bias
        ],
        out_specs=pl.BlockSpec((NB, FC_OUT_PAD), lambda g: (g, 0)),
        out_shape=jax.ShapeDtypeStruct((Npad, FC_OUT_PAD), jnp.float32),
        scratch_shapes=[pltpu.VMEM((NB, K_PAD), jnp.float32)],
        compiler_params=pltpu.CompilerParams(dimension_semantics=("parallel",)),
    )(xcol, w_flat, conv_b, fcw_pad, fcb_pad)
    return out[:N, :FC_OUT]


def reference_forward(x, conv_w, conv_b, fc_w, fc_b):
    y = jax.lax.conv_general_dilated(
        x, conv_w, window_strides=(1, 1), padding="VALID",
        dimension_numbers=("NCHW", "OIHW", "NCHW"),
        precision=jax.lax.Precision.HIGHEST)
    y = y + conv_b[None, :, None, None]
    y = jnp.maximum(y, 0.0)
    y = jax.lax.reduce_window(y, -jnp.inf, jax.lax.max,
                              (1, 1, 2, 2), (1, 1, 2, 2), "VALID")
    y = jnp.maximum(y, 0.0)
    y = y.reshape(y.shape[0], -1)
    return jnp.dot(y, fc_w.T, precision=jax.lax.Precision.HIGHEST) + fc_b


if __name__ == "__main__":
    key = jax.random.PRNGKey(0)
    kx, kw1, kb1, kw2, kb2 = jax.random.split(key, 5)

    N = 2
    x = jax.random.normal(kx, (N, 1, H_IN, W_IN), dtype=jnp.float32)
    conv_w = 0.1 * jax.random.normal(kw1, (C_OUT, 1, KH, KW), dtype=jnp.float32)
    conv_b = 0.1 * jax.random.normal(kb1, (C_OUT,), dtype=jnp.float32)
    fc_w = 0.02 * jax.random.normal(kw2, (FC_OUT, FC_IN), dtype=jnp.float32)
    fc_b = 0.1 * jax.random.normal(kb2, (FC_OUT,), dtype=jnp.float32)

    fwd = jax.jit(net_forward)
    out = fwd(x, conv_w, conv_b, fc_w, fc_b)
    out = jax.block_until_ready(out)

    ref = reference_forward(x, conv_w, conv_b, fc_w, fc_b)
    assert out.shape == (N, FC_OUT)
    # 2e-3 tolerance covers the MXU default-precision (bf16-pass) FC dot on hardware;
    # the conv/pool path is exact f32 VPU math.
    assert jnp.allclose(out, ref, atol=2e-3, rtol=2e-3), (out, ref)

    print("KERNEL_OK")
</pallas_src>

<mosaic_0001>
module attributes {stable_mosaic.version = 11 : i64} {
  func.func @net_kernel(%arg0: i32, %arg1: memref<1x4x4x128x225xf32, #tpu.memory_space<vmem>>, %arg2: memref<6x9xf32, #tpu.memory_space<smem>>, %arg3: memref<6xf32, #tpu.memory_space<smem>>, %arg4: memref<1536x128xf32, #tpu.memory_space<vmem>>, %arg5: memref<1x128xf32, #tpu.memory_space<vmem>>, %arg6: memref<128x128xf32, #tpu.memory_space<vmem>>, %arg7: memref<128x1536xf32, #tpu.memory_space<vmem>>) attributes {dimension_semantics = [#tpu.dimension_semantics<parallel>], iteration_bounds = array<i64: 1>, scalar_prefetch = 0 : i64, scratch_operands = 1 : i64, tpu.core_type = #tpu.core_type<tc>, window_params = [{transform_indices = @transform_0, window_bounds = array<i64: 1, 4, 4, 128, 225>}, {transform_indices = @transform_1, window_bounds = array<i64: 6, 9>}, {transform_indices = @transform_2, window_bounds = array<i64: 6>}, {pipeline_mode = #tpu.pipeline_mode<synchronous>, transform_indices = @transform_3, window_bounds = array<i64: 1536, 128>}, {pipeline_mode = #tpu.pipeline_mode<synchronous>, transform_indices = @transform_4, window_bounds = array<i64: 1, 128>}, {transform_indices = @transform_5, window_bounds = array<i64: 128, 128>}]} {
    %cst = arith.constant 0.000000e+00 : f32
    %0 = vector.broadcast %cst : f32 to vector<128x1536xf32>
    %c0 = arith.constant 0 : index
    %c0_0 = arith.constant 0 : index
    %1 = vector.load %arg7[%c0, %c0_0] : memref<128x1536xf32, #tpu.memory_space<vmem>>, vector<128x1536xf32>
    tpu.vector_store %arg7[%c0, %c0_0], %0 {strides = array<i32>} : memref<128x1536xf32, #tpu.memory_space<vmem>>, vector<128x1536xf32>,
    %c0_i32 = arith.constant 0 : i32
    %c16_i32 = arith.constant 16 : i32
    %2 = arith.addi %c0_i32, %c16_i32 : i32
    %c1_i32 = arith.constant 1 : i32
    scf.for %arg8 = %c0_i32 to %2 step %c1_i32  : i32 {
      %c8_i32 = arith.constant 8 : i32
      %10 = arith.muli %arg8, %c8_i32 : i32
      %11 = tpu.assume_multiple %10, 8 : i32
      %c0_11 = arith.constant 0 : index
      %c0_12 = arith.constant 0 : index
      %c0_13 = arith.constant 0 : index
      %12 = arith.index_cast %11 : i32 to index
      %c0_14 = arith.constant 0 : index
      %13 = vector.load %arg1[%c0_11, %c0_12, %c0_13, %12, %c0_14] : memref<1x4x4x128x225xf32, #tpu.memory_space<vmem>>, vector<1x1x1x8x225xf32>
      %14 = vector.shape_cast %13 : vector<1x1x1x8x225xf32> to vector<8x225xf32>
      %c0_15 = arith.constant 0 : index
      %c0_16 = arith.constant 0 : index
      %c1 = arith.constant 1 : index
      %15 = arith.index_cast %11 : i32 to index
      %c0_17 = arith.constant 0 : index
      %16 = vector.load %arg1[%c0_15, %c0_16, %c1, %15, %c0_17] : memref<1x4x4x128x225xf32, #tpu.memory_space<vmem>>, vector<1x1x1x8x225xf32>
      %17 = vector.shape_cast %16 : vector<1x1x1x8x225xf32> to vector<8x225xf32>
      %c0_18 = arith.constant 0 : index
      %c0_19 = arith.constant 0 : index
      %c2 = arith.constant 2 : index
      %18 = arith.index_cast %11 : i32 to index
      %c0_20 = arith.constant 0 : index
      %19 = vector.load %arg1[%c0_18, %c0_19, %c2, %18, %c0_20] : memref<1x4x4x128x225xf32, #tpu.memory_space<vmem>>, vector<1x1x1x8x225xf32>
      %20 = vector.shape_cast %19 : vector<1x1x1x8x225xf32> to vector<8x225xf32>
      %c0_21 = arith.constant 0 : index
      %c0_22 = arith.constant 0 : index
      %c3 = arith.constant 3 : index
      %21 = arith.index_cast %11 : i32 to index
      %c0_23 = arith.constant 0 : index
      %22 = vector.load %arg1[%c0_21, %c0_22, %c3, %21, %c0_23] : memref<1x4x4x128x225xf32, #tpu.memory_space<vmem>>, vector<1x1x1x8x225xf32>
      %23 = vector.shape_cast %22 : vector<1x1x1x8x225xf32> to vector<8x225xf32>
      %c0_24 = arith.constant 0 : index
      %c1_25 = arith.constant 1 : index
      %c0_26 = arith.constant 0 : index
      %24 = arith.index_cast %11 : i32 to index
      %c0_27 = arith.constant 0 : index
      %25 = vector.load %arg1[%c0_24, %c1_25, %c0_26, %24, %c0_27] : memref<1x4x4x128x225xf32, #tpu.memory_space<vmem>>, vector<1x1x1x8x225xf32>
      %26 = vector.shape_cast %25 : vector<1x1x1x8x225xf32> to vector<8x225xf32>
      %c0_28 = arith.constant 0 : index
      %c1_29 = arith.constant 1 : index
      %c1_30 = arith.constant 1 : index
      %27 = arith.index_cast %11 : i32 to index
      %c0_31 = arith.constant 0 : index
      %28 = vector.load %arg1[%c0_28, %c1_29, %c1_30, %27, %c0_31] : memref<1x4x4x128x225xf32, #tpu.memory_space<vmem>>, vector<1x1x1x8x225xf32>
      %29 = vector.shape_cast %28 : vector<1x1x1x8x225xf32> to vector<8x225xf32>
      %c0_32 = arith.constant 0 : index
      %c1_33 = arith.constant 1 : index
      %c2_34 = arith.constant 2 : index
      %30 = arith.index_cast %11 : i32 to index
      %c0_35 = arith.constant 0 : index
      %31 = vector.load %arg1[%c0_32, %c1_33, %c2_34, %30, %c0_35] : memref<1x4x4x128x225xf32, #tpu.memory_space<vmem>>, vector<1x1x1x8x225xf32>
      %32 = vector.shape_cast %31 : vector<1x1x1x8x225xf32> to vector<8x225xf32>
      %c0_36 = arith.constant 0 : index
      %c1_37 = arith.constant 1 : index
      %c3_38 = arith.constant 3 : index
      %33 = arith.index_cast %11 : i32 to index
      %c0_39 = arith.constant 0 : index
      %34 = vector.load %arg1[%c0_36, %c1_37, %c3_38, %33, %c0_39] : memref<1x4x4x128x225xf32, #tpu.memory_space<vmem>>, vector<1x1x1x8x225xf32>
      %35 = vector.shape_cast %34 : vector<1x1x1x8x225xf32> to vector<8x225xf32>
      %c0_40 = arith.constant 0 : index
      %c2_41 = arith.constant 2 : index
      %c0_42 = arith.constant 0 : index
      %36 = arith.index_cast %11 : i32 to index
      %c0_43 = arith.constant 0 : index
      %37 = vector.load %arg1[%c0_40, %c2_41, %c0_42, %36, %c0_43] : memref<1x4x4x128x225xf32, #tpu.memory_space<vmem>>, vector<1x1x1x8x225xf32>
      %38 = vector.shape_cast %37 : vector<1x1x1x8x225xf32> to vector<8x225xf32>
      %c0_44 = arith.constant 0 : index
      %c2_45 = arith.constant 2 : index
      %c1_46 = arith.constant 1 : index
      %39 = arith.index_cast %11 : i32 to index
      %c0_47 = arith.constant 0 : index
      %40 = vector.load %arg1[%c0_44, %c2_45, %c1_46, %39, %c0_47] : memref<1x4x4x128x225xf32, #tpu.memory_space<vmem>>, vector<1x1x1x8x225xf32>
      %41 = vector.shape_cast %40 : vector<1x1x1x8x225xf32> to vector<8x225xf32>
      %c0_48 = arith.constant 0 : index
      %c2_49 = arith.constant 2 : index
      %c2_50 = arith.constant 2 : index
      %42 = arith.index_cast %11 : i32 to index
      %c0_51 = arith.constant 0 : index
      %43 = vector.load %arg1[%c0_48, %c2_49, %c2_50, %42, %c0_51] : memref<1x4x4x128x225xf32, #tpu.memory_space<vmem>>, vector<1x1x1x8x225xf32>
      %44 = vector.shape_cast %43 : vector<1x1x1x8x225xf32> to vector<8x225xf32>
      %c0_52 = arith.constant 0 : index
      %c2_53 = arith.constant 2 : index
      %c3_54 = arith.constant 3 : index
      %45 = arith.index_cast %11 : i32 to index
      %c0_55 = arith.constant 0 : index
      %46 = vector.load %arg1[%c0_52, %c2_53, %c3_54, %45, %c0_55] : memref<1x4x4x128x225xf32, #tpu.memory_space<vmem>>, vector<1x1x1x8x225xf32>
      %47 = vector.shape_cast %46 : vector<1x1x1x8x225xf32> to vector<8x225xf32>
      %c0_56 = arith.constant 0 : index
      %c3_57 = arith.constant 3 : index
      %c0_58 = arith.constant 0 : index
      %48 = arith.index_cast %11 : i32 to index
      %c0_59 = arith.constant 0 : index
      %49 = vector.load %arg1[%c0_56, %c3_57, %c0_58, %48, %c0_59] : memref<1x4x4x128x225xf32, #tpu.memory_space<vmem>>, vector<1x1x1x8x225xf32>
      %50 = vector.shape_cast %49 : vector<1x1x1x8x225xf32> to vector<8x225xf32>
      %c0_60 = arith.constant 0 : index
      %c3_61 = arith.constant 3 : index
      %c1_62 = arith.constant 1 : index
      %51 = arith.index_cast %11 : i32 to index
      %c0_63 = arith.constant 0 : index
      %52 = vector.load %arg1[%c0_60, %c3_61, %c1_62, %51, %c0_63] : memref<1x4x4x128x225xf32, #tpu.memory_space<vmem>>, vector<1x1x1x8x225xf32>
      %53 = vector.shape_cast %52 : vector<1x1x1x8x225xf32> to vector<8x225xf32>
      %c0_64 = arith.constant 0 : index
      %c3_65 = arith.constant 3 : index
      %c2_66 = arith.constant 2 : index
      %54 = arith.index_cast %11 : i32 to index
      %c0_67 = arith.constant 0 : index
      %55 = vector.load %arg1[%c0_64, %c3_65, %c2_66, %54, %c0_67] : memref<1x4x4x128x225xf32, #tpu.memory_space<vmem>>, vector<1x1x1x8x225xf32>
      %56 = vector.shape_cast %55 : vector<1x1x1x8x225xf32> to vector<8x225xf32>
      %c0_68 = arith.constant 0 : index
      %c3_69 = arith.constant 3 : index
      %c3_70 = arith.constant 3 : index
      %57 = arith.index_cast %11 : i32 to index
      %c0_71 = arith.constant 0 : index
      %58 = vector.load %arg1[%c0_68, %c3_69, %c3_70, %57, %c0_71] : memref<1x4x4x128x225xf32, #tpu.memory_space<vmem>>, vector<1x1x1x8x225xf32>
      %59 = vector.shape_cast %58 : vector<1x1x1x8x225xf32> to vector<8x225xf32>
      %c0_72 = arith.constant 0 : index
      %c0_73 = arith.constant 0 : index
      %60 = memref.load %arg2[%c0_72, %c0_73] : memref<6x9xf32, #tpu.memory_space<smem>>
      %61 = vector.broadcast %60 : f32 to vector<8x225xf32>
      %62 = arith.mulf %61, %14 : vector<8x225xf32>
      %c0_74 = arith.constant 0 : index
      %c1_75 = arith.constant 1 : index
      %63 = memref.load %arg2[%c0_74, %c1_75] : memref<6x9xf32, #tpu.memory_space<smem>>
      %64 = vector.broadcast %63 : f32 to vector<8x225xf32>
      %65 = arith.mulf %64, %17 : vector<8x225xf32>
      %66 = arith.addf %62, %65 : vector<8x225xf32>
      %c0_76 = arith.constant 0 : index
      %c2_77 = arith.constant 2 : index
      %67 = memref.load %arg2[%c0_76, %c2_77] : memref<6x9xf32, #tpu.memory_space<smem>>
      %68 = vector.broadcast %67 : f32 to vector<8x225xf32>
      %69 = arith.mulf %68, %20 : vector<8x225xf32>
      %70 = arith.addf %66, %69 : vector<8x225xf32>
      %c0_78 = arith.constant 0 : index
      %c3_79 = arith.constant 3 : index
      %71 = memref.load %arg2[%c0_78, %c3_79] : memref<6x9xf32, #tpu.memory_space<smem>>
      %72 = vector.broadcast %71 : f32 to vector<8x225xf32>
      %73 = arith.mulf %72, %26 : vector<8x225xf32>
      %74 = arith.addf %70, %73 : vector<8x225xf32>
      %c0_80 = arith.constant 0 : index
      %c4 = arith.constant 4 : index
      %75 = memref.load %arg2[%c0_80, %c4] : memref<6x9xf32, #tpu.memory_space<smem>>
      %76 = vector.broadcast %75 : f32 to vector<8x225xf32>
      %77 = arith.mulf %76, %29 : vector<8x225xf32>
      %78 = arith.addf %74, %77 : vector<8x225xf32>
      %c0_81 = arith.constant 0 : index
      %c5 = arith.constant 5 : index
      %79 = memref.load %arg2[%c0_81, %c5] : memref<6x9xf32, #tpu.memory_space<smem>>
      %80 = vector.broadcast %79 : f32 to vector<8x225xf32>
      %81 = arith.mulf %80, %32 : vector<8x225xf32>
      %82 = arith.addf %78, %81 : vector<8x225xf32>
      %c0_82 = arith.constant 0 : index
      %c6 = arith.constant 6 : index
      %83 = memref.load %arg2[%c0_82, %c6] : memref<6x9xf32, #tpu.memory_space<smem>>
      %84 = vector.broadcast %83 : f32 to vector<8x225xf32>
      %85 = arith.mulf %84, %38 : vector<8x225xf32>
      %86 = arith.addf %82, %85 : vector<8x225xf32>
      %c0_83 = arith.constant 0 : index
      %c7 = arith.constant 7 : index
      %87 = memref.load %arg2[%c0_83, %c7] : memref<6x9xf32, #tpu.memory_space<smem>>
      %88 = vector.broadcast %87 : f32 to vector<8x225xf32>
      %89 = arith.mulf %88, %41 : vector<8x225xf32>
      %90 = arith.addf %86, %89 : vector<8x225xf32>
      %c0_84 = arith.constant 0 : index
      %c8 = arith.constant 8 : index
      %91 = memref.load %arg2[%c0_84, %c8] : memref<6x9xf32, #tpu.memory_space<smem>>
      %92 = vector.broadcast %91 : f32 to vector<8x225xf32>
      %93 = arith.mulf %92, %44 : vector<8x225xf32>
      %94 = arith.addf %90, %93 : vector<8x225xf32>
      %c0_85 = arith.constant 0 : index
      %c0_86 = arith.constant 0 : index
      %95 = memref.load %arg2[%c0_85, %c0_86] : memref<6x9xf32, #tpu.memory_space<smem>>
      %96 = vector.broadcast %95 : f32 to vector<8x225xf32>
      %97 = arith.mulf %96, %17 : vector<8x225xf32>
      %c0_87 = arith.constant 0 : index
      %c1_88 = arith.constant 1 : index
      %98 = memref.load %arg2[%c0_87, %c1_88] : memref<6x9xf32, #tpu.memory_space<smem>>
      %99 = vector.broadcast %98 : f32 to vector<8x225xf32>
      %100 = arith.mulf %99, %20 : vector<8x225xf32>
      %101 = arith.addf %97, %100 : vector<8x225xf32>
      %c0_89 = arith.constant 0 : index
      %c2_90 = arith.constant 2 : index
      %102 = memref.load %arg2[%c0_89, %c2_90] : memref<6x9xf32, #tpu.memory_space<smem>>
      %103 = vector.broadcast %102 : f32 to vector<8x225xf32>
      %104 = arith.mulf %103, %23 : vector<8x225xf32>
      %105 = arith.addf %101, %104 : vector<8x225xf32>
      %c0_91 = arith.constant 0 : index
      %c3_92 = arith.constant 3 : index
      %106 = memref.load %arg2[%c0_91, %c3_92] : memref<6x9xf32, #tpu.memory_space<smem>>
      %107 = vector.broadcast %106 : f32 to vector<8x225xf32>
      %108 = arith.mulf %107, %29 : vector<8x225xf32>
      %109 = arith.addf %105, %108 : vector<8x225xf32>
      %c0_93 = arith.constant 0 : index
      %c4_94 = arith.constant 4 : index
      %110 = memref.load %arg2[%c0_93, %c4_94] : memref<6x9xf32, #tpu.memory_space<smem>>
      %111 = vector.broadcast %110 : f32 to vector<8x225xf32>
      %112 = arith.mulf %111, %32 : vector<8x225xf32>
      %113 = arith.addf %109, %112 : vector<8x225xf32>
      %c0_95 = arith.constant 0 : index
      %c5_96 = arith.constant 5 : index
      %114 = memref.load %arg2[%c0_95, %c5_96] : memref<6x9xf32, #tpu.memory_space<smem>>
      %115 = vector.broadcast %114 : f32 to vector<8x225xf32>
      %116 = arith.mulf %115, %35 : vector<8x225xf32>
      %117 = arith.addf %113, %116 : vector<8x225xf32>
      %c0_97 = arith.constant 0 : index
      %c6_98 = arith.constant 6 : index
      %118 = memref.load %arg2[%c0_97, %c6_98] : memref<6x9xf32, #tpu.memory_space<smem>>
      %119 = vector.broadcast %118 : f32 to vector<8x225xf32>
      %120 = arith.mulf %119, %41 : vector<8x225xf32>
      %121 = arith.addf %117, %120 : vector<8x225xf32>
      %c0_99 = arith.constant 0 : index
      %c7_100 = arith.constant 7 : index
      %122 = memref.load %arg2[%c0_99, %c7_100] : memref<6x9xf32, #tpu.memory_space<smem>>
      %123 = vector.broadcast %122 : f32 to vector<8x225xf32>
      %124 = arith.mulf %123, %44 : vector<8x225xf32>
      %125 = arith.addf %121, %124 : vector<8x225xf32>
      %c0_101 = arith.constant 0 : index
      %c8_102 = arith.constant 8 : index
      %126 = memref.load %arg2[%c0_101, %c8_102] : memref<6x9xf32, #tpu.memory_space<smem>>
      %127 = vector.broadcast %126 : f32 to vector<8x225xf32>
      %128 = arith.mulf %127, %47 : vector<8x225xf32>
      %129 = arith.addf %125, %128 : vector<8x225xf32>
      %130 = arith.maximumf %94, %129 : vector<8x225xf32>
      %c0_103 = arith.constant 0 : index
      %c0_104 = arith.constant 0 : index
      %131 = memref.load %arg2[%c0_103, %c0_104] : memref<6x9xf32, #tpu.memory_space<smem>>
      %132 = vector.broadcast %131 : f32 to vector<8x225xf32>
      %133 = arith.mulf %132, %26 : vector<8x225xf32>
      %c0_105 = arith.constant 0 : index
      %c1_106 = arith.constant 1 : index
      %134 = memref.load %arg2[%c0_105, %c1_106] : memref<6x9xf32, #tpu.memory_space<smem>>
      %135 = vector.broadcast %134 : f32 to vector<8x225xf32>
      %136 = arith.mulf %135, %29 : vector<8x225xf32>
      %137 = arith.addf %133, %136 : vector<8x225xf32>
      %c0_107 = arith.constant 0 : index
      %c2_108 = arith.constant 2 : index
      %138 = memref.load %arg2[%c0_107, %c2_108] : memref<6x9xf32, #tpu.memory_space<smem>>
      %139 = vector.broadcast %138 : f32 to vector<8x225xf32>
      %140 = arith.mulf %139, %32 : vector<8x225xf32>
      %141 = arith.addf %137, %140 : vector<8x225xf32>
      %c0_109 = arith.constant 0 : index
      %c3_110 = arith.constant 3 : index
      %142 = memref.load %arg2[%c0_109, %c3_110] : memref<6x9xf32, #tpu.memory_space<smem>>
      %143 = vector.broadcast %142 : f32 to vector<8x225xf32>
      %144 = arith.mulf %143, %38 : vector<8x225xf32>
      %145 = arith.addf %141, %144 : vector<8x225xf32>
      %c0_111 = arith.constant 0 : index
      %c4_112 = arith.constant 4 : index
      %146 = memref.load %arg2[%c0_111, %c4_112] : memref<6x9xf32, #tpu.memory_space<smem>>
      %147 = vector.broadcast %146 : f32 to vector<8x225xf32>
      %148 = arith.mulf %147, %41 : vector<8x225xf32>
      %149 = arith.addf %145, %148 : vector<8x225xf32>
      %c0_113 = arith.constant 0 : index
      %c5_114 = arith.constant 5 : index
      %150 = memref.load %arg2[%c0_113, %c5_114] : memref<6x9xf32, #tpu.memory_space<smem>>
      %151 = vector.broadcast %150 : f32 to vector<8x225xf32>
      %152 = arith.mulf %151, %44 : vector<8x225xf32>
      %153 = arith.addf %149, %152 : vector<8x225xf32>
      %c0_115 = arith.constant 0 : index
      %c6_116 = arith.constant 6 : index
      %154 = memref.load %arg2[%c0_115, %c6_116] : memref<6x9xf32, #tpu.memory_space<smem>>
      %155 = vector.broadcast %154 : f32 to vector<8x225xf32>
      %156 = arith.mulf %155, %50 : vector<8x225xf32>
      %157 = arith.addf %153, %156 : vector<8x225xf32>
      %c0_117 = arith.constant 0 : index
      %c7_118 = arith.constant 7 : index
      %158 = memref.load %arg2[%c0_117, %c7_118] : memref<6x9xf32, #tpu.memory_space<smem>>
      %159 = vector.broadcast %158 : f32 to vector<8x225xf32>
      %160 = arith.mulf %159, %53 : vector<8x225xf32>
      %161 = arith.addf %157, %160 : vector<8x225xf32>
      %c0_119 = arith.constant 0 : index
      %c8_120 = arith.constant 8 : index
      %162 = memref.load %arg2[%c0_119, %c8_120] : memref<6x9xf32, #tpu.memory_space<smem>>
      %163 = vector.broadcast %162 : f32 to vector<8x225xf32>
      %164 = arith.mulf %163, %56 : vector<8x225xf32>
      %165 = arith.addf %161, %164 : vector<8x225xf32>
      %166 = arith.maximumf %130, %165 : vector<8x225xf32>
      %c0_121 = arith.constant 0 : index
      %c0_122 = arith.constant 0 : index
      %167 = memref.load %arg2[%c0_121, %c0_122] : memref<6x9xf32, #tpu.memory_space<smem>>
      %168 = vector.broadcast %167 : f32 to vector<8x225xf32>
      %169 = arith.mulf %168, %29 : vector<8x225xf32>
      %c0_123 = arith.constant 0 : index
      %c1_124 = arith.constant 1 : index
      %170 = memref.load %arg2[%c0_123, %c1_124] : memref<6x9xf32, #tpu.memory_space<smem>>
      %171 = vector.broadcast %170 : f32 to vector<8x225xf32>
      %172 = arith.mulf %171, %32 : vector<8x225xf32>
      %173 = arith.addf %169, %172 : vector<8x225xf32>
      %c0_125 = arith.constant 0 : index
      %c2_126 = arith.constant 2 : index
      %174 = memref.load %arg2[%c0_125, %c2_126] : memref<6x9xf32, #tpu.memory_space<smem>>
      %175 = vector.broadcast %174 : f32 to vector<8x225xf32>
      %176 = arith.mulf %175, %35 : vector<8x225xf32>
      %177 = arith.addf %173, %176 : vector<8x225xf32>
      %c0_127 = arith.constant 0 : index
      %c3_128 = arith.constant 3 : index
      %178 = memref.load %arg2[%c0_127, %c3_128] : memref<6x9xf32, #tpu.memory_space<smem>>
      %179 = vector.broadcast %178 : f32 to vector<8x225xf32>
      %180 = arith.mulf %179, %41 : vector<8x225xf32>
      %181 = arith.addf %177, %180 : vector<8x225xf32>
      %c0_129 = arith.constant 0 : index
      %c4_130 = arith.constant 4 : index
      %182 = memref.load %arg2[%c0_129, %c4_130] : memref<6x9xf32, #tpu.memory_space<smem>>
      %183 = vector.broadcast %182 : f32 to vector<8x225xf32>
      %184 = arith.mulf %183, %44 : vector<8x225xf32>
      %185 = arith.addf %181, %184 : vector<8x225xf32>
      %c0_131 = arith.constant 0 : index
      %c5_132 = arith.constant 5 : index
      %186 = memref.load %arg2[%c0_131, %c5_132] : memref<6x9xf32, #tpu.memory_space<smem>>
      %187 = vector.broadcast %186 : f32 to vector<8x225xf32>
      %188 = arith.mulf %187, %47 : vector<8x225xf32>
      %189 = arith.addf %185, %188 : vector<8x225xf32>
      %c0_133 = arith.constant 0 : index
      %c6_134 = arith.constant 6 : index
      %190 = memref.load %arg2[%c0_133, %c6_134] : memref<6x9xf32, #tpu.memory_space<smem>>
      %191 = vector.broadcast %190 : f32 to vector<8x225xf32>
      %192 = arith.mulf %191, %53 : vector<8x225xf32>
      %193 = arith.addf %189, %192 : vector<8x225xf32>
      %c0_135 = arith.constant 0 : index
      %c7_136 = arith.constant 7 : index
      %194 = memref.load %arg2[%c0_135, %c7_136] : memref<6x9xf32, #tpu.memory_space<smem>>
      %195 = vector.broadcast %194 : f32 to vector<8x225xf32>
      %196 = arith.mulf %195, %56 : vector<8x225xf32>
      %197 = arith.addf %193, %196 : vector<8x225xf32>
      %c0_137 = arith.constant 0 : index
      %c8_138 = arith.constant 8 : index
      %198 = memref.load %arg2[%c0_137, %c8_138] : memref<6x9xf32, #tpu.memory_space<smem>>
      %199 = vector.broadcast %198 : f32 to vector<8x225xf32>
      %200 = arith.mulf %199, %59 : vector<8x225xf32>
      %201 = arith.addf %197, %200 : vector<8x225xf32>
      %202 = arith.maximumf %166, %201 : vector<8x225xf32>
      %c0_139 = arith.constant 0 : index
      %203 = memref.load %arg3[%c0_139] : memref<6xf32, #tpu.memory_space<smem>>
      %204 = vector.broadcast %203 : f32 to vector<8x225xf32>
      %205 = arith.addf %202, %204 : vector<8x225xf32>
      %cst_140 = arith.constant 0.000000e+00 : f32
      %206 = vector.broadcast %cst_140 : f32 to vector<8x225xf32>
      %207 = arith.maximumf %205, %206 : vector<8x225xf32>
      %208 = arith.index_cast %11 : i32 to index
      %c0_141 = arith.constant 0 : index
      %209 = vector.load %arg7[%208, %c0_141] : memref<128x1536xf32, #tpu.memory_space<vmem>>, vector<8x225xf32>
      tpu.vector_store %arg7[%208, %c0_141], %207 {strides = array<i32>} : memref<128x1536xf32, #tpu.memory_space<vmem>>, vector<8x225xf32>,
      %c1_142 = arith.constant 1 : index
      %c0_143 = arith.constant 0 : index
      %210 = memref.load %arg2[%c1_142, %c0_143] : memref<6x9xf32, #tpu.memory_space<smem>>
      %211 = vector.broadcast %210 : f32 to vector<8x225xf32>
      %212 = arith.mulf %211, %14 : vector<8x225xf32>
      %c1_144 = arith.constant 1 : index
      %c1_145 = arith.constant 1 : index
      %213 = memref.load %arg2[%c1_144, %c1_145] : memref<6x9xf32, #tpu.memory_space<smem>>
      %214 = vector.broadcast %213 : f32 to vector<8x225xf32>
      %215 = arith.mulf %214, %17 : vector<8x225xf32>
      %216 = arith.addf %212, %215 : vector<8x225xf32>
      %c1_146 = arith.constant 1 : index
      %c2_147 = arith.constant 2 : index
      %217 = memref.load %arg2[%c1_146, %c2_147] : memref<6x9xf32, #tpu.memory_space<smem>>
      %218 = vector.broadcast %217 : f32 to vector<8x225xf32>
      %219 = arith.mulf %218, %20 : vector<8x225xf32>
      %220 = arith.addf %216, %219 : vector<8x225xf32>
      %c1_148 = arith.constant 1 : index
      %c3_149 = arith.constant 3 : index
      %221 = memref.load %arg2[%c1_148, %c3_149] : memref<6x9xf32, #tpu.memory_space<smem>>
      %222 = vector.broadcast %221 : f32 to vector<8x225xf32>
      %223 = arith.mulf %222, %26 : vector<8x225xf32>
      %224 = arith.addf %220, %223 : vector<8x225xf32>
      %c1_150 = arith.constant 1 : index
      %c4_151 = arith.constant 4 : index
      %225 = memref.load %arg2[%c1_150, %c4_151] : memref<6x9xf32, #tpu.memory_space<smem>>
      %226 = vector.broadcast %225 : f32 to vector<8x225xf32>
      %227 = arith.mulf %226, %29 : vector<8x225xf32>
      %228 = arith.addf %224, %227 : vector<8x225xf32>
      %c1_152 = arith.constant 1 : index
      %c5_153 = arith.constant 5 : index
      %229 = memref.load %arg2[%c1_152, %c5_153] : memref<6x9xf32, #tpu.memory_space<smem>>
      %230 = vector.broadcast %229 : f32 to vector<8x225xf32>
      %231 = arith.mulf %230, %32 : vector<8x225xf32>
      %232 = arith.addf %228, %231 : vector<8x225xf32>
      %c1_154 = arith.constant 1 : index
      %c6_155 = arith.constant 6 : index
      %233 = memref.load %arg2[%c1_154, %c6_155] : memref<6x9xf32, #tpu.memory_space<smem>>
      %234 = vector.broadcast %233 : f32 to vector<8x225xf32>
      %235 = arith.mulf %234, %38 : vector<8x225xf32>
      %236 = arith.addf %232, %235 : vector<8x225xf32>
      %c1_156 = arith.constant 1 : index
      %c7_157 = arith.constant 7 : index
      %237 = memref.load %arg2[%c1_156, %c7_157] : memref<6x9xf32, #tpu.memory_space<smem>>
      %238 = vector.broadcast %237 : f32 to vector<8x225xf32>
      %239 = arith.mulf %238, %41 : vector<8x225xf32>
      %240 = arith.addf %236, %239 : vector<8x225xf32>
      %c1_158 = arith.constant 1 : index
      %c8_159 = arith.constant 8 : index
      %241 = memref.load %arg2[%c1_158, %c8_159] : memref<6x9xf32, #tpu.memory_space<smem>>
      %242 = vector.broadcast %241 : f32 to vector<8x225xf32>
      %243 = arith.mulf %242, %44 : vector<8x225xf32>
      %244 = arith.addf %240, %243 : vector<8x225xf32>
      %c1_160 = arith.constant 1 : index
      %c0_161 = arith.constant 0 : index
      %245 = memref.load %arg2[%c1_160, %c0_161] : memref<6x9xf32, #tpu.memory_space<smem>>
      %246 = vector.broadcast %245 : f32 to vector<8x225xf32>
      %247 = arith.mulf %246, %17 : vector<8x225xf32>
      %c1_162 = arith.constant 1 : index
      %c1_163 = arith.constant 1 : index
      %248 = memref.load %arg2[%c1_162, %c1_163] : memref<6x9xf32, #tpu.memory_space<smem>>
      %249 = vector.broadcast %248 : f32 to vector<8x225xf32>
      %250 = arith.mulf %249, %20 : vector<8x225xf32>
      %251 = arith.addf %247, %250 : vector<8x225xf32>
      %c1_164 = arith.constant 1 : index
      %c2_165 = arith.constant 2 : index
      %252 = memref.load %arg2[%c1_164, %c2_165] : memref<6x9xf32, #tpu.memory_space<smem>>
      %253 = vector.broadcast %252 : f32 to vector<8x225xf32>
      %254 = arith.mulf %253, %23 : vector<8x225xf32>
      %255 = arith.addf %251, %254 : vector<8x225xf32>
      %c1_166 = arith.constant 1 : index
      %c3_167 = arith.constant 3 : index
      %256 = memref.load %arg2[%c1_166, %c3_167] : memref<6x9xf32, #tpu.memory_space<smem>>
      %257 = vector.broadcast %256 : f32 to vector<8x225xf32>
      %258 = arith.mulf %257, %29 : vector<8x225xf32>
      %259 = arith.addf %255, %258 : vector<8x225xf32>
      %c1_168 = arith.constant 1 : index
      %c4_169 = arith.constant 4 : index
      %260 = memref.load %arg2[%c1_168, %c4_169] : memref<6x9xf32, #tpu.memory_space<smem>>
      %261 = vector.broadcast %260 : f32 to vector<8x225xf32>
      %262 = arith.mulf %261, %32 : vector<8x225xf32>
      %263 = arith.addf %259, %262 : vector<8x225xf32>
      %c1_170 = arith.constant 1 : index
      %c5_171 = arith.constant 5 : index
      %264 = memref.load %arg2[%c1_170, %c5_171] : memref<6x9xf32, #tpu.memory_space<smem>>
      %265 = vector.broadcast %264 : f32 to vector<8x225xf32>
      %266 = arith.mulf %265, %35 : vector<8x225xf32>
      %267 = arith.addf %263, %266 : vector<8x225xf32>
      %c1_172 = arith.constant 1 : index
      %c6_173 = arith.constant 6 : index
      %268 = memref.load %arg2[%c1_172, %c6_173] : memref<6x9xf32, #tpu.memory_space<smem>>
      %269 = vector.broadcast %268 : f32 to vector<8x225xf32>
      %270 = arith.mulf %269, %41 : vector<8x225xf32>
      %271 = arith.addf %267, %270 : vector<8x225xf32>
      %c1_174 = arith.constant 1 : index
      %c7_175 = arith.constant 7 : index
      %272 = memref.load %arg2[%c1_174, %c7_175] : memref<6x9xf32, #tpu.memory_space<smem>>
      %273 = vector.broadcast %272 : f32 to vector<8x225xf32>
      %274 = arith.mulf %273, %44 : vector<8x225xf32>
      %275 = arith.addf %271, %274 : vector<8x225xf32>
      %c1_176 = arith.constant 1 : index
      %c8_177 = arith.constant 8 : index
      %276 = memref.load %arg2[%c1_176, %c8_177] : memref<6x9xf32, #tpu.memory_space<smem>>
      %277 = vector.broadcast %276 : f32 to vector<8x225xf32>
      %278 = arith.mulf %277, %47 : vector<8x225xf32>
      %279 = arith.addf %275, %278 : vector<8x225xf32>
      %280 = arith.maximumf %244, %279 : vector<8x225xf32>
      %c1_178 = arith.constant 1 : index
      %c0_179 = arith.constant 0 : index
      %281 = memref.load %arg2[%c1_178, %c0_179] : memref<6x9xf32, #tpu.memory_space<smem>>
      %282 = vector.broadcast %281 : f32 to vector<8x225xf32>
      %283 = arith.mulf %282, %26 : vector<8x225xf32>
      %c1_180 = arith.constant 1 : index
      %c1_181 = arith.constant 1 : index
      %284 = memref.load %arg2[%c1_180, %c1_181] : memref<6x9xf32, #tpu.memory_space<smem>>
      %285 = vector.broadcast %284 : f32 to vector<8x225xf32>
      %286 = arith.mulf %285, %29 : vector<8x225xf32>
      %287 = arith.addf %283, %286 : vector<8x225xf32>
      %c1_182 = arith.constant 1 : index
      %c2_183 = arith.constant 2 : index
      %288 = memref.load %arg2[%c1_182, %c2_183] : memref<6x9xf32, #tpu.memory_space<smem>>
      %289 = vector.broadcast %288 : f32 to vector<8x225xf32>
      %290 = arith.mulf %289, %32 : vector<8x225xf32>
      %291 = arith.addf %287, %290 : vector<8x225xf32>
      %c1_184 = arith.constant 1 : index
      %c3_185 = arith.constant 3 : index
      %292 = memref.load %arg2[%c1_184, %c3_185] : memref<6x9xf32, #tpu.memory_space<smem>>
      %293 = vector.broadcast %292 : f32 to vector<8x225xf32>
      %294 = arith.mulf %293, %38 : vector<8x225xf32>
      %295 = arith.addf %291, %294 : vector<8x225xf32>
      %c1_186 = arith.constant 1 : index
      %c4_187 = arith.constant 4 : index
      %296 = memref.load %arg2[%c1_186, %c4_187] : memref<6x9xf32, #tpu.memory_space<smem>>
      %297 = vector.broadcast %296 : f32 to vector<8x225xf32>
      %298 = arith.mulf %297, %41 : vector<8x225xf32>
      %299 = arith.addf %295, %298 : vector<8x225xf32>
      %c1_188 = arith.constant 1 : index
      %c5_189 = arith.constant 5 : index
      %300 = memref.load %arg2[%c1_188, %c5_189] : memref<6x9xf32, #tpu.memory_space<smem>>
      %301 = vector.broadcast %300 : f32 to vector<8x225xf32>
      %302 = arith.mulf %301, %44 : vector<8x225xf32>
      %303 = arith.addf %299, %302 : vector<8x225xf32>
      %c1_190 = arith.constant 1 : index
      %c6_191 = arith.constant 6 : index
      %304 = memref.load %arg2[%c1_190, %c6_191] : memref<6x9xf32, #tpu.memory_space<smem>>
      %305 = vector.broadcast %304 : f32 to vector<8x225xf32>
      %306 = arith.mulf %305, %50 : vector<8x225xf32>
      %307 = arith.addf %303, %306 : vector<8x225xf32>
      %c1_192 = arith.constant 1 : index
      %c7_193 = arith.constant 7 : index
      %308 = memref.load %arg2[%c1_192, %c7_193] : memref<6x9xf32, #tpu.memory_space<smem>>
      %309 = vector.broadcast %308 : f32 to vector<8x225xf32>
      %310 = arith.mulf %309, %53 : vector<8x225xf32>
      %311 = arith.addf %307, %310 : vector<8x225xf32>
      %c1_194 = arith.constant 1 : index
      %c8_195 = arith.constant 8 : index
      %312 = memref.load %arg2[%c1_194, %c8_195] : memref<6x9xf32, #tpu.memory_space<smem>>
      %313 = vector.broadcast %312 : f32 to vector<8x225xf32>
      %314 = arith.mulf %313, %56 : vector<8x225xf32>
      %315 = arith.addf %311, %314 : vector<8x225xf32>
      %316 = arith.maximumf %280, %315 : vector<8x225xf32>
      %c1_196 = arith.constant 1 : index
      %c0_197 = arith.constant 0 : index
      %317 = memref.load %arg2[%c1_196, %c0_197] : memref<6x9xf32, #tpu.memory_space<smem>>
      %318 = vector.broadcast %317 : f32 to vector<8x225xf32>
      %319 = arith.mulf %318, %29 : vector<8x225xf32>
      %c1_198 = arith.constant 1 : index
      %c1_199 = arith.constant 1 : index
      %320 = memref.load %arg2[%c1_198, %c1_199] : memref<6x9xf32, #tpu.memory_space<smem>>
      %321 = vector.broadcast %320 : f32 to vector<8x225xf32>
      %322 = arith.mulf %321, %32 : vector<8x225xf32>
      %323 = arith.addf %319, %322 : vector<8x225xf32>
      %c1_200 = arith.constant 1 : index
      %c2_201 = arith.constant 2 : index
      %324 = memref.load %arg2[%c1_200, %c2_201] : memref<6x9xf32, #tpu.memory_space<smem>>
      %325 = vector.broadcast %324 : f32 to vector<8x225xf32>
      %326 = arith.mulf %325, %35 : vector<8x225xf32>
      %327 = arith.addf %323, %326 : vector<8x225xf32>
      %c1_202 = arith.constant 1 : index
      %c3_203 = arith.constant 3 : index
      %328 = memref.load %arg2[%c1_202, %c3_203] : memref<6x9xf32, #tpu.memory_space<smem>>
      %329 = vector.broadcast %328 : f32 to vector<8x225xf32>
      %330 = arith.mulf %329, %41 : vector<8x225xf32>
      %331 = arith.addf %327, %330 : vector<8x225xf32>
      %c1_204 = arith.constant 1 : index
      %c4_205 = arith.constant 4 : index
      %332 = memref.load %arg2[%c1_204, %c4_205] : memref<6x9xf32, #tpu.memory_space<smem>>
      %333 = vector.broadcast %332 : f32 to vector<8x225xf32>
      %334 = arith.mulf %333, %44 : vector<8x225xf32>
      %335 = arith.addf %331, %334 : vector<8x225xf32>
      %c1_206 = arith.constant 1 : index
      %c5_207 = arith.constant 5 : index
      %336 = memref.load %arg2[%c1_206, %c5_207] : memref<6x9xf32, #tpu.memory_space<smem>>
      %337 = vector.broadcast %336 : f32 to vector<8x225xf32>
      %338 = arith.mulf %337, %47 : vector<8x225xf32>
      %339 = arith.addf %335, %338 : vector<8x225xf32>
      %c1_208 = arith.constant 1 : index
      %c6_209 = arith.constant 6 : index
      %340 = memref.load %arg2[%c1_208, %c6_209] : memref<6x9xf32, #tpu.memory_space<smem>>
      %341 = vector.broadcast %340 : f32 to vector<8x225xf32>
      %342 = arith.mulf %341, %53 : vector<8x225xf32>
      %343 = arith.addf %339, %342 : vector<8x225xf32>
      %c1_210 = arith.constant 1 : index
      %c7_211 = arith.constant 7 : index
      %344 = memref.load %arg2[%c1_210, %c7_211] : memref<6x9xf32, #tpu.memory_space<smem>>
      %345 = vector.broadcast %344 : f32 to vector<8x225xf32>
      %346 = arith.mulf %345, %56 : vector<8x225xf32>
      %347 = arith.addf %343, %346 : vector<8x225xf32>
      %c1_212 = arith.constant 1 : index
      %c8_213 = arith.constant 8 : index
      %348 = memref.load %arg2[%c1_212, %c8_213] : memref<6x9xf32, #tpu.memory_space<smem>>
      %349 = vector.broadcast %348 : f32 to vector<8x225xf32>
      %350 = arith.mulf %349, %59 : vector<8x225xf32>
      %351 = arith.addf %347, %350 : vector<8x225xf32>
      %352 = arith.maximumf %316, %351 : vector<8x225xf32>
      %c1_214 = arith.constant 1 : index
      %353 = memref.load %arg3[%c1_214] : memref<6xf32, #tpu.memory_space<smem>>
      %354 = vector.broadcast %353 : f32 to vector<8x225xf32>
      %355 = arith.addf %352, %354 : vector<8x225xf32>
      %cst_215 = arith.constant 0.000000e+00 : f32
      %356 = vector.broadcast %cst_215 : f32 to vector<8x225xf32>
      %357 = arith.maximumf %355, %356 : vector<8x225xf32>
      %358 = arith.index_cast %11 : i32 to index
      %c256 = arith.constant 256 : index
      %359 = vector.load %arg7[%358, %c256] : memref<128x1536xf32, #tpu.memory_space<vmem>>, vector<8x225xf32>
      tpu.vector_store %arg7[%358, %c256], %357 {strides = array<i32>} : memref<128x1536xf32, #tpu.memory_space<vmem>>, vector<8x225xf32>,
      %c2_216 = arith.constant 2 : index
      %c0_217 = arith.constant 0 : index
      %360 = memref.load %arg2[%c2_216, %c0_217] : memref<6x9xf32, #tpu.memory_space<smem>>
      %361 = vector.broadcast %360 : f32 to vector<8x225xf32>
      %362 = arith.mulf %361, %14 : vector<8x225xf32>
      %c2_218 = arith.constant 2 : index
      %c1_219 = arith.constant 1 : index
      %363 = memref.load %arg2[%c2_218, %c1_219] : memref<6x9xf32, #tpu.memory_space<smem>>
      %364 = vector.broadcast %363 : f32 to vector<8x225xf32>
      %365 = arith.mulf %364, %17 : vector<8x225xf32>
      %366 = arith.addf %362, %365 : vector<8x225xf32>
      %c2_220 = arith.constant 2 : index
      %c2_221 = arith.constant 2 : index
      %367 = memref.load %arg2[%c2_220, %c2_221] : memref<6x9xf32, #tpu.memory_space<smem>>
      %368 = vector.broadcast %367 : f32 to vector<8x225xf32>
      %369 = arith.mulf %368, %20 : vector<8x225xf32>
      %370 = arith.addf %366, %369 : vector<8x225xf32>
      %c2_222 = arith.constant 2 : index
      %c3_223 = arith.constant 3 : index
      %371 = memref.load %arg2[%c2_222, %c3_223] : memref<6x9xf32, #tpu.memory_space<smem>>
      %372 = vector.broadcast %371 : f32 to vector<8x225xf32>
      %373 = arith.mulf %372, %26 : vector<8x225xf32>
      %374 = arith.addf %370, %373 : vector<8x225xf32>
      %c2_224 = arith.constant 2 : index
      %c4_225 = arith.constant 4 : index
      %375 = memref.load %arg2[%c2_224, %c4_225] : memref<6x9xf32, #tpu.memory_space<smem>>
      %376 = vector.broadcast %375 : f32 to vector<8x225xf32>
      %377 = arith.mulf %376, %29 : vector<8x225xf32>
      %378 = arith.addf %374, %377 : vector<8x225xf32>
      %c2_226 = arith.constant 2 : index
      %c5_227 = arith.constant 5 : index
      %379 = memref.load %arg2[%c2_226, %c5_227] : memref<6x9xf32, #tpu.memory_space<smem>>
      %380 = vector.broadcast %379 : f32 to vector<8x225xf32>
      %381 = arith.mulf %380, %32 : vector<8x225xf32>
      %382 = arith.addf %378, %381 : vector<8x225xf32>
      %c2_228 = arith.constant 2 : index
      %c6_229 = arith.constant 6 : index
      %383 = memref.load %arg2[%c2_228, %c6_229] : memref<6x9xf32, #tpu.memory_space<smem>>
      %384 = vector.broadcast %383 : f32 to vector<8x225xf32>
      %385 = arith.mulf %384, %38 : vector<8x225xf32>
      %386 = arith.addf %382, %385 : vector<8x225xf32>
      %c2_230 = arith.constant 2 : index
      %c7_231 = arith.constant 7 : index
      %387 = memref.load %arg2[%c2_230, %c7_231] : memref<6x9xf32, #tpu.memory_space<smem>>
      %388 = vector.broadcast %387 : f32 to vector<8x225xf32>
      %389 = arith.mulf %388, %41 : vector<8x225xf32>
      %390 = arith.addf %386, %389 : vector<8x225xf32>
      %c2_232 = arith.constant 2 : index
      %c8_233 = arith.constant 8 : index
      %391 = memref.load %arg2[%c2_232, %c8_233] : memref<6x9xf32, #tpu.memory_space<smem>>
      %392 = vector.broadcast %391 : f32 to vector<8x225xf32>
      %393 = arith.mulf %392, %44 : vector<8x225xf32>
      %394 = arith.addf %390, %393 : vector<8x225xf32>
      %c2_234 = arith.constant 2 : index
      %c0_235 = arith.constant 0 : index
      %395 = memref.load %arg2[%c2_234, %c0_235] : memref<6x9xf32, #tpu.memory_space<smem>>
      %396 = vector.broadcast %395 : f32 to vector<8x225xf32>
      %397 = arith.mulf %396, %17 : vector<8x225xf32>
      %c2_236 = arith.constant 2 : index
      %c1_237 = arith.constant 1 : index
      %398 = memref.load %arg2[%c2_236, %c1_237] : memref<6x9xf32, #tpu.memory_space<smem>>
      %399 = vector.broadcast %398 : f32 to vector<8x225xf32>
      %400 = arith.mulf %399, %20 : vector<8x225xf32>
      %401 = arith.addf %397, %400 : vector<8x225xf32>
      %c2_238 = arith.constant 2 : index
      %c2_239 = arith.constant 2 : index
      %402 = memref.load %arg2[%c2_238, %c2_239] : memref<6x9xf32, #tpu.memory_space<smem>>
      %403 = vector.broadcast %402 : f32 to vector<8x225xf32>
      %404 = arith.mulf %403, %23 : vector<8x225xf32>
      %405 = arith.addf %401, %404 : vector<8x225xf32>
      %c2_240 = arith.constant 2 : index
      %c3_241 = arith.constant 3 : index
      %406 = memref.load %arg2[%c2_240, %c3_241] : memref<6x9xf32, #tpu.memory_space<smem>>
      %407 = vector.broadcast %406 : f32 to vector<8x225xf32>
      %408 = arith.mulf %407, %29 : vector<8x225xf32>
      %409 = arith.addf %405, %408 : vector<8x225xf32>
      %c2_242 = arith.constant 2 : index
      %c4_243 = arith.constant 4 : index
      %410 = memref.load %arg2[%c2_242, %c4_243] : memref<6x9xf32, #tpu.memory_space<smem>>
      %411 = vector.broadcast %410 : f32 to vector<8x225xf32>
      %412 = arith.mulf %411, %32 : vector<8x225xf32>
      %413 = arith.addf %409, %412 : vector<8x225xf32>
      %c2_244 = arith.constant 2 : index
      %c5_245 = arith.constant 5 : index
      %414 = memref.load %arg2[%c2_244, %c5_245] : memref<6x9xf32, #tpu.memory_space<smem>>
      %415 = vector.broadcast %414 : f32 to vector<8x225xf32>
      %416 = arith.mulf %415, %35 : vector<8x225xf32>
      %417 = arith.addf %413, %416 : vector<8x225xf32>
      %c2_246 = arith.constant 2 : index
      %c6_247 = arith.constant 6 : index
      %418 = memref.load %arg2[%c2_246, %c6_247] : memref<6x9xf32, #tpu.memory_space<smem>>
      %419 = vector.broadcast %418 : f32 to vector<8x225xf32>
      %420 = arith.mulf %419, %41 : vector<8x225xf32>
      %421 = arith.addf %417, %420 : vector<8x225xf32>
      %c2_248 = arith.constant 2 : index
      %c7_249 = arith.constant 7 : index
      %422 = memref.load %arg2[%c2_248, %c7_249] : memref<6x9xf32, #tpu.memory_space<smem>>
      %423 = vector.broadcast %422 : f32 to vector<8x225xf32>
      %424 = arith.mulf %423, %44 : vector<8x225xf32>
      %425 = arith.addf %421, %424 : vector<8x225xf32>
      %c2_250 = arith.constant 2 : index
      %c8_251 = arith.constant 8 : index
      %426 = memref.load %arg2[%c2_250, %c8_251] : memref<6x9xf32, #tpu.memory_space<smem>>
      %427 = vector.broadcast %426 : f32 to vector<8x225xf32>
      %428 = arith.mulf %427, %47 : vector<8x225xf32>
      %429 = arith.addf %425, %428 : vector<8x225xf32>
      %430 = arith.maximumf %394, %429 : vector<8x225xf32>
      %c2_252 = arith.constant 2 : index
      %c0_253 = arith.constant 0 : index
      %431 = memref.load %arg2[%c2_252, %c0_253] : memref<6x9xf32, #tpu.memory_space<smem>>
      %432 = vector.broadcast %431 : f32 to vector<8x225xf32>
      %433 = arith.mulf %432, %26 : vector<8x225xf32>
      %c2_254 = arith.constant 2 : index
      %c1_255 = arith.constant 1 : index
      %434 = memref.load %arg2[%c2_254, %c1_255] : memref<6x9xf32, #tpu.memory_space<smem>>
      %435 = vector.broadcast %434 : f32 to vector<8x225xf32>
      %436 = arith.mulf %435, %29 : vector<8x225xf32>
      %437 = arith.addf %433, %436 : vector<8x225xf32>
      %c2_256 = arith.constant 2 : index
      %c2_257 = arith.constant 2 : index
      %438 = memref.load %arg2[%c2_256, %c2_257] : memref<6x9xf32, #tpu.memory_space<smem>>
      %439 = vector.broadcast %438 : f32 to vector<8x225xf32>
      %440 = arith.mulf %439, %32 : vector<8x225xf32>
      %441 = arith.addf %437, %440 : vector<8x225xf32>
      %c2_258 = arith.constant 2 : index
      %c3_259 = arith.constant 3 : index
      %442 = memref.load %arg2[%c2_258, %c3_259] : memref<6x9xf32, #tpu.memory_space<smem>>
      %443 = vector.broadcast %442 : f32 to vector<8x225xf32>
      %444 = arith.mulf %443, %38 : vector<8x225xf32>
      %445 = arith.addf %441, %444 : vector<8x225xf32>
      %c2_260 = arith.constant 2 : index
      %c4_261 = arith.constant 4 : index
      %446 = memref.load %arg2[%c2_260, %c4_261] : memref<6x9xf32, #tpu.memory_space<smem>>
      %447 = vector.broadcast %446 : f32 to vector<8x225xf32>
      %448 = arith.mulf %447, %41 : vector<8x225xf32>
      %449 = arith.addf %445, %448 : vector<8x225xf32>
      %c2_262 = arith.constant 2 : index
      %c5_263 = arith.constant 5 : index
      %450 = memref.load %arg2[%c2_262, %c5_263] : memref<6x9xf32, #tpu.memory_space<smem>>
      %451 = vector.broadcast %450 : f32 to vector<8x225xf32>
      %452 = arith.mulf %451, %44 : vector<8x225xf32>
      %453 = arith.addf %449, %452 : vector<8x225xf32>
      %c2_264 = arith.constant 2 : index
      %c6_265 = arith.constant 6 : index
      %454 = memref.load %arg2[%c2_264, %c6_265] : memref<6x9xf32, #tpu.memory_space<smem>>
      %455 = vector.broadcast %454 : f32 to vector<8x225xf32>
      %456 = arith.mulf %455, %50 : vector<8x225xf32>
      %457 = arith.addf %453, %456 : vector<8x225xf32>
      %c2_266 = arith.constant 2 : index
      %c7_267 = arith.constant 7 : index
      %458 = memref.load %arg2[%c2_266, %c7_267] : memref<6x9xf32, #tpu.memory_space<smem>>
      %459 = vector.broadcast %458 : f32 to vector<8x225xf32>
      %460 = arith.mulf %459, %53 : vector<8x225xf32>
      %461 = arith.addf %457, %460 : vector<8x225xf32>
      %c2_268 = arith.constant 2 : index
      %c8_269 = arith.constant 8 : index
      %462 = memref.load %arg2[%c2_268, %c8_269] : memref<6x9xf32, #tpu.memory_space<smem>>
      %463 = vector.broadcast %462 : f32 to vector<8x225xf32>
      %464 = arith.mulf %463, %56 : vector<8x225xf32>
      %465 = arith.addf %461, %464 : vector<8x225xf32>
      %466 = arith.maximumf %430, %465 : vector<8x225xf32>
      %c2_270 = arith.constant 2 : index
      %c0_271 = arith.constant 0 : index
      %467 = memref.load %arg2[%c2_270, %c0_271] : memref<6x9xf32, #tpu.memory_space<smem>>
      %468 = vector.broadcast %467 : f32 to vector<8x225xf32>
      %469 = arith.mulf %468, %29 : vector<8x225xf32>
      %c2_272 = arith.constant 2 : index
      %c1_273 = arith.constant 1 : index
      %470 = memref.load %arg2[%c2_272, %c1_273] : memref<6x9xf32, #tpu.memory_space<smem>>
      %471 = vector.broadcast %470 : f32 to vector<8x225xf32>
      %472 = arith.mulf %471, %32 : vector<8x225xf32>
      %473 = arith.addf %469, %472 : vector<8x225xf32>
      %c2_274 = arith.constant 2 : index
      %c2_275 = arith.constant 2 : index
      %474 = memref.load %arg2[%c2_274, %c2_275] : memref<6x9xf32, #tpu.memory_space<smem>>
      %475 = vector.broadcast %474 : f32 to vector<8x225xf32>
      %476 = arith.mulf %475, %35 : vector<8x225xf32>
      %477 = arith.addf %473, %476 : vector<8x225xf32>
      %c2_276 = arith.constant 2 : index
      %c3_277 = arith.constant 3 : index
      %478 = memref.load %arg2[%c2_276, %c3_277] : memref<6x9xf32, #tpu.memory_space<smem>>
      %479 = vector.broadcast %478 : f32 to vector<8x225xf32>
      %480 = arith.mulf %479, %41 : vector<8x225xf32>
      %481 = arith.addf %477, %480 : vector<8x225xf32>
      %c2_278 = arith.constant 2 : index
      %c4_279 = arith.constant 4 : index
      %482 = memref.load %arg2[%c2_278, %c4_279] : memref<6x9xf32, #tpu.memory_space<smem>>
      %483 = vector.broadcast %482 : f32 to vector<8x225xf32>
      %484 = arith.mulf %483, %44 : vector<8x225xf32>
      %485 = arith.addf %481, %484 : vector<8x225xf32>
      %c2_280 = arith.constant 2 : index
      %c5_281 = arith.constant 5 : index
      %486 = memref.load %arg2[%c2_280, %c5_281] : memref<6x9xf32, #tpu.memory_space<smem>>
      %487 = vector.broadcast %486 : f32 to vector<8x225xf32>
      %488 = arith.mulf %487, %47 : vector<8x225xf32>
      %489 = arith.addf %485, %488 : vector<8x225xf32>
      %c2_282 = arith.constant 2 : index
      %c6_283 = arith.constant 6 : index
      %490 = memref.load %arg2[%c2_282, %c6_283] : memref<6x9xf32, #tpu.memory_space<smem>>
      %491 = vector.broadcast %490 : f32 to vector<8x225xf32>
      %492 = arith.mulf %491, %53 : vector<8x225xf32>
      %493 = arith.addf %489, %492 : vector<8x225xf32>
      %c2_284 = arith.constant 2 : index
      %c7_285 = arith.constant 7 : index
      %494 = memref.load %arg2[%c2_284, %c7_285] : memref<6x9xf32, #tpu.memory_space<smem>>
      %495 = vector.broadcast %494 : f32 to vector<8x225xf32>
      %496 = arith.mulf %495, %56 : vector<8x225xf32>
      %497 = arith.addf %493, %496 : vector<8x225xf32>
      %c2_286 = arith.constant 2 : index
      %c8_287 = arith.constant 8 : index
      %498 = memref.load %arg2[%c2_286, %c8_287] : memref<6x9xf32, #tpu.memory_space<smem>>
      %499 = vector.broadcast %498 : f32 to vector<8x225xf32>
      %500 = arith.mulf %499, %59 : vector<8x225xf32>
      %501 = arith.addf %497, %500 : vector<8x225xf32>
      %502 = arith.maximumf %466, %501 : vector<8x225xf32>
      %c2_288 = arith.constant 2 : index
      %503 = memref.load %arg3[%c2_288] : memref<6xf32, #tpu.memory_space<smem>>
      %504 = vector.broadcast %503 : f32 to vector<8x225xf32>
      %505 = arith.addf %502, %504 : vector<8x225xf32>
      %cst_289 = arith.constant 0.000000e+00 : f32
      %506 = vector.broadcast %cst_289 : f32 to vector<8x225xf32>
      %507 = arith.maximumf %505, %506 : vector<8x225xf32>
      %508 = arith.index_cast %11 : i32 to index
      %c512 = arith.constant 512 : index
      %509 = vector.load %arg7[%508, %c512] : memref<128x1536xf32, #tpu.memory_space<vmem>>, vector<8x225xf32>
      tpu.vector_store %arg7[%508, %c512], %507 {strides = array<i32>} : memref<128x1536xf32, #tpu.memory_space<vmem>>, vector<8x225xf32>,
      %c3_290 = arith.constant 3 : index
      %c0_291 = arith.constant 0 : index
      %510 = memref.load %arg2[%c3_290, %c0_291] : memref<6x9xf32, #tpu.memory_space<smem>>
      %511 = vector.broadcast %510 : f32 to vector<8x225xf32>
      %512 = arith.mulf %511, %14 : vector<8x225xf32>
      %c3_292 = arith.constant 3 : index
      %c1_293 = arith.constant 1 : index
      %513 = memref.load %arg2[%c3_292, %c1_293] : memref<6x9xf32, #tpu.memory_space<smem>>
      %514 = vector.broadcast %513 : f32 to vector<8x225xf32>
      %515 = arith.mulf %514, %17 : vector<8x225xf32>
      %516 = arith.addf %512, %515 : vector<8x225xf32>
      %c3_294 = arith.constant 3 : index
      %c2_295 = arith.constant 2 : index
      %517 = memref.load %arg2[%c3_294, %c2_295] : memref<6x9xf32, #tpu.memory_space<smem>>
      %518 = vector.broadcast %517 : f32 to vector<8x225xf32>
      %519 = arith.mulf %518, %20 : vector<8x225xf32>
      %520 = arith.addf %516, %519 : vector<8x225xf32>
      %c3_296 = arith.constant 3 : index
      %c3_297 = arith.constant 3 : index
      %521 = memref.load %arg2[%c3_296, %c3_297] : memref<6x9xf32, #tpu.memory_space<smem>>
      %522 = vector.broadcast %521 : f32 to vector<8x225xf32>
      %523 = arith.mulf %522, %26 : vector<8x225xf32>
      %524 = arith.addf %520, %523 : vector<8x225xf32>
      %c3_298 = arith.constant 3 : index
      %c4_299 = arith.constant 4 : index
      %525 = memref.load %arg2[%c3_298, %c4_299] : memref<6x9xf32, #tpu.memory_space<smem>>
      %526 = vector.broadcast %525 : f32 to vector<8x225xf32>
      %527 = arith.mulf %526, %29 : vector<8x225xf32>
      %528 = arith.addf %524, %527 : vector<8x225xf32>
      %c3_300 = arith.constant 3 : index
      %c5_301 = arith.constant 5 : index
      %529 = memref.load %arg2[%c3_300, %c5_301] : memref<6x9xf32, #tpu.memory_space<smem>>
      %530 = vector.broadcast %529 : f32 to vector<8x225xf32>
      %531 = arith.mulf %530, %32 : vector<8x225xf32>
      %532 = arith.addf %528, %531 : vector<8x225xf32>
      %c3_302 = arith.constant 3 : index
      %c6_303 = arith.constant 6 : index
      %533 = memref.load %arg2[%c3_302, %c6_303] : memref<6x9xf32, #tpu.memory_space<smem>>
      %534 = vector.broadcast %533 : f32 to vector<8x225xf32>
      %535 = arith.mulf %534, %38 : vector<8x225xf32>
      %536 = arith.addf %532, %535 : vector<8x225xf32>
      %c3_304 = arith.constant 3 : index
      %c7_305 = arith.constant 7 : index
      %537 = memref.load %arg2[%c3_304, %c7_305] : memref<6x9xf32, #tpu.memory_space<smem>>
      %538 = vector.broadcast %537 : f32 to vector<8x225xf32>
      %539 = arith.mulf %538, %41 : vector<8x225xf32>
      %540 = arith.addf %536, %539 : vector<8x225xf32>
      %c3_306 = arith.constant 3 : index
      %c8_307 = arith.constant 8 : index
      %541 = memref.load %arg2[%c3_306, %c8_307] : memref<6x9xf32, #tpu.memory_space<smem>>
      %542 = vector.broadcast %541 : f32 to vector<8x225xf32>
      %543 = arith.mulf %542, %44 : vector<8x225xf32>
      %544 = arith.addf %540, %543 : vector<8x225xf32>
      %c3_308 = arith.constant 3 : index
      %c0_309 = arith.constant 0 : index
      %545 = memref.load %arg2[%c3_308, %c0_309] : memref<6x9xf32, #tpu.memory_space<smem>>
      %546 = vector.broadcast %545 : f32 to vector<8x225xf32>
      %547 = arith.mulf %546, %17 : vector<8x225xf32>
      %c3_310 = arith.constant 3 : index
      %c1_311 = arith.constant 1 : index
      %548 = memref.load %arg2[%c3_310, %c1_311] : memref<6x9xf32, #tpu.memory_space<smem>>
      %549 = vector.broadcast %548 : f32 to vector<8x225xf32>
      %550 = arith.mulf %549, %20 : vector<8x225xf32>
      %551 = arith.addf %547, %550 : vector<8x225xf32>
      %c3_312 = arith.constant 3 : index
      %c2_313 = arith.constant 2 : index
      %552 = memref.load %arg2[%c3_312, %c2_313] : memref<6x9xf32, #tpu.memory_space<smem>>
      %553 = vector.broadcast %552 : f32 to vector<8x225xf32>
      %554 = arith.mulf %553, %23 : vector<8x225xf32>
      %555 = arith.addf %551, %554 : vector<8x225xf32>
      %c3_314 = arith.constant 3 : index
      %c3_315 = arith.constant 3 : index
      %556 = memref.load %arg2[%c3_314, %c3_315] : memref<6x9xf32, #tpu.memory_space<smem>>
      %557 = vector.broadcast %556 : f32 to vector<8x225xf32>
      %558 = arith.mulf %557, %29 : vector<8x225xf32>
      %559 = arith.addf %555, %558 : vector<8x225xf32>
      %c3_316 = arith.constant 3 : index
      %c4_317 = arith.constant 4 : index
      %560 = memref.load %arg2[%c3_316, %c4_317] : memref<6x9xf32, #tpu.memory_space<smem>>
      %561 = vector.broadcast %560 : f32 to vector<8x225xf32>
      %562 = arith.mulf %561, %32 : vector<8x225xf32>
      %563 = arith.addf %559, %562 : vector<8x225xf32>
      %c3_318 = arith.constant 3 : index
      %c5_319 = arith.constant 5 : index
      %564 = memref.load %arg2[%c3_318, %c5_319] : memref<6x9xf32, #tpu.memory_space<smem>>
      %565 = vector.broadcast %564 : f32 to vector<8x225xf32>
      %566 = arith.mulf %565, %35 : vector<8x225xf32>
      %567 = arith.addf %563, %566 : vector<8x225xf32>
      %c3_320 = arith.constant 3 : index
      %c6_321 = arith.constant 6 : index
      %568 = memref.load %arg2[%c3_320, %c6_321] : memref<6x9xf32, #tpu.memory_space<smem>>
      %569 = vector.broadcast %568 : f32 to vector<8x225xf32>
      %570 = arith.mulf %569, %41 : vector<8x225xf32>
      %571 = arith.addf %567, %570 : vector<8x225xf32>
      %c3_322 = arith.constant 3 : index
      %c7_323 = arith.constant 7 : index
      %572 = memref.load %arg2[%c3_322, %c7_323] : memref<6x9xf32, #tpu.memory_space<smem>>
      %573 = vector.broadcast %572 : f32 to vector<8x225xf32>
      %574 = arith.mulf %573, %44 : vector<8x225xf32>
      %575 = arith.addf %571, %574 : vector<8x225xf32>
      %c3_324 = arith.constant 3 : index
      %c8_325 = arith.constant 8 : index
      %576 = memref.load %arg2[%c3_324, %c8_325] : memref<6x9xf32, #tpu.memory_space<smem>>
      %577 = vector.broadcast %576 : f32 to vector<8x225xf32>
      %578 = arith.mulf %577, %47 : vector<8x225xf32>
      %579 = arith.addf %575, %578 : vector<8x225xf32>
      %580 = arith.maximumf %544, %579 : vector<8x225xf32>
      %c3_326 = arith.constant 3 : index
      %c0_327 = arith.constant 0 : index
      %581 = memref.load %arg2[%c3_326, %c0_327] : memref<6x9xf32, #tpu.memory_space<smem>>
      %582 = vector.broadcast %581 : f32 to vector<8x225xf32>
      %583 = arith.mulf %582, %26 : vector<8x225xf32>
      %c3_328 = arith.constant 3 : index
      %c1_329 = arith.constant 1 : index
      %584 = memref.load %arg2[%c3_328, %c1_329] : memref<6x9xf32, #tpu.memory_space<smem>>
      %585 = vector.broadcast %584 : f32 to vector<8x225xf32>
      %586 = arith.mulf %585, %29 : vector<8x225xf32>
      %587 = arith.addf %583, %586 : vector<8x225xf32>
      %c3_330 = arith.constant 3 : index
      %c2_331 = arith.constant 2 : index
      %588 = memref.load %arg2[%c3_330, %c2_331] : memref<6x9xf32, #tpu.memory_space<smem>>
      %589 = vector.broadcast %588 : f32 to vector<8x225xf32>
      %590 = arith.mulf %589, %32 : vector<8x225xf32>
      %591 = arith.addf %587, %590 : vector<8x225xf32>
      %c3_332 = arith.constant 3 : index
      %c3_333 = arith.constant 3 : index
      %592 = memref.load %arg2[%c3_332, %c3_333] : memref<6x9xf32, #tpu.memory_space<smem>>
      %593 = vector.broadcast %592 : f32 to vector<8x225xf32>
      %594 = arith.mulf %593, %38 : vector<8x225xf32>
      %595 = arith.addf %591, %594 : vector<8x225xf32>
      %c3_334 = arith.constant 3 : index
      %c4_335 = arith.constant 4 : index
      %596 = memref.load %arg2[%c3_334, %c4_335] : memref<6x9xf32, #tpu.memory_space<smem>>
      %597 = vector.broadcast %596 : f32 to vector<8x225xf32>
      %598 = arith.mulf %597, %41 : vector<8x225xf32>
      %599 = arith.addf %595, %598 : vector<8x225xf32>
      %c3_336 = arith.constant 3 : index
      %c5_337 = arith.constant 5 : index
      %600 = memref.load %arg2[%c3_336, %c5_337] : memref<6x9xf32, #tpu.memory_space<smem>>
      %601 = vector.broadcast %600 : f32 to vector<8x225xf32>
      %602 = arith.mulf %601, %44 : vector<8x225xf32>
      %603 = arith.addf %599, %602 : vector<8x225xf32>
      %c3_338 = arith.constant 3 : index
      %c6_339 = arith.constant 6 : index
      %604 = memref.load %arg2[%c3_338, %c6_339] : memref<6x9xf32, #tpu.memory_space<smem>>
      %605 = vector.broadcast %604 : f32 to vector<8x225xf32>
      %606 = arith.mulf %605, %50 : vector<8x225xf32>
      %607 = arith.addf %603, %606 : vector<8x225xf32>
      %c3_340 = arith.constant 3 : index
      %c7_341 = arith.constant 7 : index
      %608 = memref.load %arg2[%c3_340, %c7_341] : memref<6x9xf32, #tpu.memory_space<smem>>
      %609 = vector.broadcast %608 : f32 to vector<8x225xf32>
      %610 = arith.mulf %609, %53 : vector<8x225xf32>
      %611 = arith.addf %607, %610 : vector<8x225xf32>
      %c3_342 = arith.constant 3 : index
      %c8_343 = arith.constant 8 : index
      %612 = memref.load %arg2[%c3_342, %c8_343] : memref<6x9xf32, #tpu.memory_space<smem>>
      %613 = vector.broadcast %612 : f32 to vector<8x225xf32>
      %614 = arith.mulf %613, %56 : vector<8x225xf32>
      %615 = arith.addf %611, %614 : vector<8x225xf32>
      %616 = arith.maximumf %580, %615 : vector<8x225xf32>
      %c3_344 = arith.constant 3 : index
      %c0_345 = arith.constant 0 : index
      %617 = memref.load %arg2[%c3_344, %c0_345] : memref<6x9xf32, #tpu.memory_space<smem>>
      %618 = vector.broadcast %617 : f32 to vector<8x225xf32>
      %619 = arith.mulf %618, %29 : vector<8x225xf32>
      %c3_346 = arith.constant 3 : index
      %c1_347 = arith.constant 1 : index
      %620 = memref.load %arg2[%c3_346, %c1_347] : memref<6x9xf32, #tpu.memory_space<smem>>
      %621 = vector.broadcast %620 : f32 to vector<8x225xf32>
      %622 = arith.mulf %621, %32 : vector<8x225xf32>
      %623 = arith.addf %619, %622 : vector<8x225xf32>
      %c3_348 = arith.constant 3 : index
      %c2_349 = arith.constant 2 : index
      %624 = memref.load %arg2[%c3_348, %c2_349] : memref<6x9xf32, #tpu.memory_space<smem>>
      %625 = vector.broadcast %624 : f32 to vector<8x225xf32>
      %626 = arith.mulf %625, %35 : vector<8x225xf32>
      %627 = arith.addf %623, %626 : vector<8x225xf32>
      %c3_350 = arith.constant 3 : index
      %c3_351 = arith.constant 3 : index
      %628 = memref.load %arg2[%c3_350, %c3_351] : memref<6x9xf32, #tpu.memory_space<smem>>
      %629 = vector.broadcast %628 : f32 to vector<8x225xf32>
      %630 = arith.mulf %629, %41 : vector<8x225xf32>
      %631 = arith.addf %627, %630 : vector<8x225xf32>
      %c3_352 = arith.constant 3 : index
      %c4_353 = arith.constant 4 : index
      %632 = memref.load %arg2[%c3_352, %c4_353] : memref<6x9xf32, #tpu.memory_space<smem>>
      %633 = vector.broadcast %632 : f32 to vector<8x225xf32>
      %634 = arith.mulf %633, %44 : vector<8x225xf32>
      %635 = arith.addf %631, %634 : vector<8x225xf32>
      %c3_354 = arith.constant 3 : index
      %c5_355 = arith.constant 5 : index
      %636 = memref.load %arg2[%c3_354, %c5_355] : memref<6x9xf32, #tpu.memory_space<smem>>
      %637 = vector.broadcast %636 : f32 to vector<8x225xf32>
      %638 = arith.mulf %637, %47 : vector<8x225xf32>
      %639 = arith.addf %635, %638 : vector<8x225xf32>
      %c3_356 = arith.constant 3 : index
      %c6_357 = arith.constant 6 : index
      %640 = memref.load %arg2[%c3_356, %c6_357] : memref<6x9xf32, #tpu.memory_space<smem>>
      %641 = vector.broadcast %640 : f32 to vector<8x225xf32>
      %642 = arith.mulf %641, %53 : vector<8x225xf32>
      %643 = arith.addf %639, %642 : vector<8x225xf32>
      %c3_358 = arith.constant 3 : index
      %c7_359 = arith.constant 7 : index
      %644 = memref.load %arg2[%c3_358, %c7_359] : memref<6x9xf32, #tpu.memory_space<smem>>
      %645 = vector.broadcast %644 : f32 to vector<8x225xf32>
      %646 = arith.mulf %645, %56 : vector<8x225xf32>
      %647 = arith.addf %643, %646 : vector<8x225xf32>
      %c3_360 = arith.constant 3 : index
      %c8_361 = arith.constant 8 : index
      %648 = memref.load %arg2[%c3_360, %c8_361] : memref<6x9xf32, #tpu.memory_space<smem>>
      %649 = vector.broadcast %648 : f32 to vector<8x225xf32>
      %650 = arith.mulf %649, %59 : vector<8x225xf32>
      %651 = arith.addf %647, %650 : vector<8x225xf32>
      %652 = arith.maximumf %616, %651 : vector<8x225xf32>
      %c3_362 = arith.constant 3 : index
      %653 = memref.load %arg3[%c3_362] : memref<6xf32, #tpu.memory_space<smem>>
      %654 = vector.broadcast %653 : f32 to vector<8x225xf32>
      %655 = arith.addf %652, %654 : vector<8x225xf32>
      %cst_363 = arith.constant 0.000000e+00 : f32
      %656 = vector.broadcast %cst_363 : f32 to vector<8x225xf32>
      %657 = arith.maximumf %655, %656 : vector<8x225xf32>
      %658 = arith.index_cast %11 : i32 to index
      %c768 = arith.constant 768 : index
      %659 = vector.load %arg7[%658, %c768] : memref<128x1536xf32, #tpu.memory_space<vmem>>, vector<8x225xf32>
      tpu.vector_store %arg7[%658, %c768], %657 {strides = array<i32>} : memref<128x1536xf32, #tpu.memory_space<vmem>>, vector<8x225xf32>,
      %c4_364 = arith.constant 4 : index
      %c0_365 = arith.constant 0 : index
      %660 = memref.load %arg2[%c4_364, %c0_365] : memref<6x9xf32, #tpu.memory_space<smem>>
      %661 = vector.broadcast %660 : f32 to vector<8x225xf32>
      %662 = arith.mulf %661, %14 : vector<8x225xf32>
      %c4_366 = arith.constant 4 : index
      %c1_367 = arith.constant 1 : index
      %663 = memref.load %arg2[%c4_366, %c1_367] : memref<6x9xf32, #tpu.memory_space<smem>>
      %664 = vector.broadcast %663 : f32 to vector<8x225xf32>
      %665 = arith.mulf %664, %17 : vector<8x225xf32>
      %666 = arith.addf %662, %665 : vector<8x225xf32>
      %c4_368 = arith.constant 4 : index
      %c2_369 = arith.constant 2 : index
      %667 = memref.load %arg2[%c4_368, %c2_369] : memref<6x9xf32, #tpu.memory_space<smem>>
      %668 = vector.broadcast %667 : f32 to vector<8x225xf32>
      %669 = arith.mulf %668, %20 : vector<8x225xf32>
      %670 = arith.addf %666, %669 : vector<8x225xf32>
      %c4_370 = arith.constant 4 : index
      %c3_371 = arith.constant 3 : index
      %671 = memref.load %arg2[%c4_370, %c3_371] : memref<6x9xf32, #tpu.memory_space<smem>>
      %672 = vector.broadcast %671 : f32 to vector<8x225xf32>
      %673 = arith.mulf %672, %26 : vector<8x225xf32>
      %674 = arith.addf %670, %673 : vector<8x225xf32>
      %c4_372 = arith.constant 4 : index
      %c4_373 = arith.constant 4 : index
      %675 = memref.load %arg2[%c4_372, %c4_373] : memref<6x9xf32, #tpu.memory_space<smem>>
      %676 = vector.broadcast %675 : f32 to vector<8x225xf32>
      %677 = arith.mulf %676, %29 : vector<8x225xf32>
      %678 = arith.addf %674, %677 : vector<8x225xf32>
      %c4_374 = arith.constant 4 : index
      %c5_375 = arith.constant 5 : index
      %679 = memref.load %arg2[%c4_374, %c5_375] : memref<6x9xf32, #tpu.memory_space<smem>>
      %680 = vector.broadcast %679 : f32 to vector<8x225xf32>
      %681 = arith.mulf %680, %32 : vector<8x225xf32>
      %682 = arith.addf %678, %681 : vector<8x225xf32>
      %c4_376 = arith.constant 4 : index
      %c6_377 = arith.constant 6 : index
      %683 = memref.load %arg2[%c4_376, %c6_377] : memref<6x9xf32, #tpu.memory_space<smem>>
      %684 = vector.broadcast %683 : f32 to vector<8x225xf32>
      %685 = arith.mulf %684, %38 : vector<8x225xf32>
      %686 = arith.addf %682, %685 : vector<8x225xf32>
      %c4_378 = arith.constant 4 : index
      %c7_379 = arith.constant 7 : index
      %687 = memref.load %arg2[%c4_378, %c7_379] : memref<6x9xf32, #tpu.memory_space<smem>>
      %688 = vector.broadcast %687 : f32 to vector<8x225xf32>
      %689 = arith.mulf %688, %41 : vector<8x225xf32>
      %690 = arith.addf %686, %689 : vector<8x225xf32>
      %c4_380 = arith.constant 4 : index
      %c8_381 = arith.constant 8 : index
      %691 = memref.load %arg2[%c4_380, %c8_381] : memref<6x9xf32, #tpu.memory_space<smem>>
      %692 = vector.broadcast %691 : f32 to vector<8x225xf32>
      %693 = arith.mulf %692, %44 : vector<8x225xf32>
      %694 = arith.addf %690, %693 : vector<8x225xf32>
      %c4_382 = arith.constant 4 : index
      %c0_383 = arith.constant 0 : index
      %695 = memref.load %arg2[%c4_382, %c0_383] : memref<6x9xf32, #tpu.memory_space<smem>>
      %696 = vector.broadcast %695 : f32 to vector<8x225xf32>
      %697 = arith.mulf %696, %17 : vector<8x225xf32>
      %c4_384 = arith.constant 4 : index
      %c1_385 = arith.constant 1 : index
      %698 = memref.load %arg2[%c4_384, %c1_385] : memref<6x9xf32, #tpu.memory_space<smem>>
      %699 = vector.broadcast %698 : f32 to vector<8x225xf32>
      %700 = arith.mulf %699, %20 : vector<8x225xf32>
      %701 = arith.addf %697, %700 : vector<8x225xf32>
      %c4_386 = arith.constant 4 : index
      %c2_387 = arith.constant 2 : index
      %702 = memref.load %arg2[%c4_386, %c2_387] : memref<6x9xf32, #tpu.memory_space<smem>>
      %703 = vector.broadcast %702 : f32 to vector<8x225xf32>
      %704 = arith.mulf %703, %23 : vector<8x225xf32>
      %705 = arith.addf %701, %704 : vector<8x225xf32>
      %c4_388 = arith.constant 4 : index
      %c3_389 = arith.constant 3 : index
      %706 = memref.load %arg2[%c4_388, %c3_389] : memref<6x9xf32, #tpu.memory_space<smem>>
      %707 = vector.broadcast %706 : f32 to vector<8x225xf32>
      %708 = arith.mulf %707, %29 : vector<8x225xf32>
      %709 = arith.addf %705, %708 : vector<8x225xf32>
      %c4_390 = arith.constant 4 : index
      %c4_391 = arith.constant 4 : index
      %710 = memref.load %arg2[%c4_390, %c4_391] : memref<6x9xf32, #tpu.memory_space<smem>>
      %711 = vector.broadcast %710 : f32 to vector<8x225xf32>
      %712 = arith.mulf %711, %32 : vector<8x225xf32>
      %713 = arith.addf %709, %712 : vector<8x225xf32>
      %c4_392 = arith.constant 4 : index
      %c5_393 = arith.constant 5 : index
      %714 = memref.load %arg2[%c4_392, %c5_393] : memref<6x9xf32, #tpu.memory_space<smem>>
      %715 = vector.broadcast %714 : f32 to vector<8x225xf32>
      %716 = arith.mulf %715, %35 : vector<8x225xf32>
      %717 = arith.addf %713, %716 : vector<8x225xf32>
      %c4_394 = arith.constant 4 : index
      %c6_395 = arith.constant 6 : index
      %718 = memref.load %arg2[%c4_394, %c6_395] : memref<6x9xf32, #tpu.memory_space<smem>>
      %719 = vector.broadcast %718 : f32 to vector<8x225xf32>
      %720 = arith.mulf %719, %41 : vector<8x225xf32>
      %721 = arith.addf %717, %720 : vector<8x225xf32>
      %c4_396 = arith.constant 4 : index
      %c7_397 = arith.constant 7 : index
      %722 = memref.load %arg2[%c4_396, %c7_397] : memref<6x9xf32, #tpu.memory_space<smem>>
      %723 = vector.broadcast %722 : f32 to vector<8x225xf32>
      %724 = arith.mulf %723, %44 : vector<8x225xf32>
      %725 = arith.addf %721, %724 : vector<8x225xf32>
      %c4_398 = arith.constant 4 : index
      %c8_399 = arith.constant 8 : index
      %726 = memref.load %arg2[%c4_398, %c8_399] : memref<6x9xf32, #tpu.memory_space<smem>>
      %727 = vector.broadcast %726 : f32 to vector<8x225xf32>
      %728 = arith.mulf %727, %47 : vector<8x225xf32>
      %729 = arith.addf %725, %728 : vector<8x225xf32>
      %730 = arith.maximumf %694, %729 : vector<8x225xf32>
      %c4_400 = arith.constant 4 : index
      %c0_401 = arith.constant 0 : index
      %731 = memref.load %arg2[%c4_400, %c0_401] : memref<6x9xf32, #tpu.memory_space<smem>>
      %732 = vector.broadcast %731 : f32 to vector<8x225xf32>
      %733 = arith.mulf %732, %26 : vector<8x225xf32>
      %c4_402 = arith.constant 4 : index
      %c1_403 = arith.constant 1 : index
      %734 = memref.load %arg2[%c4_402, %c1_403] : memref<6x9xf32, #tpu.memory_space<smem>>
      %735 = vector.broadcast %734 : f32 to vector<8x225xf32>
      %736 = arith.mulf %735, %29 : vector<8x225xf32>
      %737 = arith.addf %733, %736 : vector<8x225xf32>
      %c4_404 = arith.constant 4 : index
      %c2_405 = arith.constant 2 : index
      %738 = memref.load %arg2[%c4_404, %c2_405] : memref<6x9xf32, #tpu.memory_space<smem>>
      %739 = vector.broadcast %738 : f32 to vector<8x225xf32>
      %740 = arith.mulf %739, %32 : vector<8x225xf32>
      %741 = arith.addf %737, %740 : vector<8x225xf32>
      %c4_406 = arith.constant 4 : index
      %c3_407 = arith.constant 3 : index
      %742 = memref.load %arg2[%c4_406, %c3_407] : memref<6x9xf32, #tpu.memory_space<smem>>
      %743 = vector.broadcast %742 : f32 to vector<8x225xf32>
      %744 = arith.mulf %743, %38 : vector<8x225xf32>
      %745 = arith.addf %741, %744 : vector<8x225xf32>
      %c4_408 = arith.constant 4 : index
      %c4_409 = arith.constant 4 : index
      %746 = memref.load %arg2[%c4_408, %c4_409] : memref<6x9xf32, #tpu.memory_space<smem>>
      %747 = vector.broadcast %746 : f32 to vector<8x225xf32>
      %748 = arith.mulf %747, %41 : vector<8x225xf32>
      %749 = arith.addf %745, %748 : vector<8x225xf32>
      %c4_410 = arith.constant 4 : index
      %c5_411 = arith.constant 5 : index
      %750 = memref.load %arg2[%c4_410, %c5_411] : memref<6x9xf32, #tpu.memory_space<smem>>
      %751 = vector.broadcast %750 : f32 to vector<8x225xf32>
      %752 = arith.mulf %751, %44 : vector<8x225xf32>
      %753 = arith.addf %749, %752 : vector<8x225xf32>
      %c4_412 = arith.constant 4 : index
      %c6_413 = arith.constant 6 : index
      %754 = memref.load %arg2[%c4_412, %c6_413] : memref<6x9xf32, #tpu.memory_space<smem>>
      %755 = vector.broadcast %754 : f32 to vector<8x225xf32>
      %756 = arith.mulf %755, %50 : vector<8x225xf32>
      %757 = arith.addf %753, %756 : vector<8x225xf32>
      %c4_414 = arith.constant 4 : index
      %c7_415 = arith.constant 7 : index
      %758 = memref.load %arg2[%c4_414, %c7_415] : memref<6x9xf32, #tpu.memory_space<smem>>
      %759 = vector.broadcast %758 : f32 to vector<8x225xf32>
      %760 = arith.mulf %759, %53 : vector<8x225xf32>
      %761 = arith.addf %757, %760 : vector<8x225xf32>
      %c4_416 = arith.constant 4 : index
      %c8_417 = arith.constant 8 : index
      %762 = memref.load %arg2[%c4_416, %c8_417] : memref<6x9xf32, #tpu.memory_space<smem>>
      %763 = vector.broadcast %762 : f32 to vector<8x225xf32>
      %764 = arith.mulf %763, %56 : vector<8x225xf32>
      %765 = arith.addf %761, %764 : vector<8x225xf32>
      %766 = arith.maximumf %730, %765 : vector<8x225xf32>
      %c4_418 = arith.constant 4 : index
      %c0_419 = arith.constant 0 : index
      %767 = memref.load %arg2[%c4_418, %c0_419] : memref<6x9xf32, #tpu.memory_space<smem>>
      %768 = vector.broadcast %767 : f32 to vector<8x225xf32>
      %769 = arith.mulf %768, %29 : vector<8x225xf32>
      %c4_420 = arith.constant 4 : index
      %c1_421 = arith.constant 1 : index
      %770 = memref.load %arg2[%c4_420, %c1_421] : memref<6x9xf32, #tpu.memory_space<smem>>
      %771 = vector.broadcast %770 : f32 to vector<8x225xf32>
      %772 = arith.mulf %771, %32 : vector<8x225xf32>
      %773 = arith.addf %769, %772 : vector<8x225xf32>
      %c4_422 = arith.constant 4 : index
      %c2_423 = arith.constant 2 : index
      %774 = memref.load %arg2[%c4_422, %c2_423] : memref<6x9xf32, #tpu.memory_space<smem>>
      %775 = vector.broadcast %774 : f32 to vector<8x225xf32>
      %776 = arith.mulf %775, %35 : vector<8x225xf32>
      %777 = arith.addf %773, %776 : vector<8x225xf32>
      %c4_424 = arith.constant 4 : index
      %c3_425 = arith.constant 3 : index
      %778 = memref.load %arg2[%c4_424, %c3_425] : memref<6x9xf32, #tpu.memory_space<smem>>
      %779 = vector.broadcast %778 : f32 to vector<8x225xf32>
      %780 = arith.mulf %779, %41 : vector<8x225xf32>
      %781 = arith.addf %777, %780 : vector<8x225xf32>
      %c4_426 = arith.constant 4 : index
      %c4_427 = arith.constant 4 : index
      %782 = memref.load %arg2[%c4_426, %c4_427] : memref<6x9xf32, #tpu.memory_space<smem>>
      %783 = vector.broadcast %782 : f32 to vector<8x225xf32>
      %784 = arith.mulf %783, %44 : vector<8x225xf32>
      %785 = arith.addf %781, %784 : vector<8x225xf32>
      %c4_428 = arith.constant 4 : index
      %c5_429 = arith.constant 5 : index
      %786 = memref.load %arg2[%c4_428, %c5_429] : memref<6x9xf32, #tpu.memory_space<smem>>
      %787 = vector.broadcast %786 : f32 to vector<8x225xf32>
      %788 = arith.mulf %787, %47 : vector<8x225xf32>
      %789 = arith.addf %785, %788 : vector<8x225xf32>
      %c4_430 = arith.constant 4 : index
      %c6_431 = arith.constant 6 : index
      %790 = memref.load %arg2[%c4_430, %c6_431] : memref<6x9xf32, #tpu.memory_space<smem>>
      %791 = vector.broadcast %790 : f32 to vector<8x225xf32>
      %792 = arith.mulf %791, %53 : vector<8x225xf32>
      %793 = arith.addf %789, %792 : vector<8x225xf32>
      %c4_432 = arith.constant 4 : index
      %c7_433 = arith.constant 7 : index
      %794 = memref.load %arg2[%c4_432, %c7_433] : memref<6x9xf32, #tpu.memory_space<smem>>
      %795 = vector.broadcast %794 : f32 to vector<8x225xf32>
      %796 = arith.mulf %795, %56 : vector<8x225xf32>
      %797 = arith.addf %793, %796 : vector<8x225xf32>
      %c4_434 = arith.constant 4 : index
      %c8_435 = arith.constant 8 : index
      %798 = memref.load %arg2[%c4_434, %c8_435] : memref<6x9xf32, #tpu.memory_space<smem>>
      %799 = vector.broadcast %798 : f32 to vector<8x225xf32>
      %800 = arith.mulf %799, %59 : vector<8x225xf32>
      %801 = arith.addf %797, %800 : vector<8x225xf32>
      %802 = arith.maximumf %766, %801 : vector<8x225xf32>
      %c4_436 = arith.constant 4 : index
      %803 = memref.load %arg3[%c4_436] : memref<6xf32, #tpu.memory_space<smem>>
      %804 = vector.broadcast %803 : f32 to vector<8x225xf32>
      %805 = arith.addf %802, %804 : vector<8x225xf32>
      %cst_437 = arith.constant 0.000000e+00 : f32
      %806 = vector.broadcast %cst_437 : f32 to vector<8x225xf32>
      %807 = arith.maximumf %805, %806 : vector<8x225xf32>
      %808 = arith.index_cast %11 : i32 to index
      %c1024 = arith.constant 1024 : index
      %809 = vector.load %arg7[%808, %c1024] : memref<128x1536xf32, #tpu.memory_space<vmem>>, vector<8x225xf32>
      tpu.vector_store %arg7[%808, %c1024], %807 {strides = array<i32>} : memref<128x1536xf32, #tpu.memory_space<vmem>>, vector<8x225xf32>,
      %c5_438 = arith.constant 5 : index
      %c0_439 = arith.constant 0 : index
      %810 = memref.load %arg2[%c5_438, %c0_439] : memref<6x9xf32, #tpu.memory_space<smem>>
      %811 = vector.broadcast %810 : f32 to vector<8x225xf32>
      %812 = arith.mulf %811, %14 : vector<8x225xf32>
      %c5_440 = arith.constant 5 : index
      %c1_441 = arith.constant 1 : index
      %813 = memref.load %arg2[%c5_440, %c1_441] : memref<6x9xf32, #tpu.memory_space<smem>>
      %814 = vector.broadcast %813 : f32 to vector<8x225xf32>
      %815 = arith.mulf %814, %17 : vector<8x225xf32>
      %816 = arith.addf %812, %815 : vector<8x225xf32>
      %c5_442 = arith.constant 5 : index
      %c2_443 = arith.constant 2 : index
      %817 = memref.load %arg2[%c5_442, %c2_443] : memref<6x9xf32, #tpu.memory_space<smem>>
      %818 = vector.broadcast %817 : f32 to vector<8x225xf32>
      %819 = arith.mulf %818, %20 : vector<8x225xf32>
      %820 = arith.addf %816, %819 : vector<8x225xf32>
      %c5_444 = arith.constant 5 : index
      %c3_445 = arith.constant 3 : index
      %821 = memref.load %arg2[%c5_444, %c3_445] : memref<6x9xf32, #tpu.memory_space<smem>>
      %822 = vector.broadcast %821 : f32 to vector<8x225xf32>
      %823 = arith.mulf %822, %26 : vector<8x225xf32>
      %824 = arith.addf %820, %823 : vector<8x225xf32>
      %c5_446 = arith.constant 5 : index
      %c4_447 = arith.constant 4 : index
      %825 = memref.load %arg2[%c5_446, %c4_447] : memref<6x9xf32, #tpu.memory_space<smem>>
      %826 = vector.broadcast %825 : f32 to vector<8x225xf32>
      %827 = arith.mulf %826, %29 : vector<8x225xf32>
      %828 = arith.addf %824, %827 : vector<8x225xf32>
      %c5_448 = arith.constant 5 : index
      %c5_449 = arith.constant 5 : index
      %829 = memref.load %arg2[%c5_448, %c5_449] : memref<6x9xf32, #tpu.memory_space<smem>>
      %830 = vector.broadcast %829 : f32 to vector<8x225xf32>
      %831 = arith.mulf %830, %32 : vector<8x225xf32>
      %832 = arith.addf %828, %831 : vector<8x225xf32>
      %c5_450 = arith.constant 5 : index
      %c6_451 = arith.constant 6 : index
      %833 = memref.load %arg2[%c5_450, %c6_451] : memref<6x9xf32, #tpu.memory_space<smem>>
      %834 = vector.broadcast %833 : f32 to vector<8x225xf32>
      %835 = arith.mulf %834, %38 : vector<8x225xf32>
      %836 = arith.addf %832, %835 : vector<8x225xf32>
      %c5_452 = arith.constant 5 : index
      %c7_453 = arith.constant 7 : index
      %837 = memref.load %arg2[%c5_452, %c7_453] : memref<6x9xf32, #tpu.memory_space<smem>>
      %838 = vector.broadcast %837 : f32 to vector<8x225xf32>
      %839 = arith.mulf %838, %41 : vector<8x225xf32>
      %840 = arith.addf %836, %839 : vector<8x225xf32>
      %c5_454 = arith.constant 5 : index
      %c8_455 = arith.constant 8 : index
      %841 = memref.load %arg2[%c5_454, %c8_455] : memref<6x9xf32, #tpu.memory_space<smem>>
      %842 = vector.broadcast %841 : f32 to vector<8x225xf32>
      %843 = arith.mulf %842, %44 : vector<8x225xf32>
      %844 = arith.addf %840, %843 : vector<8x225xf32>
      %c5_456 = arith.constant 5 : index
      %c0_457 = arith.constant 0 : index
      %845 = memref.load %arg2[%c5_456, %c0_457] : memref<6x9xf32, #tpu.memory_space<smem>>
      %846 = vector.broadcast %845 : f32 to vector<8x225xf32>
      %847 = arith.mulf %846, %17 : vector<8x225xf32>
      %c5_458 = arith.constant 5 : index
      %c1_459 = arith.constant 1 : index
      %848 = memref.load %arg2[%c5_458, %c1_459] : memref<6x9xf32, #tpu.memory_space<smem>>
      %849 = vector.broadcast %848 : f32 to vector<8x225xf32>
      %850 = arith.mulf %849, %20 : vector<8x225xf32>
      %851 = arith.addf %847, %850 : vector<8x225xf32>
      %c5_460 = arith.constant 5 : index
      %c2_461 = arith.constant 2 : index
      %852 = memref.load %arg2[%c5_460, %c2_461] : memref<6x9xf32, #tpu.memory_space<smem>>
      %853 = vector.broadcast %852 : f32 to vector<8x225xf32>
      %854 = arith.mulf %853, %23 : vector<8x225xf32>
      %855 = arith.addf %851, %854 : vector<8x225xf32>
      %c5_462 = arith.constant 5 : index
      %c3_463 = arith.constant 3 : index
      %856 = memref.load %arg2[%c5_462, %c3_463] : memref<6x9xf32, #tpu.memory_space<smem>>
      %857 = vector.broadcast %856 : f32 to vector<8x225xf32>
      %858 = arith.mulf %857, %29 : vector<8x225xf32>
      %859 = arith.addf %855, %858 : vector<8x225xf32>
      %c5_464 = arith.constant 5 : index
      %c4_465 = arith.constant 4 : index
      %860 = memref.load %arg2[%c5_464, %c4_465] : memref<6x9xf32, #tpu.memory_space<smem>>
      %861 = vector.broadcast %860 : f32 to vector<8x225xf32>
      %862 = arith.mulf %861, %32 : vector<8x225xf32>
      %863 = arith.addf %859, %862 : vector<8x225xf32>
      %c5_466 = arith.constant 5 : index
      %c5_467 = arith.constant 5 : index
      %864 = memref.load %arg2[%c5_466, %c5_467] : memref<6x9xf32, #tpu.memory_space<smem>>
      %865 = vector.broadcast %864 : f32 to vector<8x225xf32>
      %866 = arith.mulf %865, %35 : vector<8x225xf32>
      %867 = arith.addf %863, %866 : vector<8x225xf32>
      %c5_468 = arith.constant 5 : index
      %c6_469 = arith.constant 6 : index
      %868 = memref.load %arg2[%c5_468, %c6_469] : memref<6x9xf32, #tpu.memory_space<smem>>
      %869 = vector.broadcast %868 : f32 to vector<8x225xf32>
      %870 = arith.mulf %869, %41 : vector<8x225xf32>
      %871 = arith.addf %867, %870 : vector<8x225xf32>
      %c5_470 = arith.constant 5 : index
      %c7_471 = arith.constant 7 : index
      %872 = memref.load %arg2[%c5_470, %c7_471] : memref<6x9xf32, #tpu.memory_space<smem>>
      %873 = vector.broadcast %872 : f32 to vector<8x225xf32>
      %874 = arith.mulf %873, %44 : vector<8x225xf32>
      %875 = arith.addf %871, %874 : vector<8x225xf32>
      %c5_472 = arith.constant 5 : index
      %c8_473 = arith.constant 8 : index
      %876 = memref.load %arg2[%c5_472, %c8_473] : memref<6x9xf32, #tpu.memory_space<smem>>
      %877 = vector.broadcast %876 : f32 to vector<8x225xf32>
      %878 = arith.mulf %877, %47 : vector<8x225xf32>
      %879 = arith.addf %875, %878 : vector<8x225xf32>
      %880 = arith.maximumf %844, %879 : vector<8x225xf32>
      %c5_474 = arith.constant 5 : index
      %c0_475 = arith.constant 0 : index
      %881 = memref.load %arg2[%c5_474, %c0_475] : memref<6x9xf32, #tpu.memory_space<smem>>
      %882 = vector.broadcast %881 : f32 to vector<8x225xf32>
      %883 = arith.mulf %882, %26 : vector<8x225xf32>
      %c5_476 = arith.constant 5 : index
      %c1_477 = arith.constant 1 : index
      %884 = memref.load %arg2[%c5_476, %c1_477] : memref<6x9xf32, #tpu.memory_space<smem>>
      %885 = vector.broadcast %884 : f32 to vector<8x225xf32>
      %886 = arith.mulf %885, %29 : vector<8x225xf32>
      %887 = arith.addf %883, %886 : vector<8x225xf32>
      %c5_478 = arith.constant 5 : index
      %c2_479 = arith.constant 2 : index
      %888 = memref.load %arg2[%c5_478, %c2_479] : memref<6x9xf32, #tpu.memory_space<smem>>
      %889 = vector.broadcast %888 : f32 to vector<8x225xf32>
      %890 = arith.mulf %889, %32 : vector<8x225xf32>
      %891 = arith.addf %887, %890 : vector<8x225xf32>
      %c5_480 = arith.constant 5 : index
      %c3_481 = arith.constant 3 : index
      %892 = memref.load %arg2[%c5_480, %c3_481] : memref<6x9xf32, #tpu.memory_space<smem>>
      %893 = vector.broadcast %892 : f32 to vector<8x225xf32>
      %894 = arith.mulf %893, %38 : vector<8x225xf32>
      %895 = arith.addf %891, %894 : vector<8x225xf32>
      %c5_482 = arith.constant 5 : index
      %c4_483 = arith.constant 4 : index
      %896 = memref.load %arg2[%c5_482, %c4_483] : memref<6x9xf32, #tpu.memory_space<smem>>
      %897 = vector.broadcast %896 : f32 to vector<8x225xf32>
      %898 = arith.mulf %897, %41 : vector<8x225xf32>
      %899 = arith.addf %895, %898 : vector<8x225xf32>
      %c5_484 = arith.constant 5 : index
      %c5_485 = arith.constant 5 : index
      %900 = memref.load %arg2[%c5_484, %c5_485] : memref<6x9xf32, #tpu.memory_space<smem>>
      %901 = vector.broadcast %900 : f32 to vector<8x225xf32>
      %902 = arith.mulf %901, %44 : vector<8x225xf32>
      %903 = arith.addf %899, %902 : vector<8x225xf32>
      %c5_486 = arith.constant 5 : index
      %c6_487 = arith.constant 6 : index
      %904 = memref.load %arg2[%c5_486, %c6_487] : memref<6x9xf32, #tpu.memory_space<smem>>
      %905 = vector.broadcast %904 : f32 to vector<8x225xf32>
      %906 = arith.mulf %905, %50 : vector<8x225xf32>
      %907 = arith.addf %903, %906 : vector<8x225xf32>
      %c5_488 = arith.constant 5 : index
      %c7_489 = arith.constant 7 : index
      %908 = memref.load %arg2[%c5_488, %c7_489] : memref<6x9xf32, #tpu.memory_space<smem>>
      %909 = vector.broadcast %908 : f32 to vector<8x225xf32>
      %910 = arith.mulf %909, %53 : vector<8x225xf32>
      %911 = arith.addf %907, %910 : vector<8x225xf32>
      %c5_490 = arith.constant 5 : index
      %c8_491 = arith.constant 8 : index
      %912 = memref.load %arg2[%c5_490, %c8_491] : memref<6x9xf32, #tpu.memory_space<smem>>
      %913 = vector.broadcast %912 : f32 to vector<8x225xf32>
      %914 = arith.mulf %913, %56 : vector<8x225xf32>
      %915 = arith.addf %911, %914 : vector<8x225xf32>
      %916 = arith.maximumf %880, %915 : vector<8x225xf32>
      %c5_492 = arith.constant 5 : index
      %c0_493 = arith.constant 0 : index
      %917 = memref.load %arg2[%c5_492, %c0_493] : memref<6x9xf32, #tpu.memory_space<smem>>
      %918 = vector.broadcast %917 : f32 to vector<8x225xf32>
      %919 = arith.mulf %918, %29 : vector<8x225xf32>
      %c5_494 = arith.constant 5 : index
      %c1_495 = arith.constant 1 : index
      %920 = memref.load %arg2[%c5_494, %c1_495] : memref<6x9xf32, #tpu.memory_space<smem>>
      %921 = vector.broadcast %920 : f32 to vector<8x225xf32>
      %922 = arith.mulf %921, %32 : vector<8x225xf32>
      %923 = arith.addf %919, %922 : vector<8x225xf32>
      %c5_496 = arith.constant 5 : index
      %c2_497 = arith.constant 2 : index
      %924 = memref.load %arg2[%c5_496, %c2_497] : memref<6x9xf32, #tpu.memory_space<smem>>
      %925 = vector.broadcast %924 : f32 to vector<8x225xf32>
      %926 = arith.mulf %925, %35 : vector<8x225xf32>
      %927 = arith.addf %923, %926 : vector<8x225xf32>
      %c5_498 = arith.constant 5 : index
      %c3_499 = arith.constant 3 : index
      %928 = memref.load %arg2[%c5_498, %c3_499] : memref<6x9xf32, #tpu.memory_space<smem>>
      %929 = vector.broadcast %928 : f32 to vector<8x225xf32>
      %930 = arith.mulf %929, %41 : vector<8x225xf32>
      %931 = arith.addf %927, %930 : vector<8x225xf32>
      %c5_500 = arith.constant 5 : index
      %c4_501 = arith.constant 4 : index
      %932 = memref.load %arg2[%c5_500, %c4_501] : memref<6x9xf32, #tpu.memory_space<smem>>
      %933 = vector.broadcast %932 : f32 to vector<8x225xf32>
      %934 = arith.mulf %933, %44 : vector<8x225xf32>
      %935 = arith.addf %931, %934 : vector<8x225xf32>
      %c5_502 = arith.constant 5 : index
      %c5_503 = arith.constant 5 : index
      %936 = memref.load %arg2[%c5_502, %c5_503] : memref<6x9xf32, #tpu.memory_space<smem>>
      %937 = vector.broadcast %936 : f32 to vector<8x225xf32>
      %938 = arith.mulf %937, %47 : vector<8x225xf32>
      %939 = arith.addf %935, %938 : vector<8x225xf32>
      %c5_504 = arith.constant 5 : index
      %c6_505 = arith.constant 6 : index
      %940 = memref.load %arg2[%c5_504, %c6_505] : memref<6x9xf32, #tpu.memory_space<smem>>
      %941 = vector.broadcast %940 : f32 to vector<8x225xf32>
      %942 = arith.mulf %941, %53 : vector<8x225xf32>
      %943 = arith.addf %939, %942 : vector<8x225xf32>
      %c5_506 = arith.constant 5 : index
      %c7_507 = arith.constant 7 : index
      %944 = memref.load %arg2[%c5_506, %c7_507] : memref<6x9xf32, #tpu.memory_space<smem>>
      %945 = vector.broadcast %944 : f32 to vector<8x225xf32>
      %946 = arith.mulf %945, %56 : vector<8x225xf32>
      %947 = arith.addf %943, %946 : vector<8x225xf32>
      %c5_508 = arith.constant 5 : index
      %c8_509 = arith.constant 8 : index
      %948 = memref.load %arg2[%c5_508, %c8_509] : memref<6x9xf32, #tpu.memory_space<smem>>
      %949 = vector.broadcast %948 : f32 to vector<8x225xf32>
      %950 = arith.mulf %949, %59 : vector<8x225xf32>
      %951 = arith.addf %947, %950 : vector<8x225xf32>
      %952 = arith.maximumf %916, %951 : vector<8x225xf32>
      %c5_510 = arith.constant 5 : index
      %953 = memref.load %arg3[%c5_510] : memref<6xf32, #tpu.memory_space<smem>>
      %954 = vector.broadcast %953 : f32 to vector<8x225xf32>
      %955 = arith.addf %952, %954 : vector<8x225xf32>
      %cst_511 = arith.constant 0.000000e+00 : f32
      %956 = vector.broadcast %cst_511 : f32 to vector<8x225xf32>
      %957 = arith.maximumf %955, %956 : vector<8x225xf32>
      %958 = arith.index_cast %11 : i32 to index
      %c1280 = arith.constant 1280 : index
      %959 = vector.load %arg7[%958, %c1280] : memref<128x1536xf32, #tpu.memory_space<vmem>>, vector<8x225xf32>
      tpu.vector_store %arg7[%958, %c1280], %957 {strides = array<i32>} : memref<128x1536xf32, #tpu.memory_space<vmem>>, vector<8x225xf32>,
    }
    %c16_i32_1 = arith.constant 16 : i32
    %c0_2 = arith.constant 0 : index
    %c0_3 = arith.constant 0 : index
    %3 = vector.load %arg7[%c0_2, %c0_3] : memref<128x1536xf32, #tpu.memory_space<vmem>>, vector<128x1536xf32>
    %c0_4 = arith.constant 0 : index
    %c0_5 = arith.constant 0 : index
    %4 = vector.load %arg4[%c0_4, %c0_5] : memref<1536x128xf32, #tpu.memory_space<vmem>>, vector<1536x128xf32>
    %cst_6 = arith.constant dense<0.000000e+00> : vector<128x128xf32>
    %5 = tpu.matmul %3, %4, %cst_6 {dimension_numbers = #tpu.dot_dimension_numbers<[1], [0], [0], [1], [0, 0, 1, 1], [], []>} : vector<128x1536xf32>, vector<1536x128xf32>, vector<128x128xf32> -> vector<128x128xf32>
    %c0_7 = arith.constant 0 : index
    %c0_8 = arith.constant 0 : index
    %6 = vector.load %arg5[%c0_7, %c0_8] : memref<1x128xf32, #tpu.memory_space<vmem>>, vector<1x128xf32>
    %7 = vector.broadcast %6 : vector<1x128xf32> to vector<128x128xf32>
    %8 = arith.addf %5, %7 : vector<128x128xf32>
    %c0_9 = arith.constant 0 : index
    %c0_10 = arith.constant 0 : index
    %9 = vector.load %arg6[%c0_9, %c0_10] : memref<128x128xf32, #tpu.memory_space<vmem>>, vector<128x128xf32>
    tpu.vector_store %arg6[%c0_9, %c0_10], %8 {strides = array<i32>} : memref<128x128xf32, #tpu.memory_space<vmem>>, vector<128x128xf32>,
    return
  }
  func.func @transform_0(%arg0: i32) -> (i32, i32, i32, i32, i32) {
    %c0_i32 = arith.constant 0 : i32
    %c0_i32_0 = arith.constant 0 : i32
    %c0_i32_1 = arith.constant 0 : i32
    %c0_i32_2 = arith.constant 0 : i32
    %c0_i32_3 = arith.constant 0 : i32
    return %arg0, %c0_i32, %c0_i32_0, %c0_i32_1, %c0_i32_2 : i32, i32, i32, i32, i32
  }
  func.func @transform_1(%arg0: i32) -> (i32, i32) {
    %c0_i32 = arith.constant 0 : i32
    %c0_i32_0 = arith.constant 0 : i32
    %c0_i32_1 = arith.constant 0 : i32
    return %c0_i32, %c0_i32_0 : i32, i32
  }
  func.func @transform_2(%arg0: i32) -> i32 {
    %c0_i32 = arith.constant 0 : i32
    %c0_i32_0 = arith.constant 0 : i32
    return %c0_i32 : i32
  }
  func.func @transform_3(%arg0: i32) -> (i32, i32) {
    %c0_i32 = arith.constant 0 : i32
    %c0_i32_0 = arith.constant 0 : i32
    %c0_i32_1 = arith.constant 0 : i32
    return %c0_i32, %c0_i32_0 : i32, i32
  }
  func.func @transform_4(%arg0: i32) -> (i32, i32) {
    %c0_i32 = arith.constant 0 : i32
    %c0_i32_0 = arith.constant 0 : i32
    %c0_i32_1 = arith.constant 0 : i32
    return %c0_i32, %c0_i32_0 : i32, i32
  }
  func.func @transform_5(%arg0: i32) -> (i32, i32) {
    %c0_i32 = arith.constant 0 : i32
    %c0_i32_0 = arith.constant 0 : i32
    return %arg0, %c0_i32 : i32, i32
  }
}

</mosaic_0001>

<llo_original>
// kernel: net_forward.1
$region0: #{net_forward.1}
  #allocation0 [shape = 'u32[]', space=smem, size = 0x4, offset = 0x4, fixed_abs, tag = 'smem constant byte address 0x4 - core index']
  #allocation1 [shape = 'u32[144,128]{1,0:T(1,128)}', space=vmem, size = 0x12000, scoped, tag = 'internal scratch']
  #allocation2 [shape = 'f32[128,1536]{1,0:T(8,128)}', space=vmem, size = 0xc0000, scoped, tag = 'scratch operand']
  %s0 = inlined_call_operand.vmem [shape: f32[1,4,4,128,225], index: 0, kind: input, shape index: {}]
  %s1 = inlined_call_operand.vmem [shape: f32[6,9], index: 1, kind: input, shape index: {}]
  %s2 = inlined_call_operand.vmem [shape: f32[6], index: 2, kind: input, shape index: {}]
  %s3 = inlined_call_operand.vmem [shape: f32[1536,128], index: 3, kind: input, shape index: {}]
  %s4 = inlined_call_operand.vmem [shape: f32[1,128], index: 4, kind: input, shape index: {}]
  %s5 = inlined_call_operand.vmem [shape: f32[128,128], index: 5, kind: output, shape index: {}]
  %s6 = sld [smem:[#allocation0]]
  $region45: #{net_forward.1} parent=0
    _
  %s8 = ssub.s32 1, %s6
  %s9 = scalar_select 0, %s8, %s6
  $region1: #{net_forward.1} parent=0
    #allocation3 [shape = 'u8[4096]{0}', space=smem, size = 0x1000, scoped, tag = 'input window, operand 1, single buffered']
    #allocation4 [shape = 's32[1]{0}', space=sflag, size = 0x4, scoped, tag = 'scoped memory for net_forward.1']
    #allocation5 [shape = 'u8[512]{0}', space=smem, size = 0x200, scoped, tag = 'input window, operand 2, single buffered']
    #allocation6 [shape = 's32[1]{0}', space=sflag, size = 0x4, scoped, tag = 'scoped memory for net_forward.1']
    %10 = vsyncpa [#allocation4], 0
    %11 = vsyncpa [#allocation6], 0
    // Predicated region
    $region2: #{net_forward.1} parent=1 // pred_check
      _
    $region3: #{net_forward.1} parent=1 // pred_check_branch
      %13 = sbr.rel (0) target = $region5
    $region4: #{net_forward.1} parent=1 // pred_region
      _
    $region5: #{net_forward.1} parent=1 // pred_fallthru
      _
    // Predicated region
    $region6: #{net_forward.1} parent=1 // pred_check
      _
    $region7: #{net_forward.1} parent=1 // pred_check_branch
      %15 = sbr.rel (0) target = $region9
    $region8: #{net_forward.1} parent=1 // pred_region
      %s17 = ssub.s32 128, 128
      %18 = vsyncadd [#allocation4], %s17
      %s20 = sshll.u32 %s1, 4
      %s21 = int_to_ptr.vmem [resolvable:$true] %s20
      %23 = dma.vmem_to_smem %s21, 128, [#allocation3], [#allocation4]
    $region9: #{net_forward.1} parent=1 // pred_fallthru
      _
    // Predicated region
    $region10: #{net_forward.1} parent=1 // pred_check
      _
    $region11: #{net_forward.1} parent=1 // pred_check_branch
      %25 = sbr.rel (0) target = $region13
    $region12: #{net_forward.1} parent=1 // pred_region
      %s27 = ssub.s32 16, 16
      %28 = vsyncadd [#allocation6], %s27
      %s30 = sshll.u32 %s2, 4
      %s31 = int_to_ptr.vmem [resolvable:$true] %s30
      %33 = dma.vmem_to_smem %s31, 16, [#allocation5], [#allocation6]
    $region13: #{net_forward.1} parent=1 // pred_fallthru
      _
    // Predicated region
    $region14: #{net_forward.1} parent=1 // pred_check
      _
    $region15: #{net_forward.1} parent=1 // pred_check_branch
      %35 = sbr.rel (0) target = $region17
    $region16: #{net_forward.1} parent=1 // pred_region
      _
    $region17: #{net_forward.1} parent=1 // pred_fallthru
      _
    // Predicated region
    $region18: #{net_forward.1} parent=1 // pred_check
      _
    $region19: #{net_forward.1} parent=1 // pred_check_branch
      %37 = sbr.rel (0) target = $region21
    $region20: #{net_forward.1} parent=1 // pred_region
      _
    $region21: #{net_forward.1} parent=1 // pred_fallthru
      _
    // Predicated region
    $region22: #{net_forward.1} parent=1 // pred_check
      _
    $region23: #{net_forward.1} parent=1 // pred_check_branch
      %39 = sbr.rel (0) target = $region25
    $region24: #{net_forward.1} parent=1 // pred_region
      %40 = dma.done [#allocation4], 128
    $region25: #{net_forward.1} parent=1 // pred_fallthru
      _
    // Predicated region
    $region26: #{net_forward.1} parent=1 // pred_check
      _
    $region27: #{net_forward.1} parent=1 // pred_check_branch
      %42 = sbr.rel (0) target = $region29
    $region28: #{net_forward.1} parent=1 // pred_region
      %43 = dma.done [#allocation6], 16
    $region29: #{net_forward.1} parent=1 // pred_fallthru
      _
    %44 = sfence
    %45 = vst [vmem:[#allocation2] sm:$0xff] 0.0
    %46 = vst [vmem:[#allocation2 + $0x8] sm:$0xff] 0.0
    %47 = vst [vmem:[#allocation2 + $0x10] sm:$0xff] 0.0
    %48 = vst [vmem:[#allocation2 + $0x18] sm:$0xff] 0.0
    %49 = vst [vmem:[#allocation2 + $0x20] sm:$0xff] 0.0
    %50 = vst [vmem:[#allocation2 + $0x28] sm:$0xff] 0.0
    %51 = vst [vmem:[#allocation2 + $0x30] sm:$0xff] 0.0
    %52 = vst [vmem:[#allocation2 + $0x38] sm:$0xff] 0.0
    %53 = vst [vmem:[#allocation2 + $0x40] sm:$0xff] 0.0
    %54 = vst [vmem:[#allocation2 + $0x48] sm:$0xff] 0.0
    %55 = vst [vmem:[#allocation2 + $0x50] sm:$0xff] 0.0
    %56 = vst [vmem:[#allocation2 + $0x58] sm:$0xff] 0.0
    %57 = vst [vmem:[#allocation2 + $0x60] sm:$0xff] 0.0
    %58 = vst [vmem:[#allocation2 + $0x68] sm:$0xff] 0.0
    %59 = vst [vmem:[#allocation2 + $0x70] sm:$0xff] 0.0
    %60 = vst [vmem:[#allocation2 + $0x78] sm:$0xff] 0.0
    %61 = vst [vmem:[#allocation2 + $0x80] sm:$0xff] 0.0
    %62 = vst [vmem:[#allocation2 + $0x88] sm:$0xff] 0.0
    %63 = vst [vmem:[#allocation2 + $0x90] sm:$0xff] 0.0
    %64 = vst [vmem:[#allocation2 + $0x98] sm:$0xff] 0.0
    %65 = vst [vmem:[#allocation2 + $0xa0] sm:$0xff] 0.0
    %66 = vst [vmem:[#allocation2 + $0xa8] sm:$0xff] 0.0
    %67 = vst [vmem:[#allocation2 + $0xb0] sm:$0xff] 0.0
    %68 = vst [vmem:[#allocation2 + $0xb8] sm:$0xff] 0.0
    %69 = vst [vmem:[#allocation2 + $0xc0] sm:$0xff] 0.0
    %70 = vst [vmem:[#allocation2 + $0xc8] sm:$0xff] 0.0
    %71 = vst [vmem:[#allocation2 + $0xd0] sm:$0xff] 0.0
    %72 = vst [vmem:[#allocation2 + $0xd8] sm:$0xff] 0.0
    %73 = vst [vmem:[#allocation2 + $0xe0] sm:$0xff] 0.0
    %74 = vst [vmem:[#allocation2 + $0xe8] sm:$0xff] 0.0
    %75 = vst [vmem:[#allocation2 + $0xf0] sm:$0xff] 0.0
    %76 = vst [vmem:[#allocation2 + $0xf8] sm:$0xff] 0.0
    %77 = vst [vmem:[#allocation2 + $0x100] sm:$0xff] 0.0
    %78 = vst [vmem:[#allocation2 + $0x108] sm:$0xff] 0.0
    %79 = vst [vmem:[#allocation2 + $0x110] sm:$0xff] 0.0
    %80 = vst [vmem:[#allocation2 + $0x118] sm:$0xff] 0.0
    %81 = vst [vmem:[#allocation2 + $0x120] sm:$0xff] 0.0
    %82 = vst [vmem:[#allocation2 + $0x128] sm:$0xff] 0.0
    %83 = vst [vmem:[#allocation2 + $0x130] sm:$0xff] 0.0
    %84 = vst [vmem:[#allocation2 + $0x138] sm:$0xff] 0.0
    %85 = vst [vmem:[#allocation2 + $0x140] sm:$0xff] 0.0
    %86 = vst [vmem:[#allocation2 + $0x148] sm:$0xff] 0.0
    %87 = vst [vmem:[#allocation2 + $0x150] sm:$0xff] 0.0
    %88 = vst [vmem:[#allocation2 + $0x158] sm:$0xff] 0.0
    %89 = vst [vmem:[#allocation2 + $0x160] sm:$0xff] 0.0
    %90 = vst [vmem:[#allocation2 + $0x168] sm:$0xff] 0.0
    %91 = vst [vmem:[#allocation2 + $0x170] sm:$0xff] 0.0
    %92 = vst [vmem:[#allocation2 + $0x178] sm:$0xff] 0.0
    %93 = vst [vmem:[#allocation2 + $0x180] sm:$0xff] 0.0
    %94 = vst [vmem:[#allocation2 + $0x188] sm:$0xff] 0.0
    %95 = vst [vmem:[#allocation2 + $0x190] sm:$0xff] 0.0
    %96 = vst [vmem:[#allocation2 + $0x198] sm:$0xff] 0.0
    %97 = vst [vmem:[#allocation2 + $0x1a0] sm:$0xff] 0.0
    %98 = vst [vmem:[#allocation2 + $0x1a8] sm:$0xff] 0.0
    %99 = vst [vmem:[#allocation2 + $0x1b0] sm:$0xff] 0.0
    %100 = vst [vmem:[#allocation2 + $0x1b8] sm:$0xff] 0.0
    %101 = vst [vmem:[#allocation2 + $0x1c0] sm:$0xff] 0.0
    %102 = vst [vmem:[#allocation2 + $0x1c8] sm:$0xff] 0.0
    %103 = vst [vmem:[#allocation2 + $0x1d0] sm:$0xff] 0.0
    %104 = vst [vmem:[#allocation2 + $0x1d8] sm:$0xff] 0.0
    %105 = vst [vmem:[#allocation2 + $0x1e0] sm:$0xff] 0.0
    %106 = vst [vmem:[#allocation2 + $0x1e8] sm:$0xff] 0.0
    %107 = vst [vmem:[#allocation2 + $0x1f0] sm:$0xff] 0.0
    %108 = vst [vmem:[#allocation2 + $0x1f8] sm:$0xff] 0.0
    %109 = vst [vmem:[#allocation2 + $0x200] sm:$0xff] 0.0
    %110 = vst [vmem:[#allocation2 + $0x208] sm:$0xff] 0.0
    %111 = vst [vmem:[#allocation2 + $0x210] sm:$0xff] 0.0
    %112 = vst [vmem:[#allocation2 + $0x218] sm:$0xff] 0.0
    %113 = vst [vmem:[#allocation2 + $0x220] sm:$0xff] 0.0
    %114 = vst [vmem:[#allocation2 + $0x228] sm:$0xff] 0.0
    %115 = vst [vmem:[#allocation2 + $0x230] sm:$0xff] 0.0
    %116 = vst [vmem:[#allocation2 + $0x238] sm:$0xff] 0.0
    %117 = vst [vmem:[#allocation2 + $0x240] sm:$0xff] 0.0
    %118 = vst [vmem:[#allocation2 + $0x248] sm:$0xff] 0.0
    %119 = vst [vmem:[#allocation2 + $0x250] sm:$0xff] 0.0
    %120 = vst [vmem:[#allocation2 + $0x258] sm:$0xff] 0.0
    %121 = vst [vmem:[#allocation2 + $0x260] sm:$0xff] 0.0
    %122 = vst [vmem:[#allocation2 + $0x268] sm:$0xff] 0.0
    %123 = vst [vmem:[#allocation2 + $0x270] sm:$0xff] 0.0
    %124 = vst [vmem:[#allocation2 + $0x278] sm:$0xff] 0.0
    %125 = vst [vmem:[#allocation2 + $0x280] sm:$0xff] 0.0
    %126 = vst [vmem:[#allocation2 + $0x288] sm:$0xff] 0.0
    %127 = vst [vmem:[#allocation2 + $0x290] sm:$0xff] 0.0
    %128 = vst [vmem:[#allocation2 + $0x298] sm:$0xff] 0.0
    %129 = vst [vmem:[#allocation2 + $0x2a0] sm:$0xff] 0.0
    %130 = vst [vmem:[#allocation2 + $0x2a8] sm:$0xff] 0.0
    %131 = vst [vmem:[#allocation2 + $0x2b0] sm:$0xff] 0.0
    %132 = vst [vmem:[#allocation2 + $0x2b8] sm:$0xff] 0.0
    %133 = vst [vmem:[#allocation2 + $0x2c0] sm:$0xff] 0.0
    %134 = vst [vmem:[#allocation2 + $0x2c8] sm:$0xff] 0.0
    %135 = vst [vmem:[#allocation2 + $0x2d0] sm:$0xff] 0.0
    %136 = vst [vmem:[#allocation2 + $0x2d8] sm:$0xff] 0.0
    %137 = vst [vmem:[#allocation2 + $0x2e0] sm:$0xff] 0.0
    %138 = vst [vmem:[#allocation2 + $0x2e8] sm:$0xff] 0.0
    %139 = vst [vmem:[#allocation2 + $0x2f0] sm:$0xff] 0.0
    %140 = vst [vmem:[#allocation2 + $0x2f8] sm:$0xff] 0.0
    %141 = vst [vmem:[#allocation2 + $0x300] sm:$0xff] 0.0
    %142 = vst [vmem:[#allocation2 + $0x308] sm:$0xff] 0.0
    %143 = vst [vmem:[#allocation2 + $0x310] sm:$0xff] 0.0
    %144 = vst [vmem:[#allocation2 + $0x318] sm:$0xff] 0.0
    %145 = vst [vmem:[#allocation2 + $0x320] sm:$0xff] 0.0
    %146 = vst [vmem:[#allocation2 + $0x328] sm:$0xff] 0.0
    %147 = vst [vmem:[#allocation2 + $0x330] sm:$0xff] 0.0
    %148 = vst [vmem:[#allocation2 + $0x338] sm:$0xff] 0.0
    %149 = vst [vmem:[#allocation2 + $0x340] sm:$0xff] 0.0
    %150 = vst [vmem:[#allocation2 + $0x348] sm:$0xff] 0.0
    %151 = vst [vmem:[#allocation2 + $0x350] sm:$0xff] 0.0
    %152 = vst [vmem:[#allocation2 + $0x358] sm:$0xff] 0.0
    %153 = vst [vmem:[#allocation2 + $0x360] sm:$0xff] 0.0
    %154 = vst [vmem:[#allocation2 + $0x368] sm:$0xff] 0.0
    %155 = vst [vmem:[#allocation2 + $0x370] sm:$0xff] 0.0
    %156 = vst [vmem:[#allocation2 + $0x378] sm:$0xff] 0.0
    %157 = vst [vmem:[#allocation2 + $0x380] sm:$0xff] 0.0
    %158 = vst [vmem:[#allocation2 + $0x388] sm:$0xff] 0.0
    %159 = vst [vmem:[#allocation2 + $0x390] sm:$0xff] 0.0
    %160 = vst [vmem:[#allocation2 + $0x398] sm:$0xff] 0.0
    %161 = vst [vmem:[#allocation2 + $0x3a0] sm:$0xff] 0.0
    %162 = vst [vmem:[#allocation2 + $0x3a8] sm:$0xff] 0.0
    %163 = vst [vmem:[#allocation2 + $0x3b0] sm:$0xff] 0.0
    %164 = vst [vmem:[#allocation2 + $0x3b8] sm:$0xff] 0.0
    %165 = vst [vmem:[#allocation2 + $0x3c0] sm:$0xff] 0.0
    %166 = vst [vmem:[#allocation2 + $0x3c8] sm:$0xff] 0.0
    %167 = vst [vmem:[#allocation2 + $0x3d0] sm:$0xff] 0.0
    %168 = vst [vmem:[#allocation2 + $0x3d8] sm:$0xff] 0.0
    %169 = vst [vmem:[#allocation2 + $0x3e0] sm:$0xff] 0.0
    %170 = vst [vmem:[#allocation2 + $0x3e8] sm:$0xff] 0.0
    %171 = vst [vmem:[#allocation2 + $0x3f0] sm:$0xff] 0.0
    %172 = vst [vmem:[#allocation2 + $0x3f8] sm:$0xff] 0.0
    %173 = vst [vmem:[#allocation2 + $0x400] sm:$0xff] 0.0
    %174 = vst [vmem:[#allocation2 + $0x408] sm:$0xff] 0.0
    %175 = vst [vmem:[#allocation2 + $0x410] sm:$0xff] 0.0
    %176 = vst [vmem:[#allocation2 + $0x418] sm:$0xff] 0.0
    %177 = vst [vmem:[#allocation2 + $0x420] sm:$0xff] 0.0
    %178 = vst [vmem:[#allocation2 + $0x428] sm:$0xff] 0.0
    %179 = vst [vmem:[#allocation2 + $0x430] sm:$0xff] 0.0
    %180 = vst [vmem:[#allocation2 + $0x438] sm:$0xff] 0.0
    %181 = vst [vmem:[#allocation2 + $0x440] sm:$0xff] 0.0
    %182 = vst [vmem:[#allocation2 + $0x448] sm:$0xff] 0.0
    %183 = vst [vmem:[#allocation2 + $0x450] sm:$0xff] 0.0
    %184 = vst [vmem:[#allocation2 + $0x458] sm:$0xff] 0.0
    %185 = vst [vmem:[#allocation2 + $0x460] sm:$0xff] 0.0
    %186 = vst [vmem:[#allocation2 + $0x468] sm:$0xff] 0.0
    %187 = vst [vmem:[#allocation2 + $0x470] sm:$0xff] 0.0
    %188 = vst [vmem:[#allocation2 + $0x478] sm:$0xff] 0.0
    %189 = vst [vmem:[#allocation2 + $0x480] sm:$0xff] 0.0
    %190 = vst [vmem:[#allocation2 + $0x488] sm:$0xff] 0.0
    %191 = vst [vmem:[#allocation2 + $0x490] sm:$0xff] 0.0
    %192 = vst [vmem:[#allocation2 + $0x498] sm:$0xff] 0.0
    %193 = vst [vmem:[#allocation2 + $0x4a0] sm:$0xff] 0.0
    %194 = vst [vmem:[#allocation2 + $0x4a8] sm:$0xff] 0.0
    %195 = vst [vmem:[#allocation2 + $0x4b0] sm:$0xff] 0.0
    %196 = vst [vmem:[#allocation2 + $0x4b8] sm:$0xff] 0.0
    %197 = vst [vmem:[#allocation2 + $0x4c0] sm:$0xff] 0.0
    %198 = vst [vmem:[#allocation2 + $0x4c8] sm:$0xff] 0.0
    %199 = vst [vmem:[#allocation2 + $0x4d0] sm:$0xff] 0.0
    %200 = vst [vmem:[#allocation2 + $0x4d8] sm:$0xff] 0.0
    %201 = vst [vmem:[#allocation2 + $0x4e0] sm:$0xff] 0.0
    %202 = vst [vmem:[#allocation2 + $0x4e8] sm:$0xff] 0.0
    %203 = vst [vmem:[#allocation2 + $0x4f0] sm:$0xff] 0.0
    %204 = vst [vmem:[#allocation2 + $0x4f8] sm:$0xff] 0.0
    %205 = vst [vmem:[#allocation2 + $0x500] sm:$0xff] 0.0
    %206 = vst [vmem:[#allocation2 + $0x508] sm:$0xff] 0.0
    %207 = vst [vmem:[#allocation2 + $0x510] sm:$0xff] 0.0
    %208 = vst [vmem:[#allocation2 + $0x518] sm:$0xff] 0.0
    %209 = vst [vmem:[#allocation2 + $0x520] sm:$0xff] 0.0
    %210 = vst [vmem:[#allocation2 + $0x528] sm:$0xff] 0.0
    %211 = vst [vmem:[#allocation2 + $0x530] sm:$0xff] 0.0
    %212 = vst [vmem:[#allocation2 + $0x538] sm:$0xff] 0.0
    %213 = vst [vmem:[#allocation2 + $0x540] sm:$0xff] 0.0
    %214 = vst [vmem:[#allocation2 + $0x548] sm:$0xff] 0.0
    %215 = vst [vmem:[#allocation2 + $0x550] sm:$0xff] 0.0
    %216 = vst [vmem:[#allocation2 + $0x558] sm:$0xff] 0.0
    %217 = vst [vmem:[#allocation2 + $0x560] sm:$0xff] 0.0
    %218 = vst [vmem:[#allocation2 + $0x568] sm:$0xff] 0.0
    %219 = vst [vmem:[#allocation2 + $0x570] sm:$0xff] 0.0
    %220 = vst [vmem:[#allocation2 + $0x578] sm:$0xff] 0.0
    %221 = vst [vmem:[#allocation2 + $0x580] sm:$0xff] 0.0
    %222 = vst [vmem:[#allocation2 + $0x588] sm:$0xff] 0.0
    %223 = vst [vmem:[#allocation2 + $0x590] sm:$0xff] 0.0
    %224 = vst [vmem:[#allocation2 + $0x598] sm:$0xff] 0.0
    %225 = vst [vmem:[#allocation2 + $0x5a0] sm:$0xff] 0.0
    %226 = vst [vmem:[#allocation2 + $0x5a8] sm:$0xff] 0.0
    %227 = vst [vmem:[#allocation2 + $0x5b0] sm:$0xff] 0.0
    %228 = vst [vmem:[#allocation2 + $0x5b8] sm:$0xff] 0.0
    %229 = vst [vmem:[#allocation2 + $0x5c0] sm:$0xff] 0.0
    %230 = vst [vmem:[#allocation2 + $0x5c8] sm:$0xff] 0.0
    %231 = vst [vmem:[#allocation2 + $0x5d0] sm:$0xff] 0.0
    %232 = vst [vmem:[#allocation2 + $0x5d8] sm:$0xff] 0.0
    %233 = vst [vmem:[#allocation2 + $0x5e0] sm:$0xff] 0.0
    %234 = vst [vmem:[#allocation2 + $0x5e8] sm:$0xff] 0.0
    %235 = vst [vmem:[#allocation2 + $0x5f0] sm:$0xff] 0.0
    %236 = vst [vmem:[#allocation2 + $0x5f8] sm:$0xff] 0.0
    loop: start=0, step=1, limit=16
    $region30: #{net_forward.1} parent=1 // loop_pre_header
      _
    $region31: #{net_forward.1} parent=1 // loop_header
      %s238 = sphi 0, %s242
      %p239 = scmp.ge.s32.totalorder %s238, 16
    $region32: #{net_forward.1} parent=1 // loop_header_branch
      %241 = sbr.rel (%p239) target = $region36
    $region33: #{net_forward.1} parent=1 // loop_body
      %s243 = smul.u32 %s238, 8
      %s244 = sshra.s32 %s243, 3
      %s245 = sand.u32 %s243, 7
      %s246 = smul.u32 %s244, 2
      %s247 = smul.addr %s246, 8
      %s248 = scalar_lea.vmem %s0, %s247
      %v249 = vld [vmem:[%s248] sm:$0xff]
      %v250 = vld [vmem:[%s248 + $0x8] sm:$0xff]
      %s251 = sadd.s32 %s246, 32
      %s252 = smul.addr %s251, 8
      %s253 = scalar_lea.vmem %s0, %s252
      %v254 = vld [vmem:[%s253] sm:$0xff]
      %v255 = vld [vmem:[%s253 + $0x8] sm:$0xff]
      %s256 = sadd.s32 %s246, 64
      %s257 = smul.addr %s256, 8
      %s258 = scalar_lea.vmem %s0, %s257
      %v259 = vld [vmem:[%s258] sm:$0xff]
      %v260 = vld [vmem:[%s258 + $0x8] sm:$0xff]
      %s261 = sadd.s32 %s246, 96
      %s262 = smul.addr %s261, 8
      %s263 = scalar_lea.vmem %s0, %s262
      %v264 = vld [vmem:[%s263] sm:$0xff]
      %v265 = vld [vmem:[%s263 + $0x8] sm:$0xff]
      %s266 = sadd.s32 %s246, 128
      %s267 = smul.addr %s266, 8
      %s268 = scalar_lea.vmem %s0, %s267
      %v269 = vld [vmem:[%s268] sm:$0xff]
      %v270 = vld [vmem:[%s268 + $0x8] sm:$0xff]
      %s271 = sadd.s32 %s251, 128
      %s272 = smul.addr %s271, 8
      %s273 = scalar_lea.vmem %s0, %s272
      %v274 = vld [vmem:[%s273] sm:$0xff]
      %v275 = vld [vmem:[%s273 + $0x8] sm:$0xff]
      %s276 = sadd.s32 %s256, 128
      %s277 = smul.addr %s276, 8
      %s278 = scalar_lea.vmem %s0, %s277
      %v279 = vld [vmem:[%s278] sm:$0xff]
      %v280 = vld [vmem:[%s278 + $0x8] sm:$0xff]
      %s281 = sadd.s32 %s261, 128
      %s282 = smul.addr %s281, 8
      %s283 = scalar_lea.vmem %s0, %s282
      %v284 = vld [vmem:[%s283] sm:$0xff]
      %v285 = vld [vmem:[%s283 + $0x8] sm:$0xff]
      %s286 = sadd.s32 %s246, 256
      %s287 = smul.addr %s286, 8
      %s288 = scalar_lea.vmem %s0, %s287
      %v289 = vld [vmem:[%s288] sm:$0xff]
      %v290 = vld [vmem:[%s288 + $0x8] sm:$0xff]
      %s291 = sadd.s32 %s251, 256
      %s292 = smul.addr %s291, 8
      %s293 = scalar_lea.vmem %s0, %s292
      %v294 = vld [vmem:[%s293] sm:$0xff]
      %v295 = vld [vmem:[%s293 + $0x8] sm:$0xff]
      %s296 = sadd.s32 %s256, 256
      %s297 = smul.addr %s296, 8
      %s298 = scalar_lea.vmem %s0, %s297
      %v299 = vld [vmem:[%s298] sm:$0xff]
      %v300 = vld [vmem:[%s298 + $0x8] sm:$0xff]
      %s301 = sadd.s32 %s261, 256
      %s302 = smul.addr %s301, 8
      %s303 = scalar_lea.vmem %s0, %s302
      %v304 = vld [vmem:[%s303] sm:$0xff]
      %v305 = vld [vmem:[%s303 + $0x8] sm:$0xff]
      %s306 = sadd.s32 %s246, 384
      %s307 = smul.addr %s306, 8
      %s308 = scalar_lea.vmem %s0, %s307
      %v309 = vld [vmem:[%s308] sm:$0xff]
      %v310 = vld [vmem:[%s308 + $0x8] sm:$0xff]
      %s311 = sadd.s32 %s251, 384
      %s312 = smul.addr %s311, 8
      %s313 = scalar_lea.vmem %s0, %s312
      %v314 = vld [vmem:[%s313] sm:$0xff]
      %v315 = vld [vmem:[%s313 + $0x8] sm:$0xff]
      %s316 = sadd.s32 %s256, 384
      %s317 = smul.addr %s316, 8
      %s318 = scalar_lea.vmem %s0, %s317
      %v319 = vld [vmem:[%s318] sm:$0xff]
      %v320 = vld [vmem:[%s318 + $0x8] sm:$0xff]
      %s321 = sadd.s32 %s261, 384
      %s322 = smul.addr %s321, 8
      %s323 = scalar_lea.vmem %s0, %s322
      %v324 = vld [vmem:[%s323] sm:$0xff]
      %v325 = vld [vmem:[%s323 + $0x8] sm:$0xff]
      %s326 = sld [smem:[#allocation3]]
      %v327 = vstv %s326
      %v328 = vmul.f32 %v327, %v249
      %v329 = vmul.f32 %v327, %v250
      %s330 = sld [smem:[#allocation3 + $0x1]]
      %v331 = vstv %s330
      %v332 = vmul.f32 %v331, %v254
      %v333 = vmul.f32 %v331, %v255
      %v334 = vadd.f32 %v328, %v332
      %v335 = vadd.f32 %v329, %v333
      %s336 = sld [smem:[#allocation3 + $0x2]]
      %v337 = vstv %s336
      %v338 = vmul.f32 %v337, %v259
      %v339 = vmul.f32 %v337, %v260
      %v340 = vadd.f32 %v334, %v338
      %v341 = vadd.f32 %v335, %v339
      %s342 = sld [smem:[#allocation3 + $0x3]]
      %v343 = vstv %s342
      %v344 = vmul.f32 %v343, %v269
      %v345 = vmul.f32 %v343, %v270
      %v346 = vadd.f32 %v340, %v344
      %v347 = vadd.f32 %v341, %v345
      %s348 = sld [smem:[#allocation3 + $0x4]]
      %v349 = vstv %s348
      %v350 = vmul.f32 %v349, %v274
      %v351 = vmul.f32 %v349, %v275
      %v352 = vadd.f32 %v346, %v350
      %v353 = vadd.f32 %v347, %v351
      %s354 = sld [smem:[#allocation3 + $0x5]]
      %v355 = vstv %s354
      %v356 = vmul.f32 %v355, %v279
      %v357 = vmul.f32 %v355, %v280
      %v358 = vadd.f32 %v352, %v356
      %v359 = vadd.f32 %v353, %v357
      %s360 = sld [smem:[#allocation3 + $0x6]]
      %v361 = vstv %s360
      %v362 = vmul.f32 %v361, %v289
      %v363 = vmul.f32 %v361, %v290
      %v364 = vadd.f32 %v358, %v362
      %v365 = vadd.f32 %v359, %v363
      %s366 = sld [smem:[#allocation3 + $0x7]]
      %v367 = vstv %s366
      %v368 = vmul.f32 %v367, %v294
      %v369 = vmul.f32 %v367, %v295
      %v370 = vadd.f32 %v364, %v368
      %v371 = vadd.f32 %v365, %v369
      %s372 = sld [smem:[#allocation3 + $0x8]]
      %v373 = vstv %s372
      %v374 = vmul.f32 %v373, %v299
      %v375 = vmul.f32 %v373, %v300
      %v376 = vadd.f32 %v370, %v374
      %v377 = vadd.f32 %v371, %v375
      %v378 = vmul.f32 %v327, %v254
      %v379 = vmul.f32 %v327, %v255
      %v380 = vmul.f32 %v331, %v259
      %v381 = vmul.f32 %v331, %v260
      %v382 = vadd.f32 %v378, %v380
      %v383 = vadd.f32 %v379, %v381
      %v384 = vmul.f32 %v337, %v264
      %v385 = vmul.f32 %v337, %v265
      %v386 = vadd.f32 %v382, %v384
      %v387 = vadd.f32 %v383, %v385
      %v388 = vmul.f32 %v343, %v274
      %v389 = vmul.f32 %v343, %v275
      %v390 = vadd.f32 %v386, %v388
      %v391 = vadd.f32 %v387, %v389
      %v392 = vmul.f32 %v349, %v279
      %v393 = vmul.f32 %v349, %v280
      %v394 = vadd.f32 %v390, %v392
      %v395 = vadd.f32 %v391, %v393
      %v396 = vmul.f32 %v355, %v284
      %v397 = vmul.f32 %v355, %v285
      %v398 = vadd.f32 %v394, %v396
      %v399 = vadd.f32 %v395, %v397
      %v400 = vmul.f32 %v361, %v294
      %v401 = vmul.f32 %v361, %v295
      %v402 = vadd.f32 %v398, %v400
      %v403 = vadd.f32 %v399, %v401
      %v404 = vmul.f32 %v367, %v299
      %v405 = vmul.f32 %v367, %v300
      %v406 = vadd.f32 %v402, %v404
      %v407 = vadd.f32 %v403, %v405
      %v408 = vmul.f32 %v373, %v304
      %v409 = vmul.f32 %v373, %v305
      %v410 = vadd.f32 %v406, %v408
      %v411 = vadd.f32 %v407, %v409
      %v412 = vmax.f32 %v376, %v410
      %v413 = vmax.f32 %v377, %v411
      %v414 = vmul.f32 %v327, %v269
      %v415 = vmul.f32 %v327, %v270
      %v416 = vmul.f32 %v331, %v274
      %v417 = vmul.f32 %v331, %v275
      %v418 = vadd.f32 %v414, %v416
      %v419 = vadd.f32 %v415, %v417
      %v420 = vmul.f32 %v337, %v279
      %v421 = vmul.f32 %v337, %v280
      %v422 = vadd.f32 %v418, %v420
      %v423 = vadd.f32 %v419, %v421
      %v424 = vmul.f32 %v343, %v289
      %v425 = vmul.f32 %v343, %v290
      %v426 = vadd.f32 %v422, %v424
      %v427 = vadd.f32 %v423, %v425
      %v428 = vmul.f32 %v349, %v294
      %v429 = vmul.f32 %v349, %v295
      %v430 = vadd.f32 %v426, %v428
      %v431 = vadd.f32 %v427, %v429
      %v432 = vmul.f32 %v355, %v299
      %v433 = vmul.f32 %v355, %v300
      %v434 = vadd.f32 %v430, %v432
      %v435 = vadd.f32 %v431, %v433
      %v436 = vmul.f32 %v361, %v309
      %v437 = vmul.f32 %v361, %v310
      %v438 = vadd.f32 %v434, %v436
      %v439 = vadd.f32 %v435, %v437
      %v440 = vmul.f32 %v367, %v314
      %v441 = vmul.f32 %v367, %v315
      %v442 = vadd.f32 %v438, %v440
      %v443 = vadd.f32 %v439, %v441
      %v444 = vmul.f32 %v373, %v319
      %v445 = vmul.f32 %v373, %v320
      %v446 = vadd.f32 %v442, %v444
      %v447 = vadd.f32 %v443, %v445
      %v448 = vmax.f32 %v412, %v446
      %v449 = vmax.f32 %v413, %v447
      %v450 = vmul.f32 %v327, %v274
      %v451 = vmul.f32 %v327, %v275
      %v452 = vmul.f32 %v331, %v279
      %v453 = vmul.f32 %v331, %v280
      %v454 = vadd.f32 %v450, %v452
      %v455 = vadd.f32 %v451, %v453
      %v456 = vmul.f32 %v337, %v284
      %v457 = vmul.f32 %v337, %v285
      %v458 = vadd.f32 %v454, %v456
      %v459 = vadd.f32 %v455, %v457
      %v460 = vmul.f32 %v343, %v294
      %v461 = vmul.f32 %v343, %v295
      %v462 = vadd.f32 %v458, %v460
      %v463 = vadd.f32 %v459, %v461
      %v464 = vmul.f32 %v349, %v299
      %v465 = vmul.f32 %v349, %v300
      %v466 = vadd.f32 %v462, %v464
      %v467 = vadd.f32 %v463, %v465
      %v468 = vmul.f32 %v355, %v304
      %v469 = vmul.f32 %v355, %v305
      %v470 = vadd.f32 %v466, %v468
      %v471 = vadd.f32 %v467, %v469
      %v472 = vmul.f32 %v361, %v314
      %v473 = vmul.f32 %v361, %v315
      %v474 = vadd.f32 %v470, %v472
      %v475 = vadd.f32 %v471, %v473
      %v476 = vmul.f32 %v367, %v319
      %v477 = vmul.f32 %v367, %v320
      %v478 = vadd.f32 %v474, %v476
      %v479 = vadd.f32 %v475, %v477
      %v480 = vmul.f32 %v373, %v324
      %v481 = vmul.f32 %v373, %v325
      %v482 = vadd.f32 %v478, %v480
      %v483 = vadd.f32 %v479, %v481
      %v484 = vmax.f32 %v448, %v482
      %v485 = vmax.f32 %v449, %v483
      %s486 = sld [smem:[#allocation5]]
      %v487 = vstv %s486
      %v488 = vadd.f32 %v484, %v487
      %v489 = vadd.f32 %v485, %v487
      %v490 = vmax.f32 %v488, 0.0
      %v491 = vmax.f32 %v489, 0.0
      %s492 = smul.u32 %s244, 12
      %s493 = smul.addr %s492, 8
      %s494 = scalar_lea.vmem [#allocation2], %s493
      %495 = vst [vmem:[%s494] sm:$0xff] %v490
      %vm496 = vcmask 793600
      %497 = vst.msk [vmem:[%s494 + $0x8] sm:$0xff] %vm496, %v491
      %s498 = sld [smem:[#allocation3 + $0x80]]
      %v499 = vstv %s498
      %v500 = vmul.f32 %v499, %v249
      %v501 = vmul.f32 %v499, %v250
      %s502 = sld [smem:[#allocation3 + $0x81]]
      %v503 = vstv %s502
      %v504 = vmul.f32 %v503, %v254
      %v505 = vmul.f32 %v503, %v255
      %v506 = vadd.f32 %v500, %v504
      %v507 = vadd.f32 %v501, %v505
      %s508 = sld [smem:[#allocation3 + $0x82]]
      %v509 = vstv %s508
      %v510 = vmul.f32 %v509, %v259
      %v511 = vmul.f32 %v509, %v260
      %v512 = vadd.f32 %v506, %v510
      %v513 = vadd.f32 %v507, %v511
      %s514 = sld [smem:[#allocation3 + $0x83]]
      %v515 = vstv %s514
      %v516 = vmul.f32 %v515, %v269
      %v517 = vmul.f32 %v515, %v270
      %v518 = vadd.f32 %v512, %v516
      %v519 = vadd.f32 %v513, %v517
      %s520 = sld [smem:[#allocation3 + $0x84]]
      %v521 = vstv %s520
      %v522 = vmul.f32 %v521, %v274
      %v523 = vmul.f32 %v521, %v275
      %v524 = vadd.f32 %v518, %v522
      %v525 = vadd.f32 %v519, %v523
      %s526 = sld [smem:[#allocation3 + $0x85]]
      %v527 = vstv %s526
      %v528 = vmul.f32 %v527, %v279
      %v529 = vmul.f32 %v527, %v280
      %v530 = vadd.f32 %v524, %v528
      %v531 = vadd.f32 %v525, %v529
      %s532 = sld [smem:[#allocation3 + $0x86]]
      %v533 = vstv %s532
      %v534 = vmul.f32 %v533, %v289
      %v535 = vmul.f32 %v533, %v290
      %v536 = vadd.f32 %v530, %v534
      %v537 = vadd.f32 %v531, %v535
      %s538 = sld [smem:[#allocation3 + $0x87]]
      %v539 = vstv %s538
      %v540 = vmul.f32 %v539, %v294
      %v541 = vmul.f32 %v539, %v295
      %v542 = vadd.f32 %v536, %v540
      %v543 = vadd.f32 %v537, %v541
      %s544 = sld [smem:[#allocation3 + $0x88]]
      %v545 = vstv %s544
      %v546 = vmul.f32 %v545, %v299
      %v547 = vmul.f32 %v545, %v300
      %v548 = vadd.f32 %v542, %v546
      %v549 = vadd.f32 %v543, %v547
      %v550 = vmul.f32 %v499, %v254
      %v551 = vmul.f32 %v499, %v255
      %v552 = vmul.f32 %v503, %v259
      %v553 = vmul.f32 %v503, %v260
      %v554 = vadd.f32 %v550, %v552
      %v555 = vadd.f32 %v551, %v553
      %v556 = vmul.f32 %v509, %v264
      %v557 = vmul.f32 %v509, %v265
      %v558 = vadd.f32 %v554, %v556
      %v559 = vadd.f32 %v555, %v557
      %v560 = vmul.f32 %v515, %v274
      %v561 = vmul.f32 %v515, %v275
      %v562 = vadd.f32 %v558, %v560
      %v563 = vadd.f32 %v559, %v561
      %v564 = vmul.f32 %v521, %v279
      %v565 = vmul.f32 %v521, %v280
      %v566 = vadd.f32 %v562, %v564
      %v567 = vadd.f32 %v563, %v565
      %v568 = vmul.f32 %v527, %v284
      %v569 = vmul.f32 %v527, %v285
      %v570 = vadd.f32 %v566, %v568
      %v571 = vadd.f32 %v567, %v569
      %v572 = vmul.f32 %v533, %v294
      %v573 = vmul.f32 %v533, %v295
      %v574 = vadd.f32 %v570, %v572
      %v575 = vadd.f32 %v571, %v573
      %v576 = vmul.f32 %v539, %v299
      %v577 = vmul.f32 %v539, %v300
      %v578 = vadd.f32 %v574, %v576
      %v579 = vadd.f32 %v575, %v577
      %v580 = vmul.f32 %v545, %v304
      %v581 = vmul.f32 %v545, %v305
      %v582 = vadd.f32 %v578, %v580
      %v583 = vadd.f32 %v579, %v581
      %v584 = vmax.f32 %v548, %v582
      %v585 = vmax.f32 %v549, %v583
      %v586 = vmul.f32 %v499, %v269
      %v587 = vmul.f32 %v499, %v270
      %v588 = vmul.f32 %v503, %v274
      %v589 = vmul.f32 %v503, %v275
      %v590 = vadd.f32 %v586, %v588
      %v591 = vadd.f32 %v587, %v589
      %v592 = vmul.f32 %v509, %v279
      %v593 = vmul.f32 %v509, %v280
      %v594 = vadd.f32 %v590, %v592
      %v595 = vadd.f32 %v591, %v593
      %v596 = vmul.f32 %v515, %v289
      %v597 = vmul.f32 %v515, %v290
      %v598 = vadd.f32 %v594, %v596
      %v599 = vadd.f32 %v595, %v597
      %v600 = vmul.f32 %v521, %v294
      %v601 = vmul.f32 %v521, %v295
      %v602 = vadd.f32 %v598, %v600
      %v603 = vadd.f32 %v599, %v601
      %v604 = vmul.f32 %v527, %v299
      %v605 = vmul.f32 %v527, %v300
      %v606 = vadd.f32 %v602, %v604
      %v607 = vadd.f32 %v603, %v605
      %v608 = vmul.f32 %v533, %v309
      %v609 = vmul.f32 %v533, %v310
      %v610 = vadd.f32 %v606, %v608
      %v611 = vadd.f32 %v607, %v609
      %v612 = vmul.f32 %v539, %v314
      %v613 = vmul.f32 %v539, %v315
      %v614 = vadd.f32 %v610, %v612
      %v615 = vadd.f32 %v611, %v613
      %v616 = vmul.f32 %v545, %v319
      %v617 = vmul.f32 %v545, %v320
      %v618 = vadd.f32 %v614, %v616
      %v619 = vadd.f32 %v615, %v617
      %v620 = vmax.f32 %v584, %v618
      %v621 = vmax.f32 %v585, %v619
      %v622 = vmul.f32 %v499, %v274
      %v623 = vmul.f32 %v499, %v275
      %v624 = vmul.f32 %v503, %v279
      %v625 = vmul.f32 %v503, %v280
      %v626 = vadd.f32 %v622, %v624
      %v627 = vadd.f32 %v623, %v625
      %v628 = vmul.f32 %v509, %v284
      %v629 = vmul.f32 %v509, %v285
      %v630 = vadd.f32 %v626, %v628
      %v631 = vadd.f32 %v627, %v629
      %v632 = vmul.f32 %v515, %v294
      %v633 = vmul.f32 %v515, %v295
      %v634 = vadd.f32 %v630, %v632
      %v635 = vadd.f32 %v631, %v633
      %v636 = vmul.f32 %v521, %v299
      %v637 = vmul.f32 %v521, %v300
      %v638 = vadd.f32 %v634, %v636
      %v639 = vadd.f32 %v635, %v637
      %v640 = vmul.f32 %v527, %v304
      %v641 = vmul.f32 %v527, %v305
      %v642 = vadd.f32 %v638, %v640
      %v643 = vadd.f32 %v639, %v641
      %v644 = vmul.f32 %v533, %v314
      %v645 = vmul.f32 %v533, %v315
      %v646 = vadd.f32 %v642, %v644
      %v647 = vadd.f32 %v643, %v645
      %v648 = vmul.f32 %v539, %v319
      %v649 = vmul.f32 %v539, %v320
      %v650 = vadd.f32 %v646, %v648
      %v651 = vadd.f32 %v647, %v649
      %v652 = vmul.f32 %v545, %v324
      %v653 = vmul.f32 %v545, %v325
      %v654 = vadd.f32 %v650, %v652
      %v655 = vadd.f32 %v651, %v653
      %v656 = vmax.f32 %v620, %v654
      %v657 = vmax.f32 %v621, %v655
      %s658 = sld [smem:[#allocation5 + $0x1]]
      %v659 = vstv %s658
      %v660 = vadd.f32 %v656, %v659
      %v661 = vadd.f32 %v657, %v659
      %v662 = vmax.f32 %v660, 0.0
      %v663 = vmax.f32 %v661, 0.0
      %664 = vst [vmem:[%s494 + $0x10] sm:$0xff] %v662
      %665 = vst.msk [vmem:[%s494 + $0x18] sm:$0xff] %vm496, %v663
      %s666 = sld [smem:[#allocation3 + $0x100]]
      %v667 = vstv %s666
      %v668 = vmul.f32 %v667, %v249
      %v669 = vmul.f32 %v667, %v250
      %s670 = sld [smem:[#allocation3 + $0x101]]
      %v671 = vstv %s670
      %v672 = vmul.f32 %v671, %v254
      %v673 = vmul.f32 %v671, %v255
      %v674 = vadd.f32 %v668, %v672
      %v675 = vadd.f32 %v669, %v673
      %s676 = sld [smem:[#allocation3 + $0x102]]
      %v677 = vstv %s676
      %v678 = vmul.f32 %v677, %v259
      %v679 = vmul.f32 %v677, %v260
      %v680 = vadd.f32 %v674, %v678
      %v681 = vadd.f32 %v675, %v679
      %s682 = sld [smem:[#allocation3 + $0x103]]
      %v683 = vstv %s682
      %v684 = vmul.f32 %v683, %v269
      %v685 = vmul.f32 %v683, %v270
      %v686 = vadd.f32 %v680, %v684
      %v687 = vadd.f32 %v681, %v685
      %s688 = sld [smem:[#allocation3 + $0x104]]
      %v689 = vstv %s688
      %v690 = vmul.f32 %v689, %v274
      %v691 = vmul.f32 %v689, %v275
      %v692 = vadd.f32 %v686, %v690
      %v693 = vadd.f32 %v687, %v691
      %s694 = sld [smem:[#allocation3 + $0x105]]
      %v695 = vstv %s694
      %v696 = vmul.f32 %v695, %v279
      %v697 = vmul.f32 %v695, %v280
      %v698 = vadd.f32 %v692, %v696
      %v699 = vadd.f32 %v693, %v697
      %s700 = sld [smem:[#allocation3 + $0x106]]
      %v701 = vstv %s700
      %v702 = vmul.f32 %v701, %v289
      %v703 = vmul.f32 %v701, %v290
      %v704 = vadd.f32 %v698, %v702
      %v705 = vadd.f32 %v699, %v703
      %s706 = sld [smem:[#allocation3 + $0x107]]
      %v707 = vstv %s706
      %v708 = vmul.f32 %v707, %v294
      %v709 = vmul.f32 %v707, %v295
      %v710 = vadd.f32 %v704, %v708
      %v711 = vadd.f32 %v705, %v709
      %s712 = sld [smem:[#allocation3 + $0x108]]
      %v713 = vstv %s712
      %v714 = vmul.f32 %v713, %v299
      %v715 = vmul.f32 %v713, %v300
      %v716 = vadd.f32 %v710, %v714
      %v717 = vadd.f32 %v711, %v715
      %v718 = vmul.f32 %v667, %v254
      %v719 = vmul.f32 %v667, %v255
      %v720 = vmul.f32 %v671, %v259
      %v721 = vmul.f32 %v671, %v260
      %v722 = vadd.f32 %v718, %v720
      %v723 = vadd.f32 %v719, %v721
      %v724 = vmul.f32 %v677, %v264
      %v725 = vmul.f32 %v677, %v265
      %v726 = vadd.f32 %v722, %v724
      %v727 = vadd.f32 %v723, %v725
      %v728 = vmul.f32 %v683, %v274
      %v729 = vmul.f32 %v683, %v275
      %v730 = vadd.f32 %v726, %v728
      %v731 = vadd.f32 %v727, %v729
      %v732 = vmul.f32 %v689, %v279
      %v733 = vmul.f32 %v689, %v280
      %v734 = vadd.f32 %v730, %v732
      %v735 = vadd.f32 %v731, %v733
      %v736 = vmul.f32 %v695, %v284
      %v737 = vmul.f32 %v695, %v285
      %v738 = vadd.f32 %v734, %v736
      %v739 = vadd.f32 %v735, %v737
      %v740 = vmul.f32 %v701, %v294
      %v741 = vmul.f32 %v701, %v295
      %v742 = vadd.f32 %v738, %v740
      %v743 = vadd.f32 %v739, %v741
      %v744 = vmul.f32 %v707, %v299
      %v745 = vmul.f32 %v707, %v300
      %v746 = vadd.f32 %v742, %v744
      %v747 = vadd.f32 %v743, %v745
      %v748 = vmul.f32 %v713, %v304
      %v749 = vmul.f32 %v713, %v305
      %v750 = vadd.f32 %v746, %v748
      %v751 = vadd.f32 %v747, %v749
      %v752 = vmax.f32 %v716, %v750
      %v753 = vmax.f32 %v717, %v751
      %v754 = vmul.f32 %v667, %v269
      %v755 = vmul.f32 %v667, %v270
      %v756 = vmul.f32 %v671, %v274
      %v757 = vmul.f32 %v671, %v275
      %v758 = vadd.f32 %v754, %v756
      %v759 = vadd.f32 %v755, %v757
      %v760 = vmul.f32 %v677, %v279
      %v761 = vmul.f32 %v677, %v280
      %v762 = vadd.f32 %v758, %v760
      %v763 = vadd.f32 %v759, %v761
      %v764 = vmul.f32 %v683, %v289
      %v765 = vmul.f32 %v683, %v290
      %v766 = vadd.f32 %v762, %v764
      %v767 = vadd.f32 %v763, %v765
      %v768 = vmul.f32 %v689, %v294
      %v769 = vmul.f32 %v689, %v295
      %v770 = vadd.f32 %v766, %v768
      %v771 = vadd.f32 %v767, %v769
      %v772 = vmul.f32 %v695, %v299
      %v773 = vmul.f32 %v695, %v300
      %v774 = vadd.f32 %v770, %v772
      %v775 = vadd.f32 %v771, %v773
      %v776 = vmul.f32 %v701, %v309
      %v777 = vmul.f32 %v701, %v310
      %v778 = vadd.f32 %v774, %v776
      %v779 = vadd.f32 %v775, %v777
      %v780 = vmul.f32 %v707, %v314
      %v781 = vmul.f32 %v707, %v315
      %v782 = vadd.f32 %v778, %v780
      %v783 = vadd.f32 %v779, %v781
      %v784 = vmul.f32 %v713, %v319
      %v785 = vmul.f32 %v713, %v320
      %v786 = vadd.f32 %v782, %v784
      %v787 = vadd.f32 %v783, %v785
      %v788 = vmax.f32 %v752, %v786
      %v789 = vmax.f32 %v753, %v787
      %v790 = vmul.f32 %v667, %v274
      %v791 = vmul.f32 %v667, %v275
      %v792 = vmul.f32 %v671, %v279
      %v793 = vmul.f32 %v671, %v280
      %v794 = vadd.f32 %v790, %v792
      %v795 = vadd.f32 %v791, %v793
      %v796 = vmul.f32 %v677, %v284
      %v797 = vmul.f32 %v677, %v285
      %v798 = vadd.f32 %v794, %v796
      %v799 = vadd.f32 %v795, %v797
      %v800 = vmul.f32 %v683, %v294
      %v801 = vmul.f32 %v683, %v295
      %v802 = vadd.f32 %v798, %v800
      %v803 = vadd.f32 %v799, %v801
      %v804 = vmul.f32 %v689, %v299
      %v805 = vmul.f32 %v689, %v300
      %v806 = vadd.f32 %v802, %v804
      %v807 = vadd.f32 %v803, %v805
      %v808 = vmul.f32 %v695, %v304
      %v809 = vmul.f32 %v695, %v305
      %v810 = vadd.f32 %v806, %v808
      %v811 = vadd.f32 %v807, %v809
      %v812 = vmul.f32 %v701, %v314
      %v813 = vmul.f32 %v701, %v315
      %v814 = vadd.f32 %v810, %v812
      %v815 = vadd.f32 %v811, %v813
      %v816 = vmul.f32 %v707, %v319
      %v817 = vmul.f32 %v707, %v320
      %v818 = vadd.f32 %v814, %v816
      %v819 = vadd.f32 %v815, %v817
      %v820 = vmul.f32 %v713, %v324
      %v821 = vmul.f32 %v713, %v325
      %v822 = vadd.f32 %v818, %v820
      %v823 = vadd.f32 %v819, %v821
      %v824 = vmax.f32 %v788, %v822
      %v825 = vmax.f32 %v789, %v823
      %s826 = sld [smem:[#allocation5 + $0x2]]
      %v827 = vstv %s826
      %v828 = vadd.f32 %v824, %v827
      %v829 = vadd.f32 %v825, %v827
      %v830 = vmax.f32 %v828, 0.0
      %v831 = vmax.f32 %v829, 0.0
      %832 = vst [vmem:[%s494 + $0x20] sm:$0xff] %v830
      %833 = vst.msk [vmem:[%s494 + $0x28] sm:$0xff] %vm496, %v831
      %s834 = sld [smem:[#allocation3 + $0x180]]
      %v835 = vstv %s834
      %v836 = vmul.f32 %v835, %v249
      %v837 = vmul.f32 %v835, %v250
      %s838 = sld [smem:[#allocation3 + $0x181]]
      %v839 = vstv %s838
      %v840 = vmul.f32 %v839, %v254
      %v841 = vmul.f32 %v839, %v255
      %v842 = vadd.f32 %v836, %v840
      %v843 = vadd.f32 %v837, %v841
      %s844 = sld [smem:[#allocation3 + $0x182]]
      %v845 = vstv %s844
      %v846 = vmul.f32 %v845, %v259
      %v847 = vmul.f32 %v845, %v260
      %v848 = vadd.f32 %v842, %v846
      %v849 = vadd.f32 %v843, %v847
      %s850 = sld [smem:[#allocation3 + $0x183]]
      %v851 = vstv %s850
      %v852 = vmul.f32 %v851, %v269
      %v853 = vmul.f32 %v851, %v270
      %v854 = vadd.f32 %v848, %v852
      %v855 = vadd.f32 %v849, %v853
      %s856 = sld [smem:[#allocation3 + $0x184]]
      %v857 = vstv %s856
      %v858 = vmul.f32 %v857, %v274
      %v859 = vmul.f32 %v857, %v275
      %v860 = vadd.f32 %v854, %v858
      %v861 = vadd.f32 %v855, %v859
      %s862 = sld [smem:[#allocation3 + $0x185]]
      %v863 = vstv %s862
      %v864 = vmul.f32 %v863, %v279
      %v865 = vmul.f32 %v863, %v280
      %v866 = vadd.f32 %v860, %v864
      %v867 = vadd.f32 %v861, %v865
      %s868 = sld [smem:[#allocation3 + $0x186]]
      %v869 = vstv %s868
      %v870 = vmul.f32 %v869, %v289
      %v871 = vmul.f32 %v869, %v290
      %v872 = vadd.f32 %v866, %v870
      %v873 = vadd.f32 %v867, %v871
      %s874 = sld [smem:[#allocation3 + $0x187]]
      %v875 = vstv %s874
      %v876 = vmul.f32 %v875, %v294
      %v877 = vmul.f32 %v875, %v295
      %v878 = vadd.f32 %v872, %v876
      %v879 = vadd.f32 %v873, %v877
      %s880 = sld [smem:[#allocation3 + $0x188]]
      %v881 = vstv %s880
      %v882 = vmul.f32 %v881, %v299
      %v883 = vmul.f32 %v881, %v300
      %v884 = vadd.f32 %v878, %v882
      %v885 = vadd.f32 %v879, %v883
      %v886 = vmul.f32 %v835, %v254
      %v887 = vmul.f32 %v835, %v255
      %v888 = vmul.f32 %v839, %v259
      %v889 = vmul.f32 %v839, %v260
      %v890 = vadd.f32 %v886, %v888
      %v891 = vadd.f32 %v887, %v889
      %v892 = vmul.f32 %v845, %v264
      %v893 = vmul.f32 %v845, %v265
      %v894 = vadd.f32 %v890, %v892
      %v895 = vadd.f32 %v891, %v893
      %v896 = vmul.f32 %v851, %v274
      %v897 = vmul.f32 %v851, %v275
      %v898 = vadd.f32 %v894, %v896
      %v899 = vadd.f32 %v895, %v897
      %v900 = vmul.f32 %v857, %v279
      %v901 = vmul.f32 %v857, %v280
      %v902 = vadd.f32 %v898, %v900
      %v903 = vadd.f32 %v899, %v901
      %v904 = vmul.f32 %v863, %v284
      %v905 = vmul.f32 %v863, %v285
      %v906 = vadd.f32 %v902, %v904
      %v907 = vadd.f32 %v903, %v905
      %v908 = vmul.f32 %v869, %v294
      %v909 = vmul.f32 %v869, %v295
      %v910 = vadd.f32 %v906, %v908
      %v911 = vadd.f32 %v907, %v909
      %v912 = vmul.f32 %v875, %v299
      %v913 = vmul.f32 %v875, %v300
      %v914 = vadd.f32 %v910, %v912
      %v915 = vadd.f32 %v911, %v913
      %v916 = vmul.f32 %v881, %v304
      %v917 = vmul.f32 %v881, %v305
      %v918 = vadd.f32 %v914, %v916
      %v919 = vadd.f32 %v915, %v917
      %v920 = vmax.f32 %v884, %v918
      %v921 = vmax.f32 %v885, %v919
      %v922 = vmul.f32 %v835, %v269
      %v923 = vmul.f32 %v835, %v270
      %v924 = vmul.f32 %v839, %v274
      %v925 = vmul.f32 %v839, %v275
      %v926 = vadd.f32 %v922, %v924
      %v927 = vadd.f32 %v923, %v925
      %v928 = vmul.f32 %v845, %v279
      %v929 = vmul.f32 %v845, %v280
      %v930 = vadd.f32 %v926, %v928
      %v931 = vadd.f32 %v927, %v929
      %v932 = vmul.f32 %v851, %v289
      %v933 = vmul.f32 %v851, %v290
      %v934 = vadd.f32 %v930, %v932
      %v935 = vadd.f32 %v931, %v933
      %v936 = vmul.f32 %v857, %v294
      %v937 = vmul.f32 %v857, %v295
      %v938 = vadd.f32 %v934, %v936
      %v939 = vadd.f32 %v935, %v937
      %v940 = vmul.f32 %v863, %v299
      %v941 = vmul.f32 %v863, %v300
      %v942 = vadd.f32 %v938, %v940
      %v943 = vadd.f32 %v939, %v941
      %v944 = vmul.f32 %v869, %v309
      %v945 = vmul.f32 %v869, %v310
      %v946 = vadd.f32 %v942, %v944
      %v947 = vadd.f32 %v943, %v945
      %v948 = vmul.f32 %v875, %v314
      %v949 = vmul.f32 %v875, %v315
      %v950 = vadd.f32 %v946, %v948
      %v951 = vadd.f32 %v947, %v949
      %v952 = vmul.f32 %v881, %v319
      %v953 = vmul.f32 %v881, %v320
      %v954 = vadd.f32 %v950, %v952
      %v955 = vadd.f32 %v951, %v953
      %v956 = vmax.f32 %v920, %v954
      %v957 = vmax.f32 %v921, %v955
      %v958 = vmul.f32 %v835, %v274
      %v959 = vmul.f32 %v835, %v275
      %v960 = vmul.f32 %v839, %v279
      %v961 = vmul.f32 %v839, %v280
      %v962 = vadd.f32 %v958, %v960
      %v963 = vadd.f32 %v959, %v961
      %v964 = vmul.f32 %v845, %v284
      %v965 = vmul.f32 %v845, %v285
      %v966 = vadd.f32 %v962, %v964
      %v967 = vadd.f32 %v963, %v965
      %v968 = vmul.f32 %v851, %v294
      %v969 = vmul.f32 %v851, %v295
      %v970 = vadd.f32 %v966, %v968
      %v971 = vadd.f32 %v967, %v969
      %v972 = vmul.f32 %v857, %v299
      %v973 = vmul.f32 %v857, %v300
      %v974 = vadd.f32 %v970, %v972
      %v975 = vadd.f32 %v971, %v973
      %v976 = vmul.f32 %v863, %v304
      %v977 = vmul.f32 %v863, %v305
      %v978 = vadd.f32 %v974, %v976
      %v979 = vadd.f32 %v975, %v977
      %v980 = vmul.f32 %v869, %v314
      %v981 = vmul.f32 %v869, %v315
      %v982 = vadd.f32 %v978, %v980
      %v983 = vadd.f32 %v979, %v981
      %v984 = vmul.f32 %v875, %v319
      %v985 = vmul.f32 %v875, %v320
      %v986 = vadd.f32 %v982, %v984
      %v987 = vadd.f32 %v983, %v985
      %v988 = vmul.f32 %v881, %v324
      %v989 = vmul.f32 %v881, %v325
      %v990 = vadd.f32 %v986, %v988
      %v991 = vadd.f32 %v987, %v989
      %v992 = vmax.f32 %v956, %v990
      %v993 = vmax.f32 %v957, %v991
      %s994 = sld [smem:[#allocation5 + $0x3]]
      %v995 = vstv %s994
      %v996 = vadd.f32 %v992, %v995
      %v997 = vadd.f32 %v993, %v995
      %v998 = vmax.f32 %v996, 0.0
      %v999 = vmax.f32 %v997, 0.0
      %1000 = vst [vmem:[%s494 + $0x30] sm:$0xff] %v998
      %1001 = vst.msk [vmem:[%s494 + $0x38] sm:$0xff] %vm496, %v999
      %s1002 = sld [smem:[#allocation3 + $0x200]]
      %v1003 = vstv %s1002
      %v1004 = vmul.f32 %v1003, %v249
      %v1005 = vmul.f32 %v1003, %v250
      %s1006 = sld [smem:[#allocation3 + $0x201]]
      %v1007 = vstv %s1006
      %v1008 = vmul.f32 %v1007, %v254
      %v1009 = vmul.f32 %v1007, %v255
      %v1010 = vadd.f32 %v1004, %v1008
      %v1011 = vadd.f32 %v1005, %v1009
      %s1012 = sld [smem:[#allocation3 + $0x202]]
      %v1013 = vstv %s1012
      %v1014 = vmul.f32 %v1013, %v259
      %v1015 = vmul.f32 %v1013, %v260
      %v1016 = vadd.f32 %v1010, %v1014
      %v1017 = vadd.f32 %v1011, %v1015
      %s1018 = sld [smem:[#allocation3 + $0x203]]
      %v1019 = vstv %s1018
      %v1020 = vmul.f32 %v1019, %v269
      %v1021 = vmul.f32 %v1019, %v270
      %v1022 = vadd.f32 %v1016, %v1020
      %v1023 = vadd.f32 %v1017, %v1021
      %s1024 = sld [smem:[#allocation3 + $0x204]]
      %v1025 = vstv %s1024
      %v1026 = vmul.f32 %v1025, %v274
      %v1027 = vmul.f32 %v1025, %v275
      %v1028 = vadd.f32 %v1022, %v1026
      %v1029 = vadd.f32 %v1023, %v1027
      %s1030 = sld [smem:[#allocation3 + $0x205]]
      %v1031 = vstv %s1030
      %v1032 = vmul.f32 %v1031, %v279
      %v1033 = vmul.f32 %v1031, %v280
      %v1034 = vadd.f32 %v1028, %v1032
      %v1035 = vadd.f32 %v1029, %v1033
      %s1036 = sld [smem:[#allocation3 + $0x206]]
      %v1037 = vstv %s1036
      %v1038 = vmul.f32 %v1037, %v289
      %v1039 = vmul.f32 %v1037, %v290
      %v1040 = vadd.f32 %v1034, %v1038
      %v1041 = vadd.f32 %v1035, %v1039
      %s1042 = sld [smem:[#allocation3 + $0x207]]
      %v1043 = vstv %s1042
      %v1044 = vmul.f32 %v1043, %v294
      %v1045 = vmul.f32 %v1043, %v295
      %v1046 = vadd.f32 %v1040, %v1044
      %v1047 = vadd.f32 %v1041, %v1045
      %s1048 = sld [smem:[#allocation3 + $0x208]]
      %v1049 = vstv %s1048
      %v1050 = vmul.f32 %v1049, %v299
      %v1051 = vmul.f32 %v1049, %v300
      %v1052 = vadd.f32 %v1046, %v1050
      %v1053 = vadd.f32 %v1047, %v1051
      %v1054 = vmul.f32 %v1003, %v254
      %v1055 = vmul.f32 %v1003, %v255
      %v1056 = vmul.f32 %v1007, %v259
      %v1057 = vmul.f32 %v1007, %v260
      %v1058 = vadd.f32 %v1054, %v1056
      %v1059 = vadd.f32 %v1055, %v1057
      %v1060 = vmul.f32 %v1013, %v264
      %v1061 = vmul.f32 %v1013, %v265
      %v1062 = vadd.f32 %v1058, %v1060
      %v1063 = vadd.f32 %v1059, %v1061
      %v1064 = vmul.f32 %v1019, %v274
      %v1065 = vmul.f32 %v1019, %v275
      %v1066 = vadd.f32 %v1062, %v1064
      %v1067 = vadd.f32 %v1063, %v1065
      %v1068 = vmul.f32 %v1025, %v279
      %v1069 = vmul.f32 %v1025, %v280
      %v1070 = vadd.f32 %v1066, %v1068
      %v1071 = vadd.f32 %v1067, %v1069
      %v1072 = vmul.f32 %v1031, %v284
      %v1073 = vmul.f32 %v1031, %v285
      %v1074 = vadd.f32 %v1070, %v1072
      %v1075 = vadd.f32 %v1071, %v1073
      %v1076 = vmul.f32 %v1037, %v294
      %v1077 = vmul.f32 %v1037, %v295
      %v1078 = vadd.f32 %v1074, %v1076
      %v1079 = vadd.f32 %v1075, %v1077
      %v1080 = vmul.f32 %v1043, %v299
      %v1081 = vmul.f32 %v1043, %v300
      %v1082 = vadd.f32 %v1078, %v1080
      %v1083 = vadd.f32 %v1079, %v1081
      %v1084 = vmul.f32 %v1049, %v304
      %v1085 = vmul.f32 %v1049, %v305
      %v1086 = vadd.f32 %v1082, %v1084
      %v1087 = vadd.f32 %v1083, %v1085
      %v1088 = vmax.f32 %v1052, %v1086
      %v1089 = vmax.f32 %v1053, %v1087
      %v1090 = vmul.f32 %v1003, %v269
      %v1091 = vmul.f32 %v1003, %v270
      %v1092 = vmul.f32 %v1007, %v274
      %v1093 = vmul.f32 %v1007, %v275
      %v1094 = vadd.f32 %v1090, %v1092
      %v1095 = vadd.f32 %v1091, %v1093
      %v1096 = vmul.f32 %v1013, %v279
      %v1097 = vmul.f32 %v1013, %v280
      %v1098 = vadd.f32 %v1094, %v1096
      %v1099 = vadd.f32 %v1095, %v1097
      %v1100 = vmul.f32 %v1019, %v289
      %v1101 = vmul.f32 %v1019, %v290
      %v1102 = vadd.f32 %v1098, %v1100
      %v1103 = vadd.f32 %v1099, %v1101
      %v1104 = vmul.f32 %v1025, %v294
      %v1105 = vmul.f32 %v1025, %v295
      %v1106 = vadd.f32 %v1102, %v1104
      %v1107 = vadd.f32 %v1103, %v1105
      %v1108 = vmul.f32 %v1031, %v299
      %v1109 = vmul.f32 %v1031, %v300
      %v1110 = vadd.f32 %v1106, %v1108
      %v1111 = vadd.f32 %v1107, %v1109
      %v1112 = vmul.f32 %v1037, %v309
      %v1113 = vmul.f32 %v1037, %v310
      %v1114 = vadd.f32 %v1110, %v1112
      %v1115 = vadd.f32 %v1111, %v1113
      %v1116 = vmul.f32 %v1043, %v314
      %v1117 = vmul.f32 %v1043, %v315
      %v1118 = vadd.f32 %v1114, %v1116
      %v1119 = vadd.f32 %v1115, %v1117
      %v1120 = vmul.f32 %v1049, %v319
      %v1121 = vmul.f32 %v1049, %v320
      %v1122 = vadd.f32 %v1118, %v1120
      %v1123 = vadd.f32 %v1119, %v1121
      %v1124 = vmax.f32 %v1088, %v1122
      %v1125 = vmax.f32 %v1089, %v1123
      %v1126 = vmul.f32 %v1003, %v274
      %v1127 = vmul.f32 %v1003, %v275
      %v1128 = vmul.f32 %v1007, %v279
      %v1129 = vmul.f32 %v1007, %v280
      %v1130 = vadd.f32 %v1126, %v1128
      %v1131 = vadd.f32 %v1127, %v1129
      %v1132 = vmul.f32 %v1013, %v284
      %v1133 = vmul.f32 %v1013, %v285
      %v1134 = vadd.f32 %v1130, %v1132
      %v1135 = vadd.f32 %v1131, %v1133
      %v1136 = vmul.f32 %v1019, %v294
      %v1137 = vmul.f32 %v1019, %v295
      %v1138 = vadd.f32 %v1134, %v1136
      %v1139 = vadd.f32 %v1135, %v1137
      %v1140 = vmul.f32 %v1025, %v299
      %v1141 = vmul.f32 %v1025, %v300
      %v1142 = vadd.f32 %v1138, %v1140
      %v1143 = vadd.f32 %v1139, %v1141
      %v1144 = vmul.f32 %v1031, %v304
      %v1145 = vmul.f32 %v1031, %v305
      %v1146 = vadd.f32 %v1142, %v1144
      %v1147 = vadd.f32 %v1143, %v1145
      %v1148 = vmul.f32 %v1037, %v314
      %v1149 = vmul.f32 %v1037, %v315
      %v1150 = vadd.f32 %v1146, %v1148
      %v1151 = vadd.f32 %v1147, %v1149
      %v1152 = vmul.f32 %v1043, %v319
      %v1153 = vmul.f32 %v1043, %v320
      %v1154 = vadd.f32 %v1150, %v1152
      %v1155 = vadd.f32 %v1151, %v1153
      %v1156 = vmul.f32 %v1049, %v324
      %v1157 = vmul.f32 %v1049, %v325
      %v1158 = vadd.f32 %v1154, %v1156
      %v1159 = vadd.f32 %v1155, %v1157
      %v1160 = vmax.f32 %v1124, %v1158
      %v1161 = vmax.f32 %v1125, %v1159
      %s1162 = sld [smem:[#allocation5 + $0x4]]
      %v1163 = vstv %s1162
      %v1164 = vadd.f32 %v1160, %v1163
      %v1165 = vadd.f32 %v1161, %v1163
      %v1166 = vmax.f32 %v1164, 0.0
      %v1167 = vmax.f32 %v1165, 0.0
      %1168 = vst [vmem:[%s494 + $0x40] sm:$0xff] %v1166
      %1169 = vst.msk [vmem:[%s494 + $0x48] sm:$0xff] %vm496, %v1167
      %s1170 = sld [smem:[#allocation3 + $0x280]]
      %v1171 = vstv %s1170
      %v1172 = vmul.f32 %v1171, %v249
      %v1173 = vmul.f32 %v1171, %v250
      %s1174 = sld [smem:[#allocation3 + $0x281]]
      %v1175 = vstv %s1174
      %v1176 = vmul.f32 %v1175, %v254
      %v1177 = vmul.f32 %v1175, %v255
      %v1178 = vadd.f32 %v1172, %v1176
      %v1179 = vadd.f32 %v1173, %v1177
      %s1180 = sld [smem:[#allocation3 + $0x282]]
      %v1181 = vstv %s1180
      %v1182 = vmul.f32 %v1181, %v259
      %v1183 = vmul.f32 %v1181, %v260
      %v1184 = vadd.f32 %v1178, %v1182
      %v1185 = vadd.f32 %v1179, %v1183
      %s1186 = sld [smem:[#allocation3 + $0x283]]
      %v1187 = vstv %s1186
      %v1188 = vmul.f32 %v1187, %v269
      %v1189 = vmul.f32 %v1187, %v270
      %v1190 = vadd.f32 %v1184, %v1188
      %v1191 = vadd.f32 %v1185, %v1189
      %s1192 = sld [smem:[#allocation3 + $0x284]]
      %v1193 = vstv %s1192
      %v1194 = vmul.f32 %v1193, %v274
      %v1195 = vmul.f32 %v1193, %v275
      %v1196 = vadd.f32 %v1190, %v1194
      %v1197 = vadd.f32 %v1191, %v1195
      %s1198 = sld [smem:[#allocation3 + $0x285]]
      %v1199 = vstv %s1198
      %v1200 = vmul.f32 %v1199, %v279
      %v1201 = vmul.f32 %v1199, %v280
      %v1202 = vadd.f32 %v1196, %v1200
      %v1203 = vadd.f32 %v1197, %v1201
      %s1204 = sld [smem:[#allocation3 + $0x286]]
      %v1205 = vstv %s1204
      %v1206 = vmul.f32 %v1205, %v289
      %v1207 = vmul.f32 %v1205, %v290
      %v1208 = vadd.f32 %v1202, %v1206
      %v1209 = vadd.f32 %v1203, %v1207
      %s1210 = sld [smem:[#allocation3 + $0x287]]
      %v1211 = vstv %s1210
      %v1212 = vmul.f32 %v1211, %v294
      %v1213 = vmul.f32 %v1211, %v295
      %v1214 = vadd.f32 %v1208, %v1212
      %v1215 = vadd.f32 %v1209, %v1213
      %s1216 = sld [smem:[#allocation3 + $0x288]]
      %v1217 = vstv %s1216
      %v1218 = vmul.f32 %v1217, %v299
      %v1219 = vmul.f32 %v1217, %v300
      %v1220 = vadd.f32 %v1214, %v1218
      %v1221 = vadd.f32 %v1215, %v1219
      %v1222 = vmul.f32 %v1171, %v254
      %v1223 = vmul.f32 %v1171, %v255
      %v1224 = vmul.f32 %v1175, %v259
      %v1225 = vmul.f32 %v1175, %v260
      %v1226 = vadd.f32 %v1222, %v1224
      %v1227 = vadd.f32 %v1223, %v1225
      %v1228 = vmul.f32 %v1181, %v264
      %v1229 = vmul.f32 %v1181, %v265
      %v1230 = vadd.f32 %v1226, %v1228
      %v1231 = vadd.f32 %v1227, %v1229
      %v1232 = vmul.f32 %v1187, %v274
      %v1233 = vmul.f32 %v1187, %v275
      %v1234 = vadd.f32 %v1230, %v1232
      %v1235 = vadd.f32 %v1231, %v1233
      %v1236 = vmul.f32 %v1193, %v279
      %v1237 = vmul.f32 %v1193, %v280
      %v1238 = vadd.f32 %v1234, %v1236
      %v1239 = vadd.f32 %v1235, %v1237
      %v1240 = vmul.f32 %v1199, %v284
      %v1241 = vmul.f32 %v1199, %v285
      %v1242 = vadd.f32 %v1238, %v1240
      %v1243 = vadd.f32 %v1239, %v1241
      %v1244 = vmul.f32 %v1205, %v294
      %v1245 = vmul.f32 %v1205, %v295
      %v1246 = vadd.f32 %v1242, %v1244
      %v1247 = vadd.f32 %v1243, %v1245
      %v1248 = vmul.f32 %v1211, %v299
      %v1249 = vmul.f32 %v1211, %v300
      %v1250 = vadd.f32 %v1246, %v1248
      %v1251 = vadd.f32 %v1247, %v1249
      %v1252 = vmul.f32 %v1217, %v304
      %v1253 = vmul.f32 %v1217, %v305
      %v1254 = vadd.f32 %v1250, %v1252
      %v1255 = vadd.f32 %v1251, %v1253
      %v1256 = vmax.f32 %v1220, %v1254
      %v1257 = vmax.f32 %v1221, %v1255
      %v1258 = vmul.f32 %v1171, %v269
      %v1259 = vmul.f32 %v1171, %v270
      %v1260 = vmul.f32 %v1175, %v274
      %v1261 = vmul.f32 %v1175, %v275
      %v1262 = vadd.f32 %v1258, %v1260
      %v1263 = vadd.f32 %v1259, %v1261
      %v1264 = vmul.f32 %v1181, %v279
      %v1265 = vmul.f32 %v1181, %v280
      %v1266 = vadd.f32 %v1262, %v1264
      %v1267 = vadd.f32 %v1263, %v1265
      %v1268 = vmul.f32 %v1187, %v289
      %v1269 = vmul.f32 %v1187, %v290
      %v1270 = vadd.f32 %v1266, %v1268
      %v1271 = vadd.f32 %v1267, %v1269
      %v1272 = vmul.f32 %v1193, %v294
      %v1273 = vmul.f32 %v1193, %v295
      %v1274 = vadd.f32 %v1270, %v1272
      %v1275 = vadd.f32 %v1271, %v1273
      %v1276 = vmul.f32 %v1199, %v299
      %v1277 = vmul.f32 %v1199, %v300
      %v1278 = vadd.f32 %v1274, %v1276
      %v1279 = vadd.f32 %v1275, %v1277
      %v1280 = vmul.f32 %v1205, %v309
      %v1281 = vmul.f32 %v1205, %v310
      %v1282 = vadd.f32 %v1278, %v1280
      %v1283 = vadd.f32 %v1279, %v1281
      %v1284 = vmul.f32 %v1211, %v314
      %v1285 = vmul.f32 %v1211, %v315
      %v1286 = vadd.f32 %v1282, %v1284
      %v1287 = vadd.f32 %v1283, %v1285
      %v1288 = vmul.f32 %v1217, %v319
      %v1289 = vmul.f32 %v1217, %v320
      %v1290 = vadd.f32 %v1286, %v1288
      %v1291 = vadd.f32 %v1287, %v1289
      %v1292 = vmax.f32 %v1256, %v1290
      %v1293 = vmax.f32 %v1257, %v1291
      %v1294 = vmul.f32 %v1171, %v274
      %v1295 = vmul.f32 %v1171, %v275
      %v1296 = vmul.f32 %v1175, %v279
      %v1297 = vmul.f32 %v1175, %v280
      %v1298 = vadd.f32 %v1294, %v1296
      %v1299 = vadd.f32 %v1295, %v1297
      %v1300 = vmul.f32 %v1181, %v284
      %v1301 = vmul.f32 %v1181, %v285
      %v1302 = vadd.f32 %v1298, %v1300
      %v1303 = vadd.f32 %v1299, %v1301
      %v1304 = vmul.f32 %v1187, %v294
      %v1305 = vmul.f32 %v1187, %v295
      %v1306 = vadd.f32 %v1302, %v1304
      %v1307 = vadd.f32 %v1303, %v1305
      %v1308 = vmul.f32 %v1193, %v299
      %v1309 = vmul.f32 %v1193, %v300
      %v1310 = vadd.f32 %v1306, %v1308
      %v1311 = vadd.f32 %v1307, %v1309
      %v1312 = vmul.f32 %v1199, %v304
      %v1313 = vmul.f32 %v1199, %v305
      %v1314 = vadd.f32 %v1310, %v1312
      %v1315 = vadd.f32 %v1311, %v1313
      %v1316 = vmul.f32 %v1205, %v314
      %v1317 = vmul.f32 %v1205, %v315
      %v1318 = vadd.f32 %v1314, %v1316
      %v1319 = vadd.f32 %v1315, %v1317
      %v1320 = vmul.f32 %v1211, %v319
      %v1321 = vmul.f32 %v1211, %v320
      %v1322 = vadd.f32 %v1318, %v1320
      %v1323 = vadd.f32 %v1319, %v1321
      %v1324 = vmul.f32 %v1217, %v324
      %v1325 = vmul.f32 %v1217, %v325
      %v1326 = vadd.f32 %v1322, %v1324
      %v1327 = vadd.f32 %v1323, %v1325
      %v1328 = vmax.f32 %v1292, %v1326
      %v1329 = vmax.f32 %v1293, %v1327
      %s1330 = sld [smem:[#allocation5 + $0x5]]
      %v1331 = vstv %s1330
      %v1332 = vadd.f32 %v1328, %v1331
      %v1333 = vadd.f32 %v1329, %v1331
      %v1334 = vmax.f32 %v1332, 0.0
      %v1335 = vmax.f32 %v1333, 0.0
      %1336 = vst [vmem:[%s494 + $0x50] sm:$0xff] %v1334
      %1337 = vst.msk [vmem:[%s494 + $0x58] sm:$0xff] %vm496, %v1335
    $region34: #{net_forward.1} parent=1 // loop_footer
      %s242 = sadd.s32 1, %s238
    $region35: #{net_forward.1} parent=1 // loop_footer_branch
      %237 = sbr.rel target = $region31
    $region36: #{net_forward.1} parent=1 // loop_exit
      _
    %v1338 = vld [vmem:[#allocation2] sm:$0xff]
    %v1339 = vld [vmem:[#allocation2 + $0x8] sm:$0xff]
    %v1340 = vld [vmem:[#allocation2 + $0x10] sm:$0xff]
    %v1341 = vld [vmem:[#allocation2 + $0x18] sm:$0xff]
    %v1342 = vld [vmem:[#allocation2 + $0x20] sm:$0xff]
    %v1343 = vld [vmem:[#allocation2 + $0x28] sm:$0xff]
    %v1344 = vld [vmem:[#allocation2 + $0x30] sm:$0xff]
    %v1345 = vld [vmem:[#allocation2 + $0x38] sm:$0xff]
    %v1346 = vld [vmem:[#allocation2 + $0x40] sm:$0xff]
    %v1347 = vld [vmem:[#allocation2 + $0x48] sm:$0xff]
    %v1348 = vld [vmem:[#allocation2 + $0x50] sm:$0xff]
    %v1349 = vld [vmem:[#allocation2 + $0x58] sm:$0xff]
    %v1350 = vld [vmem:[#allocation2 + $0x60] sm:$0xff]
    %v1351 = vld [vmem:[#allocation2 + $0x68] sm:$0xff]
    %v1352 = vld [vmem:[#allocation2 + $0x70] sm:$0xff]
    %v1353 = vld [vmem:[#allocation2 + $0x78] sm:$0xff]
    %v1354 = vld [vmem:[#allocation2 + $0x80] sm:$0xff]
    %v1355 = vld [vmem:[#allocation2 + $0x88] sm:$0xff]
    %v1356 = vld [vmem:[#allocation2 + $0x90] sm:$0xff]
    %v1357 = vld [vmem:[#allocation2 + $0x98] sm:$0xff]
    %v1358 = vld [vmem:[#allocation2 + $0xa0] sm:$0xff]
    %v1359 = vld [vmem:[#allocation2 + $0xa8] sm:$0xff]
    %v1360 = vld [vmem:[#allocation2 + $0xb0] sm:$0xff]
    %v1361 = vld [vmem:[#allocation2 + $0xb8] sm:$0xff]
    %v1362 = vld [vmem:[#allocation2 + $0xc0] sm:$0xff]
    %v1363 = vld [vmem:[#allocation2 + $0xc8] sm:$0xff]
    %v1364 = vld [vmem:[#allocation2 + $0xd0] sm:$0xff]
    %v1365 = vld [vmem:[#allocation2 + $0xd8] sm:$0xff]
    %v1366 = vld [vmem:[#allocation2 + $0xe0] sm:$0xff]
    %v1367 = vld [vmem:[#allocation2 + $0xe8] sm:$0xff]
    %v1368 = vld [vmem:[#allocation2 + $0xf0] sm:$0xff]
    %v1369 = vld [vmem:[#allocation2 + $0xf8] sm:$0xff]
    %v1370 = vld [vmem:[#allocation2 + $0x100] sm:$0xff]
    %v1371 = vld [vmem:[#allocation2 + $0x108] sm:$0xff]
    %v1372 = vld [vmem:[#allocation2 + $0x110] sm:$0xff]
    %v1373 = vld [vmem:[#allocation2 + $0x118] sm:$0xff]
    %v1374 = vld [vmem:[#allocation2 + $0x120] sm:$0xff]
    %v1375 = vld [vmem:[#allocation2 + $0x128] sm:$0xff]
    %v1376 = vld [vmem:[#allocation2 + $0x130] sm:$0xff]
    %v1377 = vld [vmem:[#allocation2 + $0x138] sm:$0xff]
    %v1378 = vld [vmem:[#allocation2 + $0x140] sm:$0xff]
    %v1379 = vld [vmem:[#allocation2 + $0x148] sm:$0xff]
    %v1380 = vld [vmem:[#allocation2 + $0x150] sm:$0xff]
    %v1381 = vld [vmem:[#allocation2 + $0x158] sm:$0xff]
    %v1382 = vld [vmem:[#allocation2 + $0x160] sm:$0xff]
    %v1383 = vld [vmem:[#allocation2 + $0x168] sm:$0xff]
    %v1384 = vld [vmem:[#allocation2 + $0x170] sm:$0xff]
    %v1385 = vld [vmem:[#allocation2 + $0x178] sm:$0xff]
    %v1386 = vld [vmem:[#allocation2 + $0x180] sm:$0xff]
    %v1387 = vld [vmem:[#allocation2 + $0x188] sm:$0xff]
    %v1388 = vld [vmem:[#allocation2 + $0x190] sm:$0xff]
    %v1389 = vld [vmem:[#allocation2 + $0x198] sm:$0xff]
    %v1390 = vld [vmem:[#allocation2 + $0x1a0] sm:$0xff]
    %v1391 = vld [vmem:[#allocation2 + $0x1a8] sm:$0xff]
    %v1392 = vld [vmem:[#allocation2 + $0x1b0] sm:$0xff]
    %v1393 = vld [vmem:[#allocation2 + $0x1b8] sm:$0xff]
    %v1394 = vld [vmem:[#allocation2 + $0x1c0] sm:$0xff]
    %v1395 = vld [vmem:[#allocation2 + $0x1c8] sm:$0xff]
    %v1396 = vld [vmem:[#allocation2 + $0x1d0] sm:$0xff]
    %v1397 = vld [vmem:[#allocation2 + $0x1d8] sm:$0xff]
    %v1398 = vld [vmem:[#allocation2 + $0x1e0] sm:$0xff]
    %v1399 = vld [vmem:[#allocation2 + $0x1e8] sm:$0xff]
    %v1400 = vld [vmem:[#allocation2 + $0x1f0] sm:$0xff]
    %v1401 = vld [vmem:[#allocation2 + $0x1f8] sm:$0xff]
    %v1402 = vld [vmem:[#allocation2 + $0x200] sm:$0xff]
    %v1403 = vld [vmem:[#allocation2 + $0x208] sm:$0xff]
    %v1404 = vld [vmem:[#allocation2 + $0x210] sm:$0xff]
    %v1405 = vld [vmem:[#allocation2 + $0x218] sm:$0xff]
    %v1406 = vld [vmem:[#allocation2 + $0x220] sm:$0xff]
    %v1407 = vld [vmem:[#allocation2 + $0x228] sm:$0xff]
    %v1408 = vld [vmem:[#allocation2 + $0x230] sm:$0xff]
    %v1409 = vld [vmem:[#allocation2 + $0x238] sm:$0xff]
    %v1410 = vld [vmem:[#allocation2 + $0x240] sm:$0xff]
    %v1411 = vld [vmem:[#allocation2 + $0x248] sm:$0xff]
    %v1412 = vld [vmem:[#allocation2 + $0x250] sm:$0xff]
    %v1413 = vld [vmem:[#allocation2 + $0x258] sm:$0xff]
    %v1414 = vld [vmem:[#allocation2 + $0x260] sm:$0xff]
    %v1415 = vld [vmem:[#allocation2 + $0x268] sm:$0xff]
    %v1416 = vld [vmem:[#allocation2 + $0x270] sm:$0xff]
    %v1417 = vld [vmem:[#allocation2 + $0x278] sm:$0xff]
    %v1418 = vld [vmem:[#allocation2 + $0x280] sm:$0xff]
    %v1419 = vld [vmem:[#allocation2 + $0x288] sm:$0xff]
    %v1420 = vld [vmem:[#allocation2 + $0x290] sm:$0xff]
    %v1421 = vld [vmem:[#allocation2 + $0x298] sm:$0xff]
    %v1422 = vld [vmem:[#allocation2 + $0x2a0] sm:$0xff]
    %v1423 = vld [vmem:[#allocation2 + $0x2a8] sm:$0xff]
    %v1424 = vld [vmem:[#allocation2 + $0x2b0] sm:$0xff]
    %v1425 = vld [vmem:[#allocation2 + $0x2b8] sm:$0xff]
    %v1426 = vld [vmem:[#allocation2 + $0x2c0] sm:$0xff]
    %v1427 = vld [vmem:[#allocation2 + $0x2c8] sm:$0xff]
    %v1428 = vld [vmem:[#allocation2 + $0x2d0] sm:$0xff]
    %v1429 = vld [vmem:[#allocation2 + $0x2d8] sm:$0xff]
    %v1430 = vld [vmem:[#allocation2 + $0x2e0] sm:$0xff]
    %v1431 = vld [vmem:[#allocation2 + $0x2e8] sm:$0xff]
    %v1432 = vld [vmem:[#allocation2 + $0x2f0] sm:$0xff]
    %v1433 = vld [vmem:[#allocation2 + $0x2f8] sm:$0xff]
    %v1434 = vld [vmem:[#allocation2 + $0x300] sm:$0xff]
    %v1435 = vld [vmem:[#allocation2 + $0x308] sm:$0xff]
    %v1436 = vld [vmem:[#allocation2 + $0x310] sm:$0xff]
    %v1437 = vld [vmem:[#allocation2 + $0x318] sm:$0xff]
    %v1438 = vld [vmem:[#allocation2 + $0x320] sm:$0xff]
    %v1439 = vld [vmem:[#allocation2 + $0x328] sm:$0xff]
    %v1440 = vld [vmem:[#allocation2 + $0x330] sm:$0xff]
    %v1441 = vld [vmem:[#allocation2 + $0x338] sm:$0xff]
    %v1442 = vld [vmem:[#allocation2 + $0x340] sm:$0xff]
    %v1443 = vld [vmem:[#allocation2 + $0x348] sm:$0xff]
    %v1444 = vld [vmem:[#allocation2 + $0x350] sm:$0xff]
    %v1445 = vld [vmem:[#allocation2 + $0x358] sm:$0xff]
    %v1446 = vld [vmem:[#allocation2 + $0x360] sm:$0xff]
    %v1447 = vld [vmem:[#allocation2 + $0x368] sm:$0xff]
    %v1448 = vld [vmem:[#allocation2 + $0x370] sm:$0xff]
    %v1449 = vld [vmem:[#allocation2 + $0x378] sm:$0xff]
    %v1450 = vld [vmem:[#allocation2 + $0x380] sm:$0xff]
    %v1451 = vld [vmem:[#allocation2 + $0x388] sm:$0xff]
    %v1452 = vld [vmem:[#allocation2 + $0x390] sm:$0xff]
    %v1453 = vld [vmem:[#allocation2 + $0x398] sm:$0xff]
    %v1454 = vld [vmem:[#allocation2 + $0x3a0] sm:$0xff]
    %v1455 = vld [vmem:[#allocation2 + $0x3a8] sm:$0xff]
    %v1456 = vld [vmem:[#allocation2 + $0x3b0] sm:$0xff]
    %v1457 = vld [vmem:[#allocation2 + $0x3b8] sm:$0xff]
    %v1458 = vld [vmem:[#allocation2 + $0x3c0] sm:$0xff]
    %v1459 = vld [vmem:[#allocation2 + $0x3c8] sm:$0xff]
    %v1460 = vld [vmem:[#allocation2 + $0x3d0] sm:$0xff]
    %v1461 = vld [vmem:[#allocation2 + $0x3d8] sm:$0xff]
    %v1462 = vld [vmem:[#allocation2 + $0x3e0] sm:$0xff]
    %v1463 = vld [vmem:[#allocation2 + $0x3e8] sm:$0xff]
    %v1464 = vld [vmem:[#allocation2 + $0x3f0] sm:$0xff]
    %v1465 = vld [vmem:[#allocation2 + $0x3f8] sm:$0xff]
    %v1466 = vld [vmem:[#allocation2 + $0x400] sm:$0xff]
    %v1467 = vld [vmem:[#allocation2 + $0x408] sm:$0xff]
    %v1468 = vld [vmem:[#allocation2 + $0x410] sm:$0xff]
    %v1469 = vld [vmem:[#allocation2 + $0x418] sm:$0xff]
    %v1470 = vld [vmem:[#allocation2 + $0x420] sm:$0xff]
    %v1471 = vld [vmem:[#allocation2 + $0x428] sm:$0xff]
    %v1472 = vld [vmem:[#allocation2 + $0x430] sm:$0xff]
    %v1473 = vld [vmem:[#allocation2 + $0x438] sm:$0xff]
    %v1474 = vld [vmem:[#allocation2 + $0x440] sm:$0xff]
    %v1475 = vld [vmem:[#allocation2 + $0x448] sm:$0xff]
    %v1476 = vld [vmem:[#allocation2 + $0x450] sm:$0xff]
    %v1477 = vld [vmem:[#allocation2 + $0x458] sm:$0xff]
    %v1478 = vld [vmem:[#allocation2 + $0x460] sm:$0xff]
    %v1479 = vld [vmem:[#allocation2 + $0x468] sm:$0xff]
    %v1480 = vld [vmem:[#allocation2 + $0x470] sm:$0xff]
    %v1481 = vld [vmem:[#allocation2 + $0x478] sm:$0xff]
    %v1482 = vld [vmem:[#allocation2 + $0x480] sm:$0xff]
    %v1483 = vld [vmem:[#allocation2 + $0x488] sm:$0xff]
    %v1484 = vld [vmem:[#allocation2 + $0x490] sm:$0xff]
    %v1485 = vld [vmem:[#allocation2 + $0x498] sm:$0xff]
    %v1486 = vld [vmem:[#allocation2 + $0x4a0] sm:$0xff]
    %v1487 = vld [vmem:[#allocation2 + $0x4a8] sm:$0xff]
    %v1488 = vld [vmem:[#allocation2 + $0x4b0] sm:$0xff]
    %v1489 = vld [vmem:[#allocation2 + $0x4b8] sm:$0xff]
    %v1490 = vld [vmem:[#allocation2 + $0x4c0] sm:$0xff]
    %v1491 = vld [vmem:[#allocation2 + $0x4c8] sm:$0xff]
    %v1492 = vld [vmem:[#allocation2 + $0x4d0] sm:$0xff]
    %v1493 = vld [vmem:[#allocation2 + $0x4d8] sm:$0xff]
    %v1494 = vld [vmem:[#allocation2 + $0x4e0] sm:$0xff]
    %v1495 = vld [vmem:[#allocation2 + $0x4e8] sm:$0xff]
    %v1496 = vld [vmem:[#allocation2 + $0x4f0] sm:$0xff]
    %v1497 = vld [vmem:[#allocation2 + $0x4f8] sm:$0xff]
    %v1498 = vld [vmem:[#allocation2 + $0x500] sm:$0xff]
    %v1499 = vld [vmem:[#allocation2 + $0x508] sm:$0xff]
    %v1500 = vld [vmem:[#allocation2 + $0x510] sm:$0xff]
    %v1501 = vld [vmem:[#allocation2 + $0x518] sm:$0xff]
    %v1502 = vld [vmem:[#allocation2 + $0x520] sm:$0xff]
    %v1503 = vld [vmem:[#allocation2 + $0x528] sm:$0xff]
    %v1504 = vld [vmem:[#allocation2 + $0x530] sm:$0xff]
    %v1505 = vld [vmem:[#allocation2 + $0x538] sm:$0xff]
    %v1506 = vld [vmem:[#allocation2 + $0x540] sm:$0xff]
    %v1507 = vld [vmem:[#allocation2 + $0x548] sm:$0xff]
    %v1508 = vld [vmem:[#allocation2 + $0x550] sm:$0xff]
    %v1509 = vld [vmem:[#allocation2 + $0x558] sm:$0xff]
    %v1510 = vld [vmem:[#allocation2 + $0x560] sm:$0xff]
    %v1511 = vld [vmem:[#allocation2 + $0x568] sm:$0xff]
    %v1512 = vld [vmem:[#allocation2 + $0x570] sm:$0xff]
    %v1513 = vld [vmem:[#allocation2 + $0x578] sm:$0xff]
    %v1514 = vld [vmem:[#allocation2 + $0x580] sm:$0xff]
    %v1515 = vld [vmem:[#allocation2 + $0x588] sm:$0xff]
    %v1516 = vld [vmem:[#allocation2 + $0x590] sm:$0xff]
    %v1517 = vld [vmem:[#allocation2 + $0x598] sm:$0xff]
    %v1518 = vld [vmem:[#allocation2 + $0x5a0] sm:$0xff]
    %v1519 = vld [vmem:[#allocation2 + $0x5a8] sm:$0xff]
    %v1520 = vld [vmem:[#allocation2 + $0x5b0] sm:$0xff]
    %v1521 = vld [vmem:[#allocation2 + $0x5b8] sm:$0xff]
    %v1522 = vld [vmem:[#allocation2 + $0x5c0] sm:$0xff]
    %v1523 = vld [vmem:[#allocation2 + $0x5c8] sm:$0xff]
    %v1524 = vld [vmem:[#allocation2 + $0x5d0] sm:$0xff]
    %v1525 = vld [vmem:[#allocation2 + $0x5d8] sm:$0xff]
    %v1526 = vld [vmem:[#allocation2 + $0x5e0] sm:$0xff]
    %v1527 = vld [vmem:[#allocation2 + $0x5e8] sm:$0xff]
    %v1528 = vld [vmem:[#allocation2 + $0x5f0] sm:$0xff]
    %v1529 = vld [vmem:[#allocation2 + $0x5f8] sm:$0xff]
    %v1530 = vld [vmem:[%s3] sm:$0xff]
    %v1531 = vld [vmem:[%s3 + $0x8] sm:$0xff]
    %v1532 = vld [vmem:[%s3 + $0x10] sm:$0xff]
    %v1533 = vld [vmem:[%s3 + $0x18] sm:$0xff]
    %v1534 = vld [vmem:[%s3 + $0x20] sm:$0xff]
    %v1535 = vld [vmem:[%s3 + $0x28] sm:$0xff]
    %v1536 = vld [vmem:[%s3 + $0x30] sm:$0xff]
    %v1537 = vld [vmem:[%s3 + $0x38] sm:$0xff]
    %v1538 = vld [vmem:[%s3 + $0x40] sm:$0xff]
    %v1539 = vld [vmem:[%s3 + $0x48] sm:$0xff]
    %v1540 = vld [vmem:[%s3 + $0x50] sm:$0xff]
    %v1541 = vld [vmem:[%s3 + $0x58] sm:$0xff]
    %v1542 = vld [vmem:[%s3 + $0x60] sm:$0xff]
    %v1543 = vld [vmem:[%s3 + $0x68] sm:$0xff]
    %v1544 = vld [vmem:[%s3 + $0x70] sm:$0xff]
    %v1545 = vld [vmem:[%s3 + $0x78] sm:$0xff]
    %v1546 = vld [vmem:[%s3 + $0x80] sm:$0xff]
    %v1547 = vld [vmem:[%s3 + $0x88] sm:$0xff]
    %v1548 = vld [vmem:[%s3 + $0x90] sm:$0xff]
    %v1549 = vld [vmem:[%s3 + $0x98] sm:$0xff]
    %v1550 = vld [vmem:[%s3 + $0xa0] sm:$0xff]
    %v1551 = vld [vmem:[%s3 + $0xa8] sm:$0xff]
    %v1552 = vld [vmem:[%s3 + $0xb0] sm:$0xff]
    %v1553 = vld [vmem:[%s3 + $0xb8] sm:$0xff]
    %v1554 = vld [vmem:[%s3 + $0xc0] sm:$0xff]
    %v1555 = vld [vmem:[%s3 + $0xc8] sm:$0xff]
    %v1556 = vld [vmem:[%s3 + $0xd0] sm:$0xff]
    %v1557 = vld [vmem:[%s3 + $0xd8] sm:$0xff]
    %v1558 = vld [vmem:[%s3 + $0xe0] sm:$0xff]
    %v1559 = vld [vmem:[%s3 + $0xe8] sm:$0xff]
    %v1560 = vld [vmem:[%s3 + $0xf0] sm:$0xff]
    %v1561 = vld [vmem:[%s3 + $0xf8] sm:$0xff]
    %v1562 = vld [vmem:[%s3 + $0x100] sm:$0xff]
    %v1563 = vld [vmem:[%s3 + $0x108] sm:$0xff]
    %v1564 = vld [vmem:[%s3 + $0x110] sm:$0xff]
    %v1565 = vld [vmem:[%s3 + $0x118] sm:$0xff]
    %v1566 = vld [vmem:[%s3 + $0x120] sm:$0xff]
    %v1567 = vld [vmem:[%s3 + $0x128] sm:$0xff]
    %v1568 = vld [vmem:[%s3 + $0x130] sm:$0xff]
    %v1569 = vld [vmem:[%s3 + $0x138] sm:$0xff]
    %v1570 = vld [vmem:[%s3 + $0x140] sm:$0xff]
    %v1571 = vld [vmem:[%s3 + $0x148] sm:$0xff]
    %v1572 = vld [vmem:[%s3 + $0x150] sm:$0xff]
    %v1573 = vld [vmem:[%s3 + $0x158] sm:$0xff]
    %v1574 = vld [vmem:[%s3 + $0x160] sm:$0xff]
    %v1575 = vld [vmem:[%s3 + $0x168] sm:$0xff]
    %v1576 = vld [vmem:[%s3 + $0x170] sm:$0xff]
    %v1577 = vld [vmem:[%s3 + $0x178] sm:$0xff]
    %v1578 = vld [vmem:[%s3 + $0x180] sm:$0xff]
    %v1579 = vld [vmem:[%s3 + $0x188] sm:$0xff]
    %v1580 = vld [vmem:[%s3 + $0x190] sm:$0xff]
    %v1581 = vld [vmem:[%s3 + $0x198] sm:$0xff]
    %v1582 = vld [vmem:[%s3 + $0x1a0] sm:$0xff]
    %v1583 = vld [vmem:[%s3 + $0x1a8] sm:$0xff]
    %v1584 = vld [vmem:[%s3 + $0x1b0] sm:$0xff]
    %v1585 = vld [vmem:[%s3 + $0x1b8] sm:$0xff]
    %v1586 = vld [vmem:[%s3 + $0x1c0] sm:$0xff]
    %v1587 = vld [vmem:[%s3 + $0x1c8] sm:$0xff]
    %v1588 = vld [vmem:[%s3 + $0x1d0] sm:$0xff]
    %v1589 = vld [vmem:[%s3 + $0x1d8] sm:$0xff]
    %v1590 = vld [vmem:[%s3 + $0x1e0] sm:$0xff]
    %v1591 = vld [vmem:[%s3 + $0x1e8] sm:$0xff]
    %v1592 = vld [vmem:[%s3 + $0x1f0] sm:$0xff]
    %v1593 = vld [vmem:[%s3 + $0x1f8] sm:$0xff]
    %v1594 = vld [vmem:[%s3 + $0x200] sm:$0xff]
    %v1595 = vld [vmem:[%s3 + $0x208] sm:$0xff]
    %v1596 = vld [vmem:[%s3 + $0x210] sm:$0xff]
    %v1597 = vld [vmem:[%s3 + $0x218] sm:$0xff]
    %v1598 = vld [vmem:[%s3 + $0x220] sm:$0xff]
    %v1599 = vld [vmem:[%s3 + $0x228] sm:$0xff]
    %v1600 = vld [vmem:[%s3 + $0x230] sm:$0xff]
    %v1601 = vld [vmem:[%s3 + $0x238] sm:$0xff]
    %v1602 = vld [vmem:[%s3 + $0x240] sm:$0xff]
    %v1603 = vld [vmem:[%s3 + $0x248] sm:$0xff]
    %v1604 = vld [vmem:[%s3 + $0x250] sm:$0xff]
    %v1605 = vld [vmem:[%s3 + $0x258] sm:$0xff]
    %v1606 = vld [vmem:[%s3 + $0x260] sm:$0xff]
    %v1607 = vld [vmem:[%s3 + $0x268] sm:$0xff]
    %v1608 = vld [vmem:[%s3 + $0x270] sm:$0xff]
    %v1609 = vld [vmem:[%s3 + $0x278] sm:$0xff]
    %v1610 = vld [vmem:[%s3 + $0x280] sm:$0xff]
    %v1611 = vld [vmem:[%s3 + $0x288] sm:$0xff]
    %v1612 = vld [vmem:[%s3 + $0x290] sm:$0xff]
    %v1613 = vld [vmem:[%s3 + $0x298] sm:$0xff]
    %v1614 = vld [vmem:[%s3 + $0x2a0] sm:$0xff]
    %v1615 = vld [vmem:[%s3 + $0x2a8] sm:$0xff]
    %v1616 = vld [vmem:[%s3 + $0x2b0] sm:$0xff]
    %v1617 = vld [vmem:[%s3 + $0x2b8] sm:$0xff]
    %v1618 = vld [vmem:[%s3 + $0x2c0] sm:$0xff]
    %v1619 = vld [vmem:[%s3 + $0x2c8] sm:$0xff]
    %v1620 = vld [vmem:[%s3 + $0x2d0] sm:$0xff]
    %v1621 = vld [vmem:[%s3 + $0x2d8] sm:$0xff]
    %v1622 = vld [vmem:[%s3 + $0x2e0] sm:$0xff]
    %v1623 = vld [vmem:[%s3 + $0x2e8] sm:$0xff]
    %v1624 = vld [vmem:[%s3 + $0x2f0] sm:$0xff]
    %v1625 = vld [vmem:[%s3 + $0x2f8] sm:$0xff]
    %v1626 = vld [vmem:[%s3 + $0x300] sm:$0xff]
    %v1627 = vld [vmem:[%s3 + $0x308] sm:$0xff]
    %v1628 = vld [vmem:[%s3 + $0x310] sm:$0xff]
    %v1629 = vld [vmem:[%s3 + $0x318] sm:$0xff]
    %v1630 = vld [vmem:[%s3 + $0x320] sm:$0xff]
    %v1631 = vld [vmem:[%s3 + $0x328] sm:$0xff]
    %v1632 = vld [vmem:[%s3 + $0x330] sm:$0xff]
    %v1633 = vld [vmem:[%s3 + $0x338] sm:$0xff]
    %v1634 = vld [vmem:[%s3 + $0x340] sm:$0xff]
    %v1635 = vld [vmem:[%s3 + $0x348] sm:$0xff]
    %v1636 = vld [vmem:[%s3 + $0x350] sm:$0xff]
    %v1637 = vld [vmem:[%s3 + $0x358] sm:$0xff]
    %v1638 = vld [vmem:[%s3 + $0x360] sm:$0xff]
    %v1639 = vld [vmem:[%s3 + $0x368] sm:$0xff]
    %v1640 = vld [vmem:[%s3 + $0x370] sm:$0xff]
    %v1641 = vld [vmem:[%s3 + $0x378] sm:$0xff]
    %v1642 = vld [vmem:[%s3 + $0x380] sm:$0xff]
    %v1643 = vld [vmem:[%s3 + $0x388] sm:$0xff]
    %v1644 = vld [vmem:[%s3 + $0x390] sm:$0xff]
    %v1645 = vld [vmem:[%s3 + $0x398] sm:$0xff]
    %v1646 = vld [vmem:[%s3 + $0x3a0] sm:$0xff]
    %v1647 = vld [vmem:[%s3 + $0x3a8] sm:$0xff]
    %v1648 = vld [vmem:[%s3 + $0x3b0] sm:$0xff]
    %v1649 = vld [vmem:[%s3 + $0x3b8] sm:$0xff]
    %v1650 = vld [vmem:[%s3 + $0x3c0] sm:$0xff]
    %v1651 = vld [vmem:[%s3 + $0x3c8] sm:$0xff]
    %v1652 = vld [vmem:[%s3 + $0x3d0] sm:$0xff]
    %v1653 = vld [vmem:[%s3 + $0x3d8] sm:$0xff]
    %v1654 = vld [vmem:[%s3 + $0x3e0] sm:$0xff]
    %v1655 = vld [vmem:[%s3 + $0x3e8] sm:$0xff]
    %v1656 = vld [vmem:[%s3 + $0x3f0] sm:$0xff]
    %v1657 = vld [vmem:[%s3 + $0x3f8] sm:$0xff]
    %v1658 = vld [vmem:[%s3 + $0x400] sm:$0xff]
    %v1659 = vld [vmem:[%s3 + $0x408] sm:$0xff]
    %v1660 = vld [vmem:[%s3 + $0x410] sm:$0xff]
    %v1661 = vld [vmem:[%s3 + $0x418] sm:$0xff]
    %v1662 = vld [vmem:[%s3 + $0x420] sm:$0xff]
    %v1663 = vld [vmem:[%s3 + $0x428] sm:$0xff]
    %v1664 = vld [vmem:[%s3 + $0x430] sm:$0xff]
    %v1665 = vld [vmem:[%s3 + $0x438] sm:$0xff]
    %v1666 = vld [vmem:[%s3 + $0x440] sm:$0xff]
    %v1667 = vld [vmem:[%s3 + $0x448] sm:$0xff]
    %v1668 = vld [vmem:[%s3 + $0x450] sm:$0xff]
    %v1669 = vld [vmem:[%s3 + $0x458] sm:$0xff]
    %v1670 = vld [vmem:[%s3 + $0x460] sm:$0xff]
    %v1671 = vld [vmem:[%s3 + $0x468] sm:$0xff]
    %v1672 = vld [vmem:[%s3 + $0x470] sm:$0xff]
    %v1673 = vld [vmem:[%s3 + $0x478] sm:$0xff]
    %v1674 = vld [vmem:[%s3 + $0x480] sm:$0xff]
    %v1675 = vld [vmem:[%s3 + $0x488] sm:$0xff]
    %v1676 = vld [vmem:[%s3 + $0x490] sm:$0xff]
    %v1677 = vld [vmem:[%s3 + $0x498] sm:$0xff]
    %v1678 = vld [vmem:[%s3 + $0x4a0] sm:$0xff]
    %v1679 = vld [vmem:[%s3 + $0x4a8] sm:$0xff]
    %v1680 = vld [vmem:[%s3 + $0x4b0] sm:$0xff]
    %v1681 = vld [vmem:[%s3 + $0x4b8] sm:$0xff]
    %v1682 = vld [vmem:[%s3 + $0x4c0] sm:$0xff]
    %v1683 = vld [vmem:[%s3 + $0x4c8] sm:$0xff]
    %v1684 = vld [vmem:[%s3 + $0x4d0] sm:$0xff]
    %v1685 = vld [vmem:[%s3 + $0x4d8] sm:$0xff]
    %v1686 = vld [vmem:[%s3 + $0x4e0] sm:$0xff]
    %v1687 = vld [vmem:[%s3 + $0x4e8] sm:$0xff]
    %v1688 = vld [vmem:[%s3 + $0x4f0] sm:$0xff]
    %v1689 = vld [vmem:[%s3 + $0x4f8] sm:$0xff]
    %v1690 = vld [vmem:[%s3 + $0x500] sm:$0xff]
    %v1691 = vld [vmem:[%s3 + $0x508] sm:$0xff]
    %v1692 = vld [vmem:[%s3 + $0x510] sm:$0xff]
    %v1693 = vld [vmem:[%s3 + $0x518] sm:$0xff]
    %v1694 = vld [vmem:[%s3 + $0x520] sm:$0xff]
    %v1695 = vld [vmem:[%s3 + $0x528] sm:$0xff]
    %v1696 = vld [vmem:[%s3 + $0x530] sm:$0xff]
    %v1697 = vld [vmem:[%s3 + $0x538] sm:$0xff]
    %v1698 = vld [vmem:[%s3 + $0x540] sm:$0xff]
    %v1699 = vld [vmem:[%s3 + $0x548] sm:$0xff]
    %v1700 = vld [vmem:[%s3 + $0x550] sm:$0xff]
    %v1701 = vld [vmem:[%s3 + $0x558] sm:$0xff]
    %v1702 = vld [vmem:[%s3 + $0x560] sm:$0xff]
    %v1703 = vld [vmem:[%s3 + $0x568] sm:$0xff]
    %v1704 = vld [vmem:[%s3 + $0x570] sm:$0xff]
    %v1705 = vld [vmem:[%s3 + $0x578] sm:$0xff]
    %v1706 = vld [vmem:[%s3 + $0x580] sm:$0xff]
    %v1707 = vld [vmem:[%s3 + $0x588] sm:$0xff]
    %v1708 = vld [vmem:[%s3 + $0x590] sm:$0xff]
    %v1709 = vld [vmem:[%s3 + $0x598] sm:$0xff]
    %v1710 = vld [vmem:[%s3 + $0x5a0] sm:$0xff]
    %v1711 = vld [vmem:[%s3 + $0x5a8] sm:$0xff]
    %v1712 = vld [vmem:[%s3 + $0x5b0] sm:$0xff]
    %v1713 = vld [vmem:[%s3 + $0x5b8] sm:$0xff]
    %v1714 = vld [vmem:[%s3 + $0x5c0] sm:$0xff]
    %v1715 = vld [vmem:[%s3 + $0x5c8] sm:$0xff]
    %v1716 = vld [vmem:[%s3 + $0x5d0] sm:$0xff]
    %v1717 = vld [vmem:[%s3 + $0x5d8] sm:$0xff]
    %v1718 = vld [vmem:[%s3 + $0x5e0] sm:$0xff]
    %v1719 = vld [vmem:[%s3 + $0x5e8] sm:$0xff]
    %v1720 = vld [vmem:[%s3 + $0x5f0] sm:$0xff]
    %v1721 = vld [vmem:[%s3 + $0x5f8] sm:$0xff]
    %v1722 = vld [vmem:[%s4] sm:$0x1]
    %v1724 = vlaneseq
    %v1725 = vshrl.u32 %v1724, 7
    %v1726 = vsub.s32 0, %v1725
    %v1727 = vrot.slane %v1722, %v1726
    %1729 = vmatprep.subr.mxu0 0.0
    %1730 = vmatpush1.msra.mxu0 %v1545
    %1731 = vmatprep.subr.mxu0 0.0
    %1732 = vmatpush1.msra.mxu0 %v1544
    %1733 = vmatprep.subr.mxu0 0.0
    %1734 = vmatpush1.msra.mxu0 %v1543
    %1735 = vmatprep.subr.mxu0 0.0
    %1736 = vmatpush1.msra.mxu0 %v1542
    %1737 = vmatprep.subr.mxu0 0.0
    %1738 = vmatpush1.msra.mxu0 %v1541
    %1739 = vmatprep.subr.mxu0 0.0
    %1740 = vmatpush1.msra.mxu0 %v1540
    %1741 = vmatprep.subr.mxu0 0.0
    %1742 = vmatpush1.msra.mxu0 %v1539
    %1743 = vmatprep.subr.mxu0 0.0
    %1744 = vmatpush1.msra.mxu0 %v1538
    %1745 = vmatprep.subr.mxu0 0.0
    %1746 = vmatpush1.msra.mxu0 %v1537
    %1747 = vmatprep.subr.mxu0 0.0
    %1748 = vmatpush1.msra.mxu0 %v1536
    %1749 = vmatprep.subr.mxu0 0.0
    %1750 = vmatpush1.msra.mxu0 %v1535
    %1751 = vmatprep.subr.mxu0 0.0
    %1752 = vmatpush1.msra.mxu0 %v1534
    %1753 = vmatprep.subr.mxu0 0.0
    %1754 = vmatpush1.msra.mxu0 %v1533
    %1755 = vmatprep.subr.mxu0 0.0
    %1756 = vmatpush1.msra.mxu0 %v1532
    %1757 = vmatprep.subr.mxu0 0.0
    %1758 = vmatpush1.msra.mxu0 %v1531
    %1759 = vmatprep.subr.mxu0 0.0
    %1760 = vmatpush1.msra.mxu0 %v1530
    %1761 = vmatprep.subr.mxu0 0.0
    %1762 = vmatpush2.msra.mxu0 %v1561
    %1763 = vmatprep.subr.mxu0 0.0
    %1764 = vmatpush2.msra.mxu0 %v1560
    %1765 = vmatprep.subr.mxu0 0.0
    %1766 = vmatpush2.msra.mxu0 %v1559
    %1767 = vmatprep.subr.mxu0 0.0
    %1768 = vmatpush2.msra.mxu0 %v1558
    %1769 = vmatprep.subr.mxu0 0.0
    %1770 = vmatpush2.msra.mxu0 %v1557
    %1771 = vmatprep.subr.mxu0 0.0
    %1772 = vmatpush2.msra.mxu0 %v1556
    %1773 = vmatprep.subr.mxu0 0.0
    %1774 = vmatpush2.msra.mxu0 %v1555
    %1775 = vmatprep.subr.mxu0 0.0
    %1776 = vmatpush2.msra.mxu0 %v1554
    %1777 = vmatprep.subr.mxu0 0.0
    %1778 = vmatpush2.msra.mxu0 %v1553
    %1779 = vmatprep.subr.mxu0 0.0
    %1780 = vmatpush2.msra.mxu0 %v1552
    %1781 = vmatprep.subr.mxu0 0.0
    %1782 = vmatpush2.msra.mxu0 %v1551
    %1783 = vmatprep.subr.mxu0 0.0
    %1784 = vmatpush2.msra.mxu0 %v1550
    %1785 = vmatprep.subr.mxu0 0.0
    %1786 = vmatpush2.msra.mxu0 %v1549
    %1787 = vmatprep.subr.mxu0 0.0
    %1788 = vmatpush2.msra.mxu0 %v1548
    %1789 = vmatprep.subr.mxu0 0.0
    %1790 = vmatpush2.msra.mxu0 %v1547
    %1791 = vmatprep.subr.mxu0 0.0
    %1792 = vmatpush2.msra.mxu0 %v1546
    %1793 = vmatprep.mubr.f32.mxu0 %v1339
    %1794 = vmatmul.mubr.f32.gmra.mxu0 %v1338
    %v1795 = vpop.f32.mrf.mxu0
    %v1796 = vadd.f32 %v1727, %v1795
    %v1797 = vpop.f32.mrf.mxu0
    %1798 = vmatprep.mubr.f32.mxu0 %v1351
    %1799 = vmatmul.mubr.f32.gmra.mxu0 %v1350
    %v1800 = vpop.f32.mrf.mxu0
    %v1801 = vadd.f32 %v1727, %v1800
    %v1802 = vpop.f32.mrf.mxu0
    %1803 = vmatprep.mubr.f32.mxu0 %v1363
    %1804 = vmatmul.mubr.f32.gmra.mxu0 %v1362
    %v1805 = vpop.f32.mrf.mxu0
    %v1806 = vadd.f32 %v1727, %v1805
    %v1807 = vpop.f32.mrf.mxu0
    %1808 = vmatprep.mubr.f32.mxu0 %v1375
    %1809 = vmatmul.mubr.f32.gmra.mxu0 %v1374
    %v1810 = vpop.f32.mrf.mxu0
    %v1811 = vadd.f32 %v1727, %v1810
    %v1812 = vpop.f32.mrf.mxu0
    %1813 = vmatprep.mubr.f32.mxu0 %v1387
    %1814 = vmatmul.mubr.f32.gmra.mxu0 %v1386
    %v1815 = vpop.f32.mrf.mxu0
    %v1816 = vadd.f32 %v1727, %v1815
    %v1817 = vpop.f32.mrf.mxu0
    %1818 = vmatprep.mubr.f32.mxu0 %v1399
    %1819 = vmatmul.mubr.f32.gmra.mxu0 %v1398
    %v1820 = vpop.f32.mrf.mxu0
    %v1821 = vadd.f32 %v1727, %v1820
    %v1822 = vpop.f32.mrf.mxu0
    %1823 = vmatprep.mubr.f32.mxu0 %v1411
    %1824 = vmatmul.mubr.f32.gmra.mxu0 %v1410
    %v1825 = vpop.f32.mrf.mxu0
    %v1826 = vadd.f32 %v1727, %v1825
    %v1827 = vpop.f32.mrf.mxu0
    %1828 = vmatprep.mubr.f32.mxu0 %v1423
    %1829 = vmatmul.mubr.f32.gmra.mxu0 %v1422
    %v1830 = vpop.f32.mrf.mxu0
    %v1831 = vadd.f32 %v1727, %v1830
    %v1832 = vpop.f32.mrf.mxu0
    %1833 = vmatprep.mubr.f32.mxu0 %v1435
    %1834 = vmatmul.mubr.f32.gmra.mxu0 %v1434
    %v1835 = vpop.f32.mrf.mxu0
    %v1836 = vadd.f32 %v1727, %v1835
    %v1837 = vpop.f32.mrf.mxu0
    %1838 = vmatprep.mubr.f32.mxu0 %v1447
    %1839 = vmatmul.mubr.f32.gmra.mxu0 %v1446
    %v1840 = vpop.f32.mrf.mxu0
    %v1841 = vadd.f32 %v1727, %v1840
    %v1842 = vpop.f32.mrf.mxu0
    %1843 = vmatprep.mubr.f32.mxu0 %v1459
    %1844 = vmatmul.mubr.f32.gmra.mxu0 %v1458
    %v1845 = vpop.f32.mrf.mxu0
    %v1846 = vadd.f32 %v1727, %v1845
    %v1847 = vpop.f32.mrf.mxu0
    %1848 = vmatprep.mubr.f32.mxu0 %v1471
    %1849 = vmatmul.mubr.f32.gmra.mxu0 %v1470
    %v1850 = vpop.f32.mrf.mxu0
    %v1851 = vadd.f32 %v1727, %v1850
    %v1852 = vpop.f32.mrf.mxu0
    %1853 = vmatprep.mubr.f32.mxu0 %v1483
    %1854 = vmatmul.mubr.f32.gmra.mxu0 %v1482
    %v1855 = vpop.f32.mrf.mxu0
    %v1856 = vadd.f32 %v1727, %v1855
    %v1857 = vpop.f32.mrf.mxu0
    %1858 = vmatprep.mubr.f32.mxu0 %v1495
    %1859 = vmatmul.mubr.f32.gmra.mxu0 %v1494
    %v1860 = vpop.f32.mrf.mxu0
    %v1861 = vadd.f32 %v1727, %v1860
    %v1862 = vpop.f32.mrf.mxu0
    %1863 = vmatprep.mubr.f32.mxu0 %v1507
    %1864 = vmatmul.mubr.f32.gmra.mxu0 %v1506
    %v1865 = vpop.f32.mrf.mxu0
    %v1866 = vadd.f32 %v1727, %v1865
    %v1867 = vpop.f32.mrf.mxu0
    %1868 = vmatprep.mubr.f32.mxu0 %v1519
    %1869 = vmatmul.mubr.f32.gmra.mxu0 %v1518
    %v1870 = vpop.f32.mrf.mxu0
    %v1871 = vadd.f32 %v1727, %v1870
    %v1872 = vpop.f32.mrf.mxu0
    %1873 = vdwg.mxu0
    %1874 = vmatprep.subr.mxu0 0.0
    %1875 = vmatpush1.msra.mxu0 %v1577
    %1876 = vmatprep.subr.mxu0 0.0
    %1877 = vmatpush1.msra.mxu0 %v1576
    %1878 = vmatprep.subr.mxu0 0.0
    %1879 = vmatpush1.msra.mxu0 %v1575
    %1880 = vmatprep.subr.mxu0 0.0
    %1881 = vmatpush1.msra.mxu0 %v1574
    %1882 = vmatprep.subr.mxu0 0.0
    %1883 = vmatpush1.msra.mxu0 %v1573
    %1884 = vmatprep.subr.mxu0 0.0
    %1885 = vmatpush1.msra.mxu0 %v1572
    %1886 = vmatprep.subr.mxu0 0.0
    %1887 = vmatpush1.msra.mxu0 %v1571
    %1888 = vmatprep.subr.mxu0 0.0
    %1889 = vmatpush1.msra.mxu0 %v1570
    %1890 = vmatprep.subr.mxu0 0.0
    %1891 = vmatpush1.msra.mxu0 %v1569
    %1892 = vmatprep.subr.mxu0 0.0
    %1893 = vmatpush1.msra.mxu0 %v1568
    %1894 = vmatprep.subr.mxu0 0.0
    %1895 = vmatpush1.msra.mxu0 %v1567
    %1896 = vmatprep.subr.mxu0 0.0
    %1897 = vmatpush1.msra.mxu0 %v1566
    %1898 = vmatprep.subr.mxu0 0.0
    %1899 = vmatpush1.msra.mxu0 %v1565
    %1900 = vmatprep.subr.mxu0 0.0
    %1901 = vmatpush1.msra.mxu0 %v1564
    %1902 = vmatprep.subr.mxu0 0.0
    %1903 = vmatpush1.msra.mxu0 %v1563
    %1904 = vmatprep.subr.mxu0 0.0
    %1905 = vmatpush1.msra.mxu0 %v1562
    %1906 = vmatprep.subr.mxu0 0.0
    %1907 = vmatpush2.msra.mxu0 %v1593
    %1908 = vmatprep.subr.mxu0 0.0
    %1909 = vmatpush2.msra.mxu0 %v1592
    %1910 = vmatprep.subr.mxu0 0.0
    %1911 = vmatpush2.msra.mxu0 %v1591
    %1912 = vmatprep.subr.mxu0 0.0
    %1913 = vmatpush2.msra.mxu0 %v1590
    %1914 = vmatprep.subr.mxu0 0.0
    %1915 = vmatpush2.msra.mxu0 %v1589
    %1916 = vmatprep.subr.mxu0 0.0
    %1917 = vmatpush2.msra.mxu0 %v1588
    %1918 = vmatprep.subr.mxu0 0.0
    %1919 = vmatpush2.msra.mxu0 %v1587
    %1920 = vmatprep.subr.mxu0 0.0
    %1921 = vmatpush2.msra.mxu0 %v1586
    %1922 = vmatprep.subr.mxu0 0.0
    %1923 = vmatpush2.msra.mxu0 %v1585
    %1924 = vmatprep.subr.mxu0 0.0
    %1925 = vmatpush2.msra.mxu0 %v1584
    %1926 = vmatprep.subr.mxu0 0.0
    %1927 = vmatpush2.msra.mxu0 %v1583
    %1928 = vmatprep.subr.mxu0 0.0
    %1929 = vmatpush2.msra.mxu0 %v1582
    %1930 = vmatprep.subr.mxu0 0.0
    %1931 = vmatpush2.msra.mxu0 %v1581
    %1932 = vmatprep.subr.mxu0 0.0
    %1933 = vmatpush2.msra.mxu0 %v1580
    %1934 = vmatprep.subr.mxu0 0.0
    %1935 = vmatpush2.msra.mxu0 %v1579
    %1936 = vmatprep.subr.mxu0 0.0
    %1937 = vmatpush2.msra.mxu0 %v1578
    %1938 = vmatprep.mubr.f32.mxu0 %v1341
    %1939 = vmatmul.mubr.f32.gmra.mxu0 %v1340
    %v1940 = vpop.f32.mrf.mxu0
    %v1941 = vadd.f32 %v1796, %v1940
    %v1942 = vpop.f32.mrf.mxu0
    %1943 = vmatprep.mubr.f32.mxu0 %v1353
    %1944 = vmatmul.mubr.f32.gmra.mxu0 %v1352
    %v1945 = vpop.f32.mrf.mxu0
    %v1946 = vadd.f32 %v1801, %v1945
    %v1947 = vpop.f32.mrf.mxu0
    %1948 = vmatprep.mubr.f32.mxu0 %v1365
    %1949 = vmatmul.mubr.f32.gmra.mxu0 %v1364
    %v1950 = vpop.f32.mrf.mxu0
    %v1951 = vadd.f32 %v1806, %v1950
    %v1952 = vpop.f32.mrf.mxu0
    %1953 = vmatprep.mubr.f32.mxu0 %v1377
    %1954 = vmatmul.mubr.f32.gmra.mxu0 %v1376
    %v1955 = vpop.f32.mrf.mxu0
    %v1956 = vadd.f32 %v1811, %v1955
    %v1957 = vpop.f32.mrf.mxu0
    %1958 = vmatprep.mubr.f32.mxu0 %v1389
    %1959 = vmatmul.mubr.f32.gmra.mxu0 %v1388
    %v1960 = vpop.f32.mrf.mxu0
    %v1961 = vadd.f32 %v1816, %v1960
    %v1962 = vpop.f32.mrf.mxu0
    %1963 = vmatprep.mubr.f32.mxu0 %v1401
    %1964 = vmatmul.mubr.f32.gmra.mxu0 %v1400
    %v1965 = vpop.f32.mrf.mxu0
    %v1966 = vadd.f32 %v1821, %v1965
    %v1967 = vpop.f32.mrf.mxu0
    %1968 = vmatprep.mubr.f32.mxu0 %v1413
    %1969 = vmatmul.mubr.f32.gmra.mxu0 %v1412
    %v1970 = vpop.f32.mrf.mxu0
    %v1971 = vadd.f32 %v1826, %v1970
    %v1972 = vpop.f32.mrf.mxu0
    %1973 = vmatprep.mubr.f32.mxu0 %v1425
    %1974 = vmatmul.mubr.f32.gmra.mxu0 %v1424
    %v1975 = vpop.f32.mrf.mxu0
    %v1976 = vadd.f32 %v1831, %v1975
    %v1977 = vpop.f32.mrf.mxu0
    %1978 = vmatprep.mubr.f32.mxu0 %v1437
    %1979 = vmatmul.mubr.f32.gmra.mxu0 %v1436
    %v1980 = vpop.f32.mrf.mxu0
    %v1981 = vadd.f32 %v1836, %v1980
    %v1982 = vpop.f32.mrf.mxu0
    %1983 = vmatprep.mubr.f32.mxu0 %v1449
    %1984 = vmatmul.mubr.f32.gmra.mxu0 %v1448
    %v1985 = vpop.f32.mrf.mxu0
    %v1986 = vadd.f32 %v1841, %v1985
    %v1987 = vpop.f32.mrf.mxu0
    %1988 = vmatprep.mubr.f32.mxu0 %v1461
    %1989 = vmatmul.mubr.f32.gmra.mxu0 %v1460
    %v1990 = vpop.f32.mrf.mxu0
    %v1991 = vadd.f32 %v1846, %v1990
    %v1992 = vpop.f32.mrf.mxu0
    %1993 = vmatprep.mubr.f32.mxu0 %v1473
    %1994 = vmatmul.mubr.f32.gmra.mxu0 %v1472
    %v1995 = vpop.f32.mrf.mxu0
    %v1996 = vadd.f32 %v1851, %v1995
    %v1997 = vpop.f32.mrf.mxu0
    %1998 = vmatprep.mubr.f32.mxu0 %v1485
    %1999 = vmatmul.mubr.f32.gmra.mxu0 %v1484
    %v2000 = vpop.f32.mrf.mxu0
    %v2001 = vadd.f32 %v1856, %v2000
    %v2002 = vpop.f32.mrf.mxu0
    %2003 = vmatprep.mubr.f32.mxu0 %v1497
    %2004 = vmatmul.mubr.f32.gmra.mxu0 %v1496
    %v2005 = vpop.f32.mrf.mxu0
    %v2006 = vadd.f32 %v1861, %v2005
    %v2007 = vpop.f32.mrf.mxu0
    %2008 = vmatprep.mubr.f32.mxu0 %v1509
    %2009 = vmatmul.mubr.f32.gmra.mxu0 %v1508
    %v2010 = vpop.f32.mrf.mxu0
    %v2011 = vadd.f32 %v1866, %v2010
    %v2012 = vpop.f32.mrf.mxu0
    %2013 = vmatprep.mubr.f32.mxu0 %v1521
    %2014 = vmatmul.mubr.f32.gmra.mxu0 %v1520
    %v2015 = vpop.f32.mrf.mxu0
    %v2016 = vadd.f32 %v1871, %v2015
    %v2017 = vpop.f32.mrf.mxu0
    %2018 = vdwg.mxu0
    %2019 = vmatprep.subr.mxu0 0.0
    %2020 = vmatpush1.msra.mxu0 %v1609
    %2021 = vmatprep.subr.mxu0 0.0
    %2022 = vmatpush1.msra.mxu0 %v1608
    %2023 = vmatprep.subr.mxu0 0.0
    %2024 = vmatpush1.msra.mxu0 %v1607
    %2025 = vmatprep.subr.mxu0 0.0
    %2026 = vmatpush1.msra.mxu0 %v1606
    %2027 = vmatprep.subr.mxu0 0.0
    %2028 = vmatpush1.msra.mxu0 %v1605
    %2029 = vmatprep.subr.mxu0 0.0
    %2030 = vmatpush1.msra.mxu0 %v1604
    %2031 = vmatprep.subr.mxu0 0.0
    %2032 = vmatpush1.msra.mxu0 %v1603
    %2033 = vmatprep.subr.mxu0 0.0
    %2034 = vmatpush1.msra.mxu0 %v1602
    %2035 = vmatprep.subr.mxu0 0.0
    %2036 = vmatpush1.msra.mxu0 %v1601
    %2037 = vmatprep.subr.mxu0 0.0
    %2038 = vmatpush1.msra.mxu0 %v1600
    %2039 = vmatprep.subr.mxu0 0.0
    %2040 = vmatpush1.msra.mxu0 %v1599
    %2041 = vmatprep.subr.mxu0 0.0
    %2042 = vmatpush1.msra.mxu0 %v1598
    %2043 = vmatprep.subr.mxu0 0.0
    %2044 = vmatpush1.msra.mxu0 %v1597
    %2045 = vmatprep.subr.mxu0 0.0
    %2046 = vmatpush1.msra.mxu0 %v1596
    %2047 = vmatprep.subr.mxu0 0.0
    %2048 = vmatpush1.msra.mxu0 %v1595
    %2049 = vmatprep.subr.mxu0 0.0
    %2050 = vmatpush1.msra.mxu0 %v1594
    %2051 = vmatprep.subr.mxu0 0.0
    %2052 = vmatpush2.msra.mxu0 %v1625
    %2053 = vmatprep.subr.mxu0 0.0
    %2054 = vmatpush2.msra.mxu0 %v1624
    %2055 = vmatprep.subr.mxu0 0.0
    %2056 = vmatpush2.msra.mxu0 %v1623
    %2057 = vmatprep.subr.mxu0 0.0
    %2058 = vmatpush2.msra.mxu0 %v1622
    %2059 = vmatprep.subr.mxu0 0.0
    %2060 = vmatpush2.msra.mxu0 %v1621
    %2061 = vmatprep.subr.mxu0 0.0
    %2062 = vmatpush2.msra.mxu0 %v1620
    %2063 = vmatprep.subr.mxu0 0.0
    %2064 = vmatpush2.msra.mxu0 %v1619
    %2065 = vmatprep.subr.mxu0 0.0
    %2066 = vmatpush2.msra.mxu0 %v1618
    %2067 = vmatprep.subr.mxu0 0.0
    %2068 = vmatpush2.msra.mxu0 %v1617
    %2069 = vmatprep.subr.mxu0 0.0
    %2070 = vmatpush2.msra.mxu0 %v1616
    %2071 = vmatprep.subr.mxu0 0.0
    %2072 = vmatpush2.msra.mxu0 %v1615
    %2073 = vmatprep.subr.mxu0 0.0
    %2074 = vmatpush2.msra.mxu0 %v1614
    %2075 = vmatprep.subr.mxu0 0.0
    %2076 = vmatpush2.msra.mxu0 %v1613
    %2077 = vmatprep.subr.mxu0 0.0
    %2078 = vmatpush2.msra.mxu0 %v1612
    %2079 = vmatprep.subr.mxu0 0.0
    %2080 = vmatpush2.msra.mxu0 %v1611
    %2081 = vmatprep.subr.mxu0 0.0
    %2082 = vmatpush2.msra.mxu0 %v1610
    %2083 = vmatprep.mubr.f32.mxu0 %v1343
    %2084 = vmatmul.mubr.f32.gmra.mxu0 %v1342
    %v2085 = vpop.f32.mrf.mxu0
    %v2086 = vadd.f32 %v1941, %v2085
    %v2087 = vpop.f32.mrf.mxu0
    %2088 = vmatprep.mubr.f32.mxu0 %v1355
    %2089 = vmatmul.mubr.f32.gmra.mxu0 %v1354
    %v2090 = vpop.f32.mrf.mxu0
    %v2091 = vadd.f32 %v1946, %v2090
    %v2092 = vpop.f32.mrf.mxu0
    %2093 = vmatprep.mubr.f32.mxu0 %v1367
    %2094 = vmatmul.mubr.f32.gmra.mxu0 %v1366
    %v2095 = vpop.f32.mrf.mxu0
    %v2096 = vadd.f32 %v1951, %v2095
    %v2097 = vpop.f32.mrf.mxu0
    %2098 = vmatprep.mubr.f32.mxu0 %v1379
    %2099 = vmatmul.mubr.f32.gmra.mxu0 %v1378
    %v2100 = vpop.f32.mrf.mxu0
    %v2101 = vadd.f32 %v1956, %v2100
    %v2102 = vpop.f32.mrf.mxu0
    %2103 = vmatprep.mubr.f32.mxu0 %v1391
    %2104 = vmatmul.mubr.f32.gmra.mxu0 %v1390
    %v2105 = vpop.f32.mrf.mxu0
    %v2106 = vadd.f32 %v1961, %v2105
    %v2107 = vpop.f32.mrf.mxu0
    %2108 = vmatprep.mubr.f32.mxu0 %v1403
    %2109 = vmatmul.mubr.f32.gmra.mxu0 %v1402
    %v2110 = vpop.f32.mrf.mxu0
    %v2111 = vadd.f32 %v1966, %v2110
    %v2112 = vpop.f32.mrf.mxu0
    %2113 = vmatprep.mubr.f32.mxu0 %v1415
    %2114 = vmatmul.mubr.f32.gmra.mxu0 %v1414
    %v2115 = vpop.f32.mrf.mxu0
    %v2116 = vadd.f32 %v1971, %v2115
    %v2117 = vpop.f32.mrf.mxu0
    %2118 = vmatprep.mubr.f32.mxu0 %v1427
    %2119 = vmatmul.mubr.f32.gmra.mxu0 %v1426
    %v2120 = vpop.f32.mrf.mxu0
    %v2121 = vadd.f32 %v1976, %v2120
    %v2122 = vpop.f32.mrf.mxu0
    %2123 = vmatprep.mubr.f32.mxu0 %v1439
    %2124 = vmatmul.mubr.f32.gmra.mxu0 %v1438
    %v2125 = vpop.f32.mrf.mxu0
    %v2126 = vadd.f32 %v1981, %v2125
    %v2127 = vpop.f32.mrf.mxu0
    %2128 = vmatprep.mubr.f32.mxu0 %v1451
    %2129 = vmatmul.mubr.f32.gmra.mxu0 %v1450
    %v2130 = vpop.f32.mrf.mxu0
    %v2131 = vadd.f32 %v1986, %v2130
    %v2132 = vpop.f32.mrf.mxu0
    %2133 = vmatprep.mubr.f32.mxu0 %v1463
    %2134 = vmatmul.mubr.f32.gmra.mxu0 %v1462
    %v2135 = vpop.f32.mrf.mxu0
    %v2136 = vadd.f32 %v1991, %v2135
    %v2137 = vpop.f32.mrf.mxu0
    %2138 = vmatprep.mubr.f32.mxu0 %v1475
    %2139 = vmatmul.mubr.f32.gmra.mxu0 %v1474
    %v2140 = vpop.f32.mrf.mxu0
    %v2141 = vadd.f32 %v1996, %v2140
    %v2142 = vpop.f32.mrf.mxu0
    %2143 = vmatprep.mubr.f32.mxu0 %v1487
    %2144 = vmatmul.mubr.f32.gmra.mxu0 %v1486
    %v2145 = vpop.f32.mrf.mxu0
    %v2146 = vadd.f32 %v2001, %v2145
    %v2147 = vpop.f32.mrf.mxu0
    %2148 = vmatprep.mubr.f32.mxu0 %v1499
    %2149 = vmatmul.mubr.f32.gmra.mxu0 %v1498
    %v2150 = vpop.f32.mrf.mxu0
    %v2151 = vadd.f32 %v2006, %v2150
    %v2152 = vpop.f32.mrf.mxu0
    %2153 = vmatprep.mubr.f32.mxu0 %v1511
    %2154 = vmatmul.mubr.f32.gmra.mxu0 %v1510
    %v2155 = vpop.f32.mrf.mxu0
    %v2156 = vadd.f32 %v2011, %v2155
    %v2157 = vpop.f32.mrf.mxu0
    %2158 = vmatprep.mubr.f32.mxu0 %v1523
    %2159 = vmatmul.mubr.f32.gmra.mxu0 %v1522
    %v2160 = vpop.f32.mrf.mxu0
    %v2161 = vadd.f32 %v2016, %v2160
    %v2162 = vpop.f32.mrf.mxu0
    %2163 = vdwg.mxu0
    %2164 = vmatprep.subr.mxu0 0.0
    %2165 = vmatpush1.msra.mxu0 %v1641
    %2166 = vmatprep.subr.mxu0 0.0
    %2167 = vmatpush1.msra.mxu0 %v1640
    %2168 = vmatprep.subr.mxu0 0.0
    %2169 = vmatpush1.msra.mxu0 %v1639
    %2170 = vmatprep.subr.mxu0 0.0
    %2171 = vmatpush1.msra.mxu0 %v1638
    %2172 = vmatprep.subr.mxu0 0.0
    %2173 = vmatpush1.msra.mxu0 %v1637
    %2174 = vmatprep.subr.mxu0 0.0
    %2175 = vmatpush1.msra.mxu0 %v1636
    %2176 = vmatprep.subr.mxu0 0.0
    %2177 = vmatpush1.msra.mxu0 %v1635
    %2178 = vmatprep.subr.mxu0 0.0
    %2179 = vmatpush1.msra.mxu0 %v1634
    %2180 = vmatprep.subr.mxu0 0.0
    %2181 = vmatpush1.msra.mxu0 %v1633
    %2182 = vmatprep.subr.mxu0 0.0
    %2183 = vmatpush1.msra.mxu0 %v1632
    %2184 = vmatprep.subr.mxu0 0.0
    %2185 = vmatpush1.msra.mxu0 %v1631
    %2186 = vmatprep.subr.mxu0 0.0
    %2187 = vmatpush1.msra.mxu0 %v1630
    %2188 = vmatprep.subr.mxu0 0.0
    %2189 = vmatpush1.msra.mxu0 %v1629
    %2190 = vmatprep.subr.mxu0 0.0
    %2191 = vmatpush1.msra.mxu0 %v1628
    %2192 = vmatprep.subr.mxu0 0.0
    %2193 = vmatpush1.msra.mxu0 %v1627
    %2194 = vmatprep.subr.mxu0 0.0
    %2195 = vmatpush1.msra.mxu0 %v1626
    %2196 = vmatprep.subr.mxu0 0.0
    %2197 = vmatpush2.msra.mxu0 %v1657
    %2198 = vmatprep.subr.mxu0 0.0
    %2199 = vmatpush2.msra.mxu0 %v1656
    %2200 = vmatprep.subr.mxu0 0.0
    %2201 = vmatpush2.msra.mxu0 %v1655
    %2202 = vmatprep.subr.mxu0 0.0
    %2203 = vmatpush2.msra.mxu0 %v1654
    %2204 = vmatprep.subr.mxu0 0.0
    %2205 = vmatpush2.msra.mxu0 %v1653
    %2206 = vmatprep.subr.mxu0 0.0
    %2207 = vmatpush2.msra.mxu0 %v1652
    %2208 = vmatprep.subr.mxu0 0.0
    %2209 = vmatpush2.msra.mxu0 %v1651
    %2210 = vmatprep.subr.mxu0 0.0
    %2211 = vmatpush2.msra.mxu0 %v1650
    %2212 = vmatprep.subr.mxu0 0.0
    %2213 = vmatpush2.msra.mxu0 %v1649
    %2214 = vmatprep.subr.mxu0 0.0
    %2215 = vmatpush2.msra.mxu0 %v1648
    %2216 = vmatprep.subr.mxu0 0.0
    %2217 = vmatpush2.msra.mxu0 %v1647
    %2218 = vmatprep.subr.mxu0 0.0
    %2219 = vmatpush2.msra.mxu0 %v1646
    %2220 = vmatprep.subr.mxu0 0.0
    %2221 = vmatpush2.msra.mxu0 %v1645
    %2222 = vmatprep.subr.mxu0 0.0
    %2223 = vmatpush2.msra.mxu0 %v1644
    %2224 = vmatprep.subr.mxu0 0.0
    %2225 = vmatpush2.msra.mxu0 %v1643
    %2226 = vmatprep.subr.mxu0 0.0
    %2227 = vmatpush2.msra.mxu0 %v1642
    %2228 = vmatprep.mubr.f32.mxu0 %v1345
    %2229 = vmatmul.mubr.f32.gmra.mxu0 %v1344
    %v2230 = vpop.f32.mrf.mxu0
    %v2231 = vadd.f32 %v2086, %v2230
    %v2232 = vpop.f32.mrf.mxu0
    %2233 = vmatprep.mubr.f32.mxu0 %v1357
    %2234 = vmatmul.mubr.f32.gmra.mxu0 %v1356
    %v2235 = vpop.f32.mrf.mxu0
    %v2236 = vadd.f32 %v2091, %v2235
    %v2237 = vpop.f32.mrf.mxu0
    %2238 = vmatprep.mubr.f32.mxu0 %v1369
    %2239 = vmatmul.mubr.f32.gmra.mxu0 %v1368
    %v2240 = vpop.f32.mrf.mxu0
    %v2241 = vadd.f32 %v2096, %v2240
    %v2242 = vpop.f32.mrf.mxu0
    %2243 = vmatprep.mubr.f32.mxu0 %v1381
    %2244 = vmatmul.mubr.f32.gmra.mxu0 %v1380
    %v2245 = vpop.f32.mrf.mxu0
    %v2246 = vadd.f32 %v2101, %v2245
    %v2247 = vpop.f32.mrf.mxu0
    %2248 = vmatprep.mubr.f32.mxu0 %v1393
    %2249 = vmatmul.mubr.f32.gmra.mxu0 %v1392
    %v2250 = vpop.f32.mrf.mxu0
    %v2251 = vadd.f32 %v2106, %v2250
    %v2252 = vpop.f32.mrf.mxu0
    %2253 = vmatprep.mubr.f32.mxu0 %v1405
    %2254 = vmatmul.mubr.f32.gmra.mxu0 %v1404
    %v2255 = vpop.f32.mrf.mxu0
    %v2256 = vadd.f32 %v2111, %v2255
    %v2257 = vpop.f32.mrf.mxu0
    %2258 = vmatprep.mubr.f32.mxu0 %v1417
    %2259 = vmatmul.mubr.f32.gmra.mxu0 %v1416
    %v2260 = vpop.f32.mrf.mxu0
    %v2261 = vadd.f32 %v2116, %v2260
    %v2262 = vpop.f32.mrf.mxu0
    %2263 = vmatprep.mubr.f32.mxu0 %v1429
    %2264 = vmatmul.mubr.f32.gmra.mxu0 %v1428
    %v2265 = vpop.f32.mrf.mxu0
    %v2266 = vadd.f32 %v2121, %v2265
    %v2267 = vpop.f32.mrf.mxu0
    %2268 = vmatprep.mubr.f32.mxu0 %v1441
    %2269 = vmatmul.mubr.f32.gmra.mxu0 %v1440
    %v2270 = vpop.f32.mrf.mxu0
    %v2271 = vadd.f32 %v2126, %v2270
    %v2272 = vpop.f32.mrf.mxu0
    %2273 = vmatprep.mubr.f32.mxu0 %v1453
    %2274 = vmatmul.mubr.f32.gmra.mxu0 %v1452
    %v2275 = vpop.f32.mrf.mxu0
    %v2276 = vadd.f32 %v2131, %v2275
    %v2277 = vpop.f32.mrf.mxu0
    %2278 = vmatprep.mubr.f32.mxu0 %v1465
    %2279 = vmatmul.mubr.f32.gmra.mxu0 %v1464
    %v2280 = vpop.f32.mrf.mxu0
    %v2281 = vadd.f32 %v2136, %v2280
    %v2282 = vpop.f32.mrf.mxu0
    %2283 = vmatprep.mubr.f32.mxu0 %v1477
    %2284 = vmatmul.mubr.f32.gmra.mxu0 %v1476
    %v2285 = vpop.f32.mrf.mxu0
    %v2286 = vadd.f32 %v2141, %v2285
    %v2287 = vpop.f32.mrf.mxu0
    %2288 = vmatprep.mubr.f32.mxu0 %v1489
    %2289 = vmatmul.mubr.f32.gmra.mxu0 %v1488
    %v2290 = vpop.f32.mrf.mxu0
    %v2291 = vadd.f32 %v2146, %v2290
    %v2292 = vpop.f32.mrf.mxu0
    %2293 = vmatprep.mubr.f32.mxu0 %v1501
    %2294 = vmatmul.mubr.f32.gmra.mxu0 %v1500
    %v2295 = vpop.f32.mrf.mxu0
    %v2296 = vadd.f32 %v2151, %v2295
    %v2297 = vpop.f32.mrf.mxu0
    %2298 = vmatprep.mubr.f32.mxu0 %v1513
    %2299 = vmatmul.mubr.f32.gmra.mxu0 %v1512
    %v2300 = vpop.f32.mrf.mxu0
    %v2301 = vadd.f32 %v2156, %v2300
    %v2302 = vpop.f32.mrf.mxu0
    %2303 = vmatprep.mubr.f32.mxu0 %v1525
    %2304 = vmatmul.mubr.f32.gmra.mxu0 %v1524
    %v2305 = vpop.f32.mrf.mxu0
    %v2306 = vadd.f32 %v2161, %v2305
    %v2307 = vpop.f32.mrf.mxu0
    %2308 = vdwg.mxu0
    %2309 = vmatprep.subr.mxu0 0.0
    %2310 = vmatpush1.msra.mxu0 %v1673
    %2311 = vmatprep.subr.mxu0 0.0
    %2312 = vmatpush1.msra.mxu0 %v1672
    %2313 = vmatprep.subr.mxu0 0.0
    %2314 = vmatpush1.msra.mxu0 %v1671
    %2315 = vmatprep.subr.mxu0 0.0
    %2316 = vmatpush1.msra.mxu0 %v1670
    %2317 = vmatprep.subr.mxu0 0.0
    %2318 = vmatpush1.msra.mxu0 %v1669
    %2319 = vmatprep.subr.mxu0 0.0
    %2320 = vmatpush1.msra.mxu0 %v1668
    %2321 = vmatprep.subr.mxu0 0.0
    %2322 = vmatpush1.msra.mxu0 %v1667
    %2323 = vmatprep.subr.mxu0 0.0
    %2324 = vmatpush1.msra.mxu0 %v1666
    %2325 = vmatprep.subr.mxu0 0.0
    %2326 = vmatpush1.msra.mxu0 %v1665
    %2327 = vmatprep.subr.mxu0 0.0
    %2328 = vmatpush1.msra.mxu0 %v1664
    %2329 = vmatprep.subr.mxu0 0.0
    %2330 = vmatpush1.msra.mxu0 %v1663
    %2331 = vmatprep.subr.mxu0 0.0
    %2332 = vmatpush1.msra.mxu0 %v1662
    %2333 = vmatprep.subr.mxu0 0.0
    %2334 = vmatpush1.msra.mxu0 %v1661
    %2335 = vmatprep.subr.mxu0 0.0
    %2336 = vmatpush1.msra.mxu0 %v1660
    %2337 = vmatprep.subr.mxu0 0.0
    %2338 = vmatpush1.msra.mxu0 %v1659
    %2339 = vmatprep.subr.mxu0 0.0
    %2340 = vmatpush1.msra.mxu0 %v1658
    %2341 = vmatprep.subr.mxu0 0.0
    %2342 = vmatpush2.msra.mxu0 %v1689
    %2343 = vmatprep.subr.mxu0 0.0
    %2344 = vmatpush2.msra.mxu0 %v1688
    %2345 = vmatprep.subr.mxu0 0.0
    %2346 = vmatpush2.msra.mxu0 %v1687
    %2347 = vmatprep.subr.mxu0 0.0
    %2348 = vmatpush2.msra.mxu0 %v1686
    %2349 = vmatprep.subr.mxu0 0.0
    %2350 = vmatpush2.msra.mxu0 %v1685
    %2351 = vmatprep.subr.mxu0 0.0
    %2352 = vmatpush2.msra.mxu0 %v1684
    %2353 = vmatprep.subr.mxu0 0.0
    %2354 = vmatpush2.msra.mxu0 %v1683
    %2355 = vmatprep.subr.mxu0 0.0
    %2356 = vmatpush2.msra.mxu0 %v1682
    %2357 = vmatprep.subr.mxu0 0.0
    %2358 = vmatpush2.msra.mxu0 %v1681
    %2359 = vmatprep.subr.mxu0 0.0
    %2360 = vmatpush2.msra.mxu0 %v1680
    %2361 = vmatprep.subr.mxu0 0.0
    %2362 = vmatpush2.msra.mxu0 %v1679
    %2363 = vmatprep.subr.mxu0 0.0
    %2364 = vmatpush2.msra.mxu0 %v1678
    %2365 = vmatprep.subr.mxu0 0.0
    %2366 = vmatpush2.msra.mxu0 %v1677
    %2367 = vmatprep.subr.mxu0 0.0
    %2368 = vmatpush2.msra.mxu0 %v1676
    %2369 = vmatprep.subr.mxu0 0.0
    %2370 = vmatpush2.msra.mxu0 %v1675
    %2371 = vmatprep.subr.mxu0 0.0
    %2372 = vmatpush2.msra.mxu0 %v1674
    %2373 = vmatprep.mubr.f32.mxu0 %v1347
    %2374 = vmatmul.mubr.f32.gmra.mxu0 %v1346
    %v2375 = vpop.f32.mrf.mxu0
    %v2376 = vadd.f32 %v2231, %v2375
    %v2377 = vpop.f32.mrf.mxu0
    %2378 = vmatprep.mubr.f32.mxu0 %v1359
    %2379 = vmatmul.mubr.f32.gmra.mxu0 %v1358
    %v2380 = vpop.f32.mrf.mxu0
    %v2381 = vadd.f32 %v2236, %v2380
    %v2382 = vpop.f32.mrf.mxu0
    %2383 = vmatprep.mubr.f32.mxu0 %v1371
    %2384 = vmatmul.mubr.f32.gmra.mxu0 %v1370
    %v2385 = vpop.f32.mrf.mxu0
    %v2386 = vadd.f32 %v2241, %v2385
    %v2387 = vpop.f32.mrf.mxu0
    %2388 = vmatprep.mubr.f32.mxu0 %v1383
    %2389 = vmatmul.mubr.f32.gmra.mxu0 %v1382
    %v2390 = vpop.f32.mrf.mxu0
    %v2391 = vadd.f32 %v2246, %v2390
    %v2392 = vpop.f32.mrf.mxu0
    %2393 = vmatprep.mubr.f32.mxu0 %v1395
    %2394 = vmatmul.mubr.f32.gmra.mxu0 %v1394
    %v2395 = vpop.f32.mrf.mxu0
    %v2396 = vadd.f32 %v2251, %v2395
    %v2397 = vpop.f32.mrf.mxu0
    %2398 = vmatprep.mubr.f32.mxu0 %v1407
    %2399 = vmatmul.mubr.f32.gmra.mxu0 %v1406
    %v2400 = vpop.f32.mrf.mxu0
    %v2401 = vadd.f32 %v2256, %v2400
    %v2402 = vpop.f32.mrf.mxu0
    %2403 = vmatprep.mubr.f32.mxu0 %v1419
    %2404 = vmatmul.mubr.f32.gmra.mxu0 %v1418
    %v2405 = vpop.f32.mrf.mxu0
    %v2406 = vadd.f32 %v2261, %v2405
    %v2407 = vpop.f32.mrf.mxu0
    %2408 = vmatprep.mubr.f32.mxu0 %v1431
    %2409 = vmatmul.mubr.f32.gmra.mxu0 %v1430
    %v2410 = vpop.f32.mrf.mxu0
    %v2411 = vadd.f32 %v2266, %v2410
    %v2412 = vpop.f32.mrf.mxu0
    %2413 = vmatprep.mubr.f32.mxu0 %v1443
    %2414 = vmatmul.mubr.f32.gmra.mxu0 %v1442
    %v2415 = vpop.f32.mrf.mxu0
    %v2416 = vadd.f32 %v2271, %v2415
    %v2417 = vpop.f32.mrf.mxu0
    %2418 = vmatprep.mubr.f32.mxu0 %v1455
    %2419 = vmatmul.mubr.f32.gmra.mxu0 %v1454
    %v2420 = vpop.f32.mrf.mxu0
    %v2421 = vadd.f32 %v2276, %v2420
    %v2422 = vpop.f32.mrf.mxu0
    %2423 = vmatprep.mubr.f32.mxu0 %v1467
    %2424 = vmatmul.mubr.f32.gmra.mxu0 %v1466
    %v2425 = vpop.f32.mrf.mxu0
    %v2426 = vadd.f32 %v2281, %v2425
    %v2427 = vpop.f32.mrf.mxu0
    %2428 = vmatprep.mubr.f32.mxu0 %v1479
    %2429 = vmatmul.mubr.f32.gmra.mxu0 %v1478
    %v2430 = vpop.f32.mrf.mxu0
    %v2431 = vadd.f32 %v2286, %v2430
    %v2432 = vpop.f32.mrf.mxu0
    %2433 = vmatprep.mubr.f32.mxu0 %v1491
    %2434 = vmatmul.mubr.f32.gmra.mxu0 %v1490
    %v2435 = vpop.f32.mrf.mxu0
    %v2436 = vadd.f32 %v2291, %v2435
    %v2437 = vpop.f32.mrf.mxu0
    %2438 = vmatprep.mubr.f32.mxu0 %v1503
    %2439 = vmatmul.mubr.f32.gmra.mxu0 %v1502
    %v2440 = vpop.f32.mrf.mxu0
    %v2441 = vadd.f32 %v2296, %v2440
    %v2442 = vpop.f32.mrf.mxu0
    %2443 = vmatprep.mubr.f32.mxu0 %v1515
    %2444 = vmatmul.mubr.f32.gmra.mxu0 %v1514
    %v2445 = vpop.f32.mrf.mxu0
    %v2446 = vadd.f32 %v2301, %v2445
    %v2447 = vpop.f32.mrf.mxu0
    %2448 = vmatprep.mubr.f32.mxu0 %v1527
    %2449 = vmatmul.mubr.f32.gmra.mxu0 %v1526
    %v2450 = vpop.f32.mrf.mxu0
    %v2451 = vadd.f32 %v2306, %v2450
    %v2452 = vpop.f32.mrf.mxu0
    %2453 = vdwg.mxu0
    %2454 = vmatprep.subr.mxu0 0.0
    %2455 = vmatpush1.msra.mxu0 %v1705
    %2456 = vmatprep.subr.mxu0 0.0
    %2457 = vmatpush1.msra.mxu0 %v1704
    %2458 = vmatprep.subr.mxu0 0.0
    %2459 = vmatpush1.msra.mxu0 %v1703
    %2460 = vmatprep.subr.mxu0 0.0
    %2461 = vmatpush1.msra.mxu0 %v1702
    %2462 = vmatprep.subr.mxu0 0.0
    %2463 = vmatpush1.msra.mxu0 %v1701
    %2464 = vmatprep.subr.mxu0 0.0
    %2465 = vmatpush1.msra.mxu0 %v1700
    %2466 = vmatprep.subr.mxu0 0.0
    %2467 = vmatpush1.msra.mxu0 %v1699
    %2468 = vmatprep.subr.mxu0 0.0
    %2469 = vmatpush1.msra.mxu0 %v1698
    %2470 = vmatprep.subr.mxu0 0.0
    %2471 = vmatpush1.msra.mxu0 %v1697
    %2472 = vmatprep.subr.mxu0 0.0
    %2473 = vmatpush1.msra.mxu0 %v1696
    %2474 = vmatprep.subr.mxu0 0.0
    %2475 = vmatpush1.msra.mxu0 %v1695
    %2476 = vmatprep.subr.mxu0 0.0
    %2477 = vmatpush1.msra.mxu0 %v1694
    %2478 = vmatprep.subr.mxu0 0.0
    %2479 = vmatpush1.msra.mxu0 %v1693
    %2480 = vmatprep.subr.mxu0 0.0
    %2481 = vmatpush1.msra.mxu0 %v1692
    %2482 = vmatprep.subr.mxu0 0.0
    %2483 = vmatpush1.msra.mxu0 %v1691
    %2484 = vmatprep.subr.mxu0 0.0
    %2485 = vmatpush1.msra.mxu0 %v1690
    %2486 = vmatprep.subr.mxu0 0.0
    %2487 = vmatpush2.msra.mxu0 %v1721
    %2488 = vmatprep.subr.mxu0 0.0
    %2489 = vmatpush2.msra.mxu0 %v1720
    %2490 = vmatprep.subr.mxu0 0.0
    %2491 = vmatpush2.msra.mxu0 %v1719
    %2492 = vmatprep.subr.mxu0 0.0
    %2493 = vmatpush2.msra.mxu0 %v1718
    %2494 = vmatprep.subr.mxu0 0.0
    %2495 = vmatpush2.msra.mxu0 %v1717
    %2496 = vmatprep.subr.mxu0 0.0
    %2497 = vmatpush2.msra.mxu0 %v1716
    %2498 = vmatprep.subr.mxu0 0.0
    %2499 = vmatpush2.msra.mxu0 %v1715
    %2500 = vmatprep.subr.mxu0 0.0
    %2501 = vmatpush2.msra.mxu0 %v1714
    %2502 = vmatprep.subr.mxu0 0.0
    %2503 = vmatpush2.msra.mxu0 %v1713
    %2504 = vmatprep.subr.mxu0 0.0
    %2505 = vmatpush2.msra.mxu0 %v1712
    %2506 = vmatprep.subr.mxu0 0.0
    %2507 = vmatpush2.msra.mxu0 %v1711
    %2508 = vmatprep.subr.mxu0 0.0
    %2509 = vmatpush2.msra.mxu0 %v1710
    %2510 = vmatprep.subr.mxu0 0.0
    %2511 = vmatpush2.msra.mxu0 %v1709
    %2512 = vmatprep.subr.mxu0 0.0
    %2513 = vmatpush2.msra.mxu0 %v1708
    %2514 = vmatprep.subr.mxu0 0.0
    %2515 = vmatpush2.msra.mxu0 %v1707
    %2516 = vmatprep.subr.mxu0 0.0
    %2517 = vmatpush2.msra.mxu0 %v1706
    %2518 = vmatprep.mubr.f32.mxu0 %v1349
    %2519 = vmatmul.mubr.f32.gmra.mxu0 %v1348
    %v2520 = vpop.f32.mrf.mxu0
    %v2521 = vadd.f32 %v2376, %v2520
    %v2522 = vpop.f32.mrf.mxu0
    %2523 = vmatprep.mubr.f32.mxu0 %v1361
    %2524 = vmatmul.mubr.f32.gmra.mxu0 %v1360
    %v2525 = vpop.f32.mrf.mxu0
    %v2526 = vadd.f32 %v2381, %v2525
    %v2527 = vpop.f32.mrf.mxu0
    %2528 = vmatprep.mubr.f32.mxu0 %v1373
    %2529 = vmatmul.mubr.f32.gmra.mxu0 %v1372
    %v2530 = vpop.f32.mrf.mxu0
    %v2531 = vadd.f32 %v2386, %v2530
    %v2532 = vpop.f32.mrf.mxu0
    %2533 = vmatprep.mubr.f32.mxu0 %v1385
    %2534 = vmatmul.mubr.f32.gmra.mxu0 %v1384
    %v2535 = vpop.f32.mrf.mxu0
    %v2536 = vadd.f32 %v2391, %v2535
    %v2537 = vpop.f32.mrf.mxu0
    %2538 = vmatprep.mubr.f32.mxu0 %v1397
    %2539 = vmatmul.mubr.f32.gmra.mxu0 %v1396
    %v2540 = vpop.f32.mrf.mxu0
    %v2541 = vadd.f32 %v2396, %v2540
    %v2542 = vpop.f32.mrf.mxu0
    %2543 = vmatprep.mubr.f32.mxu0 %v1409
    %2544 = vmatmul.mubr.f32.gmra.mxu0 %v1408
    %v2545 = vpop.f32.mrf.mxu0
    %v2546 = vadd.f32 %v2401, %v2545
    %v2547 = vpop.f32.mrf.mxu0
    %2548 = vmatprep.mubr.f32.mxu0 %v1421
    %2549 = vmatmul.mubr.f32.gmra.mxu0 %v1420
    %v2550 = vpop.f32.mrf.mxu0
    %v2551 = vadd.f32 %v2406, %v2550
    %v2552 = vpop.f32.mrf.mxu0
    %2553 = vmatprep.mubr.f32.mxu0 %v1433
    %2554 = vmatmul.mubr.f32.gmra.mxu0 %v1432
    %v2555 = vpop.f32.mrf.mxu0
    %v2556 = vadd.f32 %v2411, %v2555
    %v2557 = vpop.f32.mrf.mxu0
    %2558 = vmatprep.mubr.f32.mxu0 %v1445
    %2559 = vmatmul.mubr.f32.gmra.mxu0 %v1444
    %v2560 = vpop.f32.mrf.mxu0
    %v2561 = vadd.f32 %v2416, %v2560
    %v2562 = vpop.f32.mrf.mxu0
    %2563 = vmatprep.mubr.f32.mxu0 %v1457
    %2564 = vmatmul.mubr.f32.gmra.mxu0 %v1456
    %v2565 = vpop.f32.mrf.mxu0
    %v2566 = vadd.f32 %v2421, %v2565
    %v2567 = vpop.f32.mrf.mxu0
    %2568 = vmatprep.mubr.f32.mxu0 %v1469
    %2569 = vmatmul.mubr.f32.gmra.mxu0 %v1468
    %v2570 = vpop.f32.mrf.mxu0
    %v2571 = vadd.f32 %v2426, %v2570
    %v2572 = vpop.f32.mrf.mxu0
    %2573 = vmatprep.mubr.f32.mxu0 %v1481
    %2574 = vmatmul.mubr.f32.gmra.mxu0 %v1480
    %v2575 = vpop.f32.mrf.mxu0
    %v2576 = vadd.f32 %v2431, %v2575
    %v2577 = vpop.f32.mrf.mxu0
    %2578 = vmatprep.mubr.f32.mxu0 %v1493
    %2579 = vmatmul.mubr.f32.gmra.mxu0 %v1492
    %v2580 = vpop.f32.mrf.mxu0
    %v2581 = vadd.f32 %v2436, %v2580
    %v2582 = vpop.f32.mrf.mxu0
    %2583 = vmatprep.mubr.f32.mxu0 %v1505
    %2584 = vmatmul.mubr.f32.gmra.mxu0 %v1504
    %v2585 = vpop.f32.mrf.mxu0
    %v2586 = vadd.f32 %v2441, %v2585
    %v2587 = vpop.f32.mrf.mxu0
    %2588 = vmatprep.mubr.f32.mxu0 %v1517
    %2589 = vmatmul.mubr.f32.gmra.mxu0 %v1516
    %v2590 = vpop.f32.mrf.mxu0
    %v2591 = vadd.f32 %v2446, %v2590
    %v2592 = vpop.f32.mrf.mxu0
    %2593 = vmatprep.mubr.f32.mxu0 %v1529
    %2594 = vmatmul.mubr.f32.gmra.mxu0 %v1528
    %v2595 = vpop.f32.mrf.mxu0
    %v2596 = vadd.f32 %v2451, %v2595
    %v2597 = vpop.f32.mrf.mxu0
    %2598 = vdwg.mxu0
    %2599 = vst [vmem:[%s5] sm:$0xff] %v2521
    %2600 = vst [vmem:[%s5 + $0x8] sm:$0xff] %v2526
    %2601 = vst [vmem:[%s5 + $0x10] sm:$0xff] %v2531
    %2602 = vst [vmem:[%s5 + $0x18] sm:$0xff] %v2536
    %2603 = vst [vmem:[%s5 + $0x20] sm:$0xff] %v2541
    %2604 = vst [vmem:[%s5 + $0x28] sm:$0xff] %v2546
    %2605 = vst [vmem:[%s5 + $0x30] sm:$0xff] %v2551
    %2606 = vst [vmem:[%s5 + $0x38] sm:$0xff] %v2556
    %2607 = vst [vmem:[%s5 + $0x40] sm:$0xff] %v2561
    %2608 = vst [vmem:[%s5 + $0x48] sm:$0xff] %v2566
    %2609 = vst [vmem:[%s5 + $0x50] sm:$0xff] %v2571
    %2610 = vst [vmem:[%s5 + $0x58] sm:$0xff] %v2576
    %2611 = vst [vmem:[%s5 + $0x60] sm:$0xff] %v2581
    %2612 = vst [vmem:[%s5 + $0x68] sm:$0xff] %v2586
    %2613 = vst [vmem:[%s5 + $0x70] sm:$0xff] %v2591
    %2614 = vst [vmem:[%s5 + $0x78] sm:$0xff] %v2596
    // Predicated region
    $region37: #{net_forward.1} parent=1 // pred_check
      _
    $region38: #{net_forward.1} parent=1 // pred_check_branch
      %2616 = sbr.rel (0) target = $region40
    $region39: #{net_forward.1} parent=1 // pred_region
      _
    $region40: #{net_forward.1} parent=1 // pred_fallthru
      _
    // Predicated region
    $region41: #{net_forward.1} parent=1 // pred_check
      _
    $region42: #{net_forward.1} parent=1 // pred_check_branch
      %2618 = sbr.rel (0) target = $region44
    $region43: #{net_forward.1} parent=1 // pred_region
      _
    $region44: #{net_forward.1} parent=1 // pred_fallthru
      _
    %2619 = vsyncpa [#allocation4], 1
    %2620 = vsyncpa [#allocation6], 1

</llo_original>
